<compile_context>
chip_gen: v7x
topology: tpu7x:2x2x1
jax: 0.10.0
libtpu: 0.0.40
codegen_flags: <defaults>
</compile_context>

<pallas_src>
import functools

import jax
import jax.numpy as jnp
from jax.experimental import pallas as pl
from jax.experimental.pallas import tpu as pltpu

GAT_EPS = 1e-5
LEAKY_SLOPE = 0.01  # torch.nn.functional.leaky_relu default negative_slope


# ---------------------------------------------------------------------------
# Pallas kernels
# ---------------------------------------------------------------------------
def _gat_conv_kernel(x_ref, wt_ref, b_ref, adi_ref, adj_ref, rep_ref,
                     gsrc_ref, gdst_ref, ew_ref, o_ref,
                     h_scr, li_scr, lj_scr, *, n_inputs, fuse_bn_relu):
    """Fused all-head CustomGATConv; grid axis = edge-tile (reduction).

    For n_inputs == 2 it computes conv(x_a) + conv(x_b) with one shared
    scatter (aggregation is linear), sharing the G_src/G_dst DMAs.
    Optionally fuses BatchNorm(batch stats) + ReLU into the epilogue.
    """
    e = pl.program_id(0)
    n_e = pl.num_programs(0)

    @pl.when(e == 0)
    def _init():
        o_ref[...] = jnp.zeros_like(o_ref)
        wt = wt_ref[...]
        b = b_ref[...]
        adi = adi_ref[...]
        adj = adj_ref[...]
        for t in range(n_inputs):                                    # static unroll
            h = jnp.dot(x_ref[t], wt, preferred_element_type=jnp.float32) + b
            h_scr[t] = h                                             # [N, H*F]
            li_scr[t] = jnp.dot(h, adi, preferred_element_type=jnp.float32)
            lj_scr[t] = jnp.dot(h, adj, preferred_element_type=jnp.float32)

    gsrc = gsrc_ref[...].astype(jnp.float32)     # [TE, N] (bf16 in HBM, 0/1 exact)
    gdst = gdst_ref[...].astype(jnp.float32)     # [TE, N]
    ew = ew_ref[...]                             # [TE, 1]
    rep = rep_ref[...]                           # [Hp, H*F] head -> feature expand

    msg = None
    for t in range(n_inputs):                                        # static unroll
        # attention score per edge = leaky_relu(logit_i[dst] + logit_j[src])
        si = jnp.dot(gdst, li_scr[t], preferred_element_type=jnp.float32)  # [TE, Hp]
        sj = jnp.dot(gsrc, lj_scr[t], preferred_element_type=jnp.float32)  # [TE, Hp]
        score = si + sj
        score = jnp.where(score > 0.0, score, LEAKY_SLOPE * score)
        score = score * ew            # fold 1/(edge_attr+1e-7)^2 into the narrow score
        # gather source-node features (all heads at once)
        xj = jnp.dot(gsrc, h_scr[t], preferred_element_type=jnp.float32)   # [TE, H*F]
        m = jnp.dot(score, rep, preferred_element_type=jnp.float32) * xj   # [TE, H*F]
        msg = m if msg is None else msg + m

    # scatter-add over destination nodes: G_dst^T @ msg (transposed contraction,
    # no materialized [N, E] transpose).
    o_ref[...] += jax.lax.dot_general(
        gdst, msg,
        dimension_numbers=(((0,), (0,)), ((), ())),
        preferred_element_type=jnp.float32)

    if fuse_bn_relu:
        @pl.when(e == n_e - 1)
        def _finalize():
            # BatchNorm1d (training-mode batch stats, gamma=1, beta=0) + ReLU.
            y = o_ref[...]
            mean = jnp.mean(y, axis=0, keepdims=True)
            var = jnp.mean((y - mean) ** 2, axis=0, keepdims=True)  # biased variance
            yn = (y - mean) * jax.lax.rsqrt(var + GAT_EPS)
            o_ref[...] = jnp.maximum(yn, 0.0)


def _mlp_head_kernel(k_ref, w1_ref, b1_ref, w2_ref, b2_ref, w3_ref, b3_ref,
                     w4_ref, b4_ref, wp_ref, bp_ref, o_ref):
    """Whole MLP head in one kernel: 4x (BN+ReLU -> Linear [+residual]) + predictor."""
    def bn_relu(v):
        m = jnp.mean(v, axis=0, keepdims=True)
        var = jnp.mean((v - m) ** 2, axis=0, keepdims=True)
        return jnp.maximum((v - m) * jax.lax.rsqrt(var + GAT_EPS), 0.0)

    def lin(v, w_ref, b_ref):
        return jnp.dot(v, w_ref[...], preferred_element_type=jnp.float32) + b_ref[...]

    h1 = lin(bn_relu(k_ref[...]), w1_ref, b1_ref)
    h2 = lin(bn_relu(h1), w2_ref, b2_ref) + h1
    h3 = lin(bn_relu(h2), w3_ref, b3_ref) + h2
    h4 = lin(bn_relu(h3), w4_ref, b4_ref) + h3
    o_ref[...] = lin(h4, wp_ref, bp_ref)


# ---------------------------------------------------------------------------
# Wrappers
# ---------------------------------------------------------------------------
def _pick_edge_tile(num_edges, num_nodes):
    """Edge-axis tile (multiple of 8) sized so double-buffered bf16 G tiles <= ~8 MiB."""
    budget = 8 * 1024 * 1024
    max_te = max(8, (budget // (8 * max(num_nodes, 1))) // 8 * 8)
    e_pad8 = -(-num_edges // 8) * 8
    te = min(e_pad8, max_te)
    e_pad = -(-e_pad8 // te) * te
    return te, e_pad


def gat_conv(xs, p, graph, *, fuse_bn_relu):
    """Run the fused CustomGATConv kernel on one (or a residual pair of) input(s)."""
    gsrc, gdst, ew, te = graph
    n_in = len(xs)
    x_stack = jnp.stack(xs, axis=0)                       # [n_in, N, Fin]
    n, fin = xs[0].shape
    hf = p["Wt"].shape[1]
    hp = p["rep"].shape[0]
    e_pad = gsrc.shape[0]
    n_blocks = e_pad // te

    kernel = functools.partial(_gat_conv_kernel, n_inputs=n_in,
                               fuse_bn_relu=fuse_bn_relu)
    return pl.pallas_call(
        kernel,
        grid=(n_blocks,),
        in_specs=[
            pl.BlockSpec((n_in, n, fin), lambda e: (0, 0, 0)),   # x (stacked inputs)
            pl.BlockSpec((fin, hf), lambda e: (0, 0)),           # Wt, heads fused on lanes
            pl.BlockSpec((1, hf), lambda e: (0, 0)),             # bias
            pl.BlockSpec((hf, hp), lambda e: (0, 0)),            # att_i (block diagonal)
            pl.BlockSpec((hf, hp), lambda e: (0, 0)),            # att_j (block diagonal)
            pl.BlockSpec((hp, hf), lambda e: (0, 0)),            # head -> feature expand
            pl.BlockSpec((te, n), lambda e: (e, 0)),             # G_src edge tile (bf16)
            pl.BlockSpec((te, n), lambda e: (e, 0)),             # G_dst edge tile (bf16)
            pl.BlockSpec((te, 1), lambda e: (e, 0)),             # edge weights
        ],
        out_specs=pl.BlockSpec((n, hf), lambda e: (0, 0)),       # VMEM-resident accumulator
        out_shape=jax.ShapeDtypeStruct((n, hf), jnp.float32),
        scratch_shapes=[
            pltpu.VMEM((n_in, n, hf), jnp.float32),   # h = x @ W + b per input
            pltpu.VMEM((n_in, n, hp), jnp.float32),   # per-node dst logits
            pltpu.VMEM((n_in, n, hp), jnp.float32),   # per-node src logits
        ],
        compiler_params=pltpu.CompilerParams(
            dimension_semantics=("arbitrary",),       # edge axis is a reduction
            vmem_limit_bytes=32 * 1024 * 1024,
        ),
    )(x_stack, p["Wt"], p["b"], p["Adi"], p["Adj"], p["rep"], gsrc, gdst, ew)


def mlp_head(k_hop, params):
    w1, b1 = params["hidden1"]
    w2, b2 = params["hidden2"]
    w3, b3 = params["hidden3"]
    w4, b4 = params["hidden4"]
    wp, bp = params["predictor"]
    bsz = k_hop.shape[0]
    return pl.pallas_call(
        _mlp_head_kernel,
        out_shape=jax.ShapeDtypeStruct((bsz, 1), jnp.float32),
    )(k_hop, w1, b1, w2, b2, w3, b3, w4, b4, wp, bp)


# ---------------------------------------------------------------------------
# Deterministic parameter construction
# ---------------------------------------------------------------------------
def xavier_uniform(key, shape, fan_in, fan_out):
    bound = (6.0 / (fan_in + fan_out)) ** 0.5
    return jax.random.uniform(key, shape, jnp.float32, -bound, bound)


def make_conv_params(key, in_c, out_c, heads):
    k_w, k_b, k_a = jax.random.split(key, 3)
    hf = heads * out_c
    hp = max(8, heads)  # pad the head/logit axis for friendlier matmul shapes

    # per-head torch Linear weight [out, in] -> fused transposed [in, H*out]
    w = xavier_uniform(k_w, (heads, out_c, in_c), in_c, out_c)
    wt = jnp.transpose(w, (2, 0, 1)).reshape(in_c, hf)
    bound = 1.0 / (in_c ** 0.5)
    b = jax.random.uniform(k_b, (1, hf), jnp.float32, -bound, bound)

    # att is [1, 2*out] per head; first half pairs with x_i (dst), second with x_j (src)
    att = xavier_uniform(k_a, (heads, 2 * out_c), 2 * out_c, 1)
    a_i = att[:, :out_c]
    a_j = att[:, out_c:]
    eye = jnp.eye(heads, dtype=jnp.float32)
    adi_core = (a_i[:, :, None] * eye[:, None, :]).reshape(hf, heads)
    adj_core = (a_j[:, :, None] * eye[:, None, :]).reshape(hf, heads)
    rep_core = (eye[:, :, None] * jnp.ones((1, 1, out_c), jnp.float32)).reshape(heads, hf)
    adi = jnp.zeros((hf, hp), jnp.float32).at[:, :heads].set(adi_core)
    adj = jnp.zeros((hf, hp), jnp.float32).at[:, :heads].set(adj_core)
    rep = jnp.zeros((hp, hf), jnp.float32).at[:heads, :].set(rep_core)
    return {"Wt": wt, "b": b, "Adi": adi, "Adj": adj, "rep": rep}


def make_linear_params(key, in_c, out_c):
    w = xavier_uniform(key, (out_c, in_c), in_c, out_c)
    return (jnp.transpose(w), jnp.zeros((1, out_c), jnp.float32))


def make_gat_params(key, num_node_features, gat_heads):
    F, H = num_node_features, gat_heads
    keys = jax.random.split(key, 16)
    return {
        "conv1": make_conv_params(keys[0], F, F, H),
        "conv2": make_conv_params(keys[1], F * H, F, H),
        "conv3": make_conv_params(keys[2], F * H, F, H),
        "conv4": make_conv_params(keys[3], F * H, F, H),
        # conv5 / conv6 exist in the module but their outputs are dead in forward().
        "conv5": make_conv_params(keys[4], F * H, F, H),
        "conv6": make_conv_params(keys[5], F * H, F, H),
        "conv_f": make_conv_params(keys[6], F * H, F, H),
        "hidden1": make_linear_params(keys[7], F, 2 * F),
        "hidden2": make_linear_params(keys[8], 2 * F, 2 * F),
        "hidden3": make_linear_params(keys[9], 2 * F, 2 * F),
        "hidden4": make_linear_params(keys[10], 2 * F, 2 * F),
        "predictor": make_linear_params(keys[11], 2 * F, 1),
    }


# ---------------------------------------------------------------------------
# Forward pass (mirrors GAT.forward)
# ---------------------------------------------------------------------------
def gat_forward(params, x, edge_index, edge_attr, batch, li_ni_indices,
                k_neighbors, u_nb, v_nb, num_nodes):
    del batch  # batch size is taken statically from li_ni_indices.shape[0]
    N, F = x.shape
    H = params["conv1"]["Wt"].shape[1] // F                # static

    src = edge_index[0]  # x_j (source nodes)
    dst = edge_index[1]  # x_i (target nodes, scatter destination)
    ew = (1.0 / (edge_attr.astype(jnp.float32) + 1e-7) ** 2)[:, None]

    # pad the edge axis to a multiple of the edge tile; padded edges get an
    # out-of-range node index -> all-zero one-hot rows -> zero contribution.
    E = src.shape[0]
    te, e_pad = _pick_edge_tile(E, N)
    pad = e_pad - E
    if pad:
        fill = jnp.full((pad,), N, dtype=src.dtype)
        src = jnp.concatenate([src, fill])
        dst = jnp.concatenate([dst, fill])
        ew = jnp.concatenate([ew, jnp.zeros((pad, 1), jnp.float32)], axis=0)
    gsrc = jax.nn.one_hot(src, N, dtype=jnp.bfloat16)      # 0/1 -> lossless in bf16
    gdst = jax.nn.one_hot(dst, N, dtype=jnp.bfloat16)
    graph = (gsrc, gdst, ew, te)

    def conv(name, xs, **kw):
        return gat_conv(xs, params[name], graph, **kw)

    x1 = conv("conv1", [x], fuse_bn_relu=True)
    x2 = conv("conv2", [x1], fuse_bn_relu=True)
    x3 = conv("conv3", [x2, x1], fuse_bn_relu=True)        # conv3(x2)+conv3(x1), shared G DMA
    x4 = conv("conv4", [x3], fuse_bn_relu=True)
    # x5 / x6 of the reference forward are never used downstream -> dropped (dead code).
    xf_full = conv("conv_f", [x4], fuse_bn_relu=False)     # [N, H*F]
    x_f = xf_full.reshape(N, H, F).mean(axis=1)            # concat=False: mean over heads

    # k-hop edge-feature gather (index glue, plain JAX / XLA)
    # TODO(synk): k_neighbors / u_nb / v_nb are adjusted but never read by the
    # reference forward; accepted for signature parity only.
    del k_neighbors, u_nb, v_nb
    bsz = li_ni_indices.shape[0]                           # static batch size
    nodes_per_graph = num_nodes // bsz                     # num_nodes is static
    start_idx = jnp.arange(bsz, dtype=jnp.int32) * nodes_per_graph
    adj_li_ni = li_ni_indices + start_idx[:, None]
    k_hop = (jnp.take(x_f, adj_li_ni[:, 0], axis=0)
             + jnp.take(x_f, adj_li_ni[:, 1], axis=0)) / 2.0    # [B, F]

    return mlp_head(k_hop, params)                          # [B, 1]


gat_forward_jit = jax.jit(gat_forward, static_argnums=(9,))


# ---------------------------------------------------------------------------
# Driver
# ---------------------------------------------------------------------------
if __name__ == "__main__":
    key = jax.random.PRNGKey(0)

    num_node_features = 8
    gat_heads = 2
    n_graphs = 2
    nodes_per_graph = 8
    N = n_graphs * nodes_per_graph
    E = 32
    K = 4

    k0, k1, k2, k3, k4, k5, k6, kp = jax.random.split(key, 8)
    x = jax.random.normal(k0, (N, num_node_features), jnp.float32)
    edge_index = jax.random.randint(k1, (2, E), 0, N, dtype=jnp.int32)
    edge_attr = jax.random.uniform(k2, (E,), jnp.float32, 0.5, 2.0)
    batch = jnp.repeat(jnp.arange(n_graphs, dtype=jnp.int32), nodes_per_graph)
    li_ni_indices = jax.random.randint(k3, (n_graphs, 2), 0, nodes_per_graph, dtype=jnp.int32)
    k_neighbors = jax.random.randint(k4, (n_graphs, K), 0, nodes_per_graph, dtype=jnp.int32)
    u_nb = jax.random.randint(k5, (n_graphs, K), 0, nodes_per_graph, dtype=jnp.int32)
    v_nb = jax.random.randint(k6, (n_graphs, K), 0, nodes_per_graph, dtype=jnp.int32)
    num_nodes = N  # static

    params = make_gat_params(kp, num_node_features, gat_heads)

    pred = gat_forward_jit(params, x, edge_index, edge_attr, batch, li_ni_indices,
                           k_neighbors, u_nb, v_nb, num_nodes)
    pred = jax.block_until_ready(pred)
    assert pred.shape == (n_graphs, 1)
    print("KERNEL_OK")
</pallas_src>

<mosaic_0001>
module attributes {stable_mosaic.version = 11 : i64} {
  func.func @_gat_conv_kernel(%arg0: i32, %arg1: memref<1x16x8xf32, #tpu.memory_space<vmem>>, %arg2: memref<8x16xf32, #tpu.memory_space<vmem>>, %arg3: memref<1x16xf32, #tpu.memory_space<vmem>>, %arg4: memref<16x8xf32, #tpu.memory_space<vmem>>, %arg5: memref<16x8xf32, #tpu.memory_space<vmem>>, %arg6: memref<8x16xf32, #tpu.memory_space<vmem>>, %arg7: memref<32x16xbf16, #tpu.memory_space<vmem>>, %arg8: memref<32x16xbf16, #tpu.memory_space<vmem>>, %arg9: memref<32x1xf32, #tpu.memory_space<vmem>>, %arg10: memref<16x16xf32, #tpu.memory_space<vmem>>, %arg11: memref<1x16x16xf32, #tpu.memory_space<vmem>>, %arg12: memref<1x16x8xf32, #tpu.memory_space<vmem>>, %arg13: memref<1x16x8xf32, #tpu.memory_space<vmem>>) attributes {dimension_semantics = [#tpu.dimension_semantics<arbitrary>], iteration_bounds = array<i64: 1>, scalar_prefetch = 0 : i64, scratch_operands = 3 : i64, tpu.core_type = #tpu.core_type<tc>, window_params = [{pipeline_mode = #tpu.pipeline_mode<synchronous>, transform_indices = @transform_0, window_bounds = array<i64: 1, 16, 8>}, {pipeline_mode = #tpu.pipeline_mode<synchronous>, transform_indices = @transform_1, window_bounds = array<i64: 8, 16>}, {pipeline_mode = #tpu.pipeline_mode<synchronous>, transform_indices = @transform_2, window_bounds = array<i64: 1, 16>}, {pipeline_mode = #tpu.pipeline_mode<synchronous>, transform_indices = @transform_3, window_bounds = array<i64: 16, 8>}, {pipeline_mode = #tpu.pipeline_mode<synchronous>, transform_indices = @transform_4, window_bounds = array<i64: 16, 8>}, {pipeline_mode = #tpu.pipeline_mode<synchronous>, transform_indices = @transform_5, window_bounds = array<i64: 8, 16>}, {transform_indices = @transform_6, window_bounds = array<i64: 32, 16>}, {transform_indices = @transform_7, window_bounds = array<i64: 32, 16>}, {transform_indices = @transform_8, window_bounds = array<i64: 32, 1>}, {pipeline_mode = #tpu.pipeline_mode<synchronous>, transform_indices = @transform_9, window_bounds = array<i64: 16, 16>}]} {
    %c0_i32 = arith.constant 0 : i32
    %0 = arith.cmpi eq, %arg0, %c0_i32 : i32
    %1 = arith.extui %0 : i1 to i32
    %c0_i32_0 = arith.constant 0 : i32
    %2 = arith.cmpi ne, %1, %c0_i32_0 : i32
    scf.if %2 {
      %cst_29 = arith.constant 0.000000e+00 : f32
      %35 = vector.broadcast %cst_29 : f32 to vector<16x16xf32>
      %c0_30 = arith.constant 0 : index
      %c0_31 = arith.constant 0 : index
      %36 = vector.load %arg10[%c0_30, %c0_31] : memref<16x16xf32, #tpu.memory_space<vmem>>, vector<16x16xf32>
      tpu.vector_store %arg10[%c0_30, %c0_31], %35 {strides = array<i32>} : memref<16x16xf32, #tpu.memory_space<vmem>>, vector<16x16xf32>,
      %c0_32 = arith.constant 0 : index
      %c0_33 = arith.constant 0 : index
      %37 = vector.load %arg2[%c0_32, %c0_33] : memref<8x16xf32, #tpu.memory_space<vmem>>, vector<8x16xf32>
      %c0_34 = arith.constant 0 : index
      %c0_35 = arith.constant 0 : index
      %38 = vector.load %arg3[%c0_34, %c0_35] : memref<1x16xf32, #tpu.memory_space<vmem>>, vector<1x16xf32>
      %c0_36 = arith.constant 0 : index
      %c0_37 = arith.constant 0 : index
      %39 = vector.load %arg4[%c0_36, %c0_37] : memref<16x8xf32, #tpu.memory_space<vmem>>, vector<16x8xf32>
      %c0_38 = arith.constant 0 : index
      %c0_39 = arith.constant 0 : index
      %40 = vector.load %arg5[%c0_38, %c0_39] : memref<16x8xf32, #tpu.memory_space<vmem>>, vector<16x8xf32>
      %c0_40 = arith.constant 0 : index
      %c0_41 = arith.constant 0 : index
      %c0_42 = arith.constant 0 : index
      %41 = vector.load %arg1[%c0_40, %c0_41, %c0_42] : memref<1x16x8xf32, #tpu.memory_space<vmem>>, vector<1x16x8xf32>
      %42 = vector.shape_cast %41 : vector<1x16x8xf32> to vector<16x8xf32>
      %cst_43 = arith.constant dense<0.000000e+00> : vector<16x16xf32>
      %43 = tpu.matmul %42, %37, %cst_43 {dimension_numbers = #tpu.dot_dimension_numbers<[1], [0], [0], [1], [0, 0, 1, 1], [], []>} : vector<16x8xf32>, vector<8x16xf32>, vector<16x16xf32> -> vector<16x16xf32>
      %44 = vector.broadcast %38 : vector<1x16xf32> to vector<16x16xf32>
      %45 = arith.addf %43, %44 : vector<16x16xf32>
      %c0_44 = arith.constant 0 : index
      %c0_45 = arith.constant 0 : index
      %c0_46 = arith.constant 0 : index
      %46 = vector.load %arg11[%c0_44, %c0_45, %c0_46] : memref<1x16x16xf32, #tpu.memory_space<vmem>>, vector<1x16x16xf32>
      %47 = vector.shape_cast %46 : vector<1x16x16xf32> to vector<16x16xf32>
      %48 = vector.shape_cast %45 : vector<16x16xf32> to vector<1x16x16xf32>
      tpu.vector_store %arg11[%c0_44, %c0_45, %c0_46], %48 {strides = array<i32>} : memref<1x16x16xf32, #tpu.memory_space<vmem>>, vector<1x16x16xf32>,
      %cst_47 = arith.constant dense<0.000000e+00> : vector<16x8xf32>
      %49 = tpu.matmul %45, %39, %cst_47 {dimension_numbers = #tpu.dot_dimension_numbers<[1], [0], [0], [1], [0, 0, 1, 1], [], []>} : vector<16x16xf32>, vector<16x8xf32>, vector<16x8xf32> -> vector<16x8xf32>
      %c0_48 = arith.constant 0 : index
      %c0_49 = arith.constant 0 : index
      %c0_50 = arith.constant 0 : index
      %50 = vector.load %arg12[%c0_48, %c0_49, %c0_50] : memref<1x16x8xf32, #tpu.memory_space<vmem>>, vector<1x16x8xf32>
      %51 = vector.shape_cast %50 : vector<1x16x8xf32> to vector<16x8xf32>
      %52 = vector.shape_cast %49 : vector<16x8xf32> to vector<1x16x8xf32>
      tpu.vector_store %arg12[%c0_48, %c0_49, %c0_50], %52 {strides = array<i32>} : memref<1x16x8xf32, #tpu.memory_space<vmem>>, vector<1x16x8xf32>,
      %cst_51 = arith.constant dense<0.000000e+00> : vector<16x8xf32>
      %53 = tpu.matmul %45, %40, %cst_51 {dimension_numbers = #tpu.dot_dimension_numbers<[1], [0], [0], [1], [0, 0, 1, 1], [], []>} : vector<16x16xf32>, vector<16x8xf32>, vector<16x8xf32> -> vector<16x8xf32>
      %c0_52 = arith.constant 0 : index
      %c0_53 = arith.constant 0 : index
      %c0_54 = arith.constant 0 : index
      %54 = vector.load %arg13[%c0_52, %c0_53, %c0_54] : memref<1x16x8xf32, #tpu.memory_space<vmem>>, vector<1x16x8xf32>
      %55 = vector.shape_cast %54 : vector<1x16x8xf32> to vector<16x8xf32>
      %56 = vector.shape_cast %53 : vector<16x8xf32> to vector<1x16x8xf32>
      tpu.vector_store %arg13[%c0_52, %c0_53, %c0_54], %56 {strides = array<i32>} : memref<1x16x8xf32, #tpu.memory_space<vmem>>, vector<1x16x8xf32>,
    } else {
    }
    %c0 = arith.constant 0 : index
    %c0_1 = arith.constant 0 : index
    %3 = vector.load %arg7[%c0, %c0_1] : memref<32x16xbf16, #tpu.memory_space<vmem>>, vector<32x16xbf16>
    %4 = arith.extf %3 : vector<32x16xbf16> to vector<32x16xf32>
    %c0_2 = arith.constant 0 : index
    %c0_3 = arith.constant 0 : index
    %5 = vector.load %arg8[%c0_2, %c0_3] : memref<32x16xbf16, #tpu.memory_space<vmem>>, vector<32x16xbf16>
    %6 = arith.extf %5 : vector<32x16xbf16> to vector<32x16xf32>
    %c0_4 = arith.constant 0 : index
    %c0_5 = arith.constant 0 : index
    %7 = vector.load %arg9[%c0_4, %c0_5] : memref<32x1xf32, #tpu.memory_space<vmem>>, vector<32x1xf32>
    %c0_6 = arith.constant 0 : index
    %c0_7 = arith.constant 0 : index
    %8 = vector.load %arg6[%c0_6, %c0_7] : memref<8x16xf32, #tpu.memory_space<vmem>>, vector<8x16xf32>
    %c0_8 = arith.constant 0 : index
    %c0_9 = arith.constant 0 : index
    %c0_10 = arith.constant 0 : index
    %9 = vector.load %arg12[%c0_8, %c0_9, %c0_10] : memref<1x16x8xf32, #tpu.memory_space<vmem>>, vector<1x16x8xf32>
    %10 = vector.shape_cast %9 : vector<1x16x8xf32> to vector<16x8xf32>
    %cst = arith.constant dense<0.000000e+00> : vector<32x8xf32>
    %11 = tpu.matmul %6, %10, %cst {dimension_numbers = #tpu.dot_dimension_numbers<[1], [0], [0], [1], [0, 0, 1, 1], [], []>} : vector<32x16xf32>, vector<16x8xf32>, vector<32x8xf32> -> vector<32x8xf32>
    %c0_11 = arith.constant 0 : index
    %c0_12 = arith.constant 0 : index
    %c0_13 = arith.constant 0 : index
    %12 = vector.load %arg13[%c0_11, %c0_12, %c0_13] : memref<1x16x8xf32, #tpu.memory_space<vmem>>, vector<1x16x8xf32>
    %13 = vector.shape_cast %12 : vector<1x16x8xf32> to vector<16x8xf32>
    %cst_14 = arith.constant dense<0.000000e+00> : vector<32x8xf32>
    %14 = tpu.matmul %4, %13, %cst_14 {dimension_numbers = #tpu.dot_dimension_numbers<[1], [0], [0], [1], [0, 0, 1, 1], [], []>} : vector<32x16xf32>, vector<16x8xf32>, vector<32x8xf32> -> vector<32x8xf32>
    %15 = arith.addf %11, %14 : vector<32x8xf32>
    %cst_15 = arith.constant 0.000000e+00 : f32
    %16 = vector.broadcast %cst_15 : f32 to vector<32x8xf32>
    %17 = arith.cmpf ogt, %15, %16 : vector<32x8xf32>
    %cst_16 = arith.constant 0.00999999977 : f32
    %18 = vector.broadcast %cst_16 : f32 to vector<32x8xf32>
    %19 = arith.mulf %18, %15 : vector<32x8xf32>
    %20 = arith.select %17, %15, %19 : vector<32x8xi1>, vector<32x8xf32>
    %21 = vector.broadcast %7 : vector<32x1xf32> to vector<32x8xf32>
    %22 = arith.mulf %20, %21 : vector<32x8xf32>
    %c0_17 = arith.constant 0 : index
    %c0_18 = arith.constant 0 : index
    %c0_19 = arith.constant 0 : index
    %23 = vector.load %arg11[%c0_17, %c0_18, %c0_19] : memref<1x16x16xf32, #tpu.memory_space<vmem>>, vector<1x16x16xf32>
    %24 = vector.shape_cast %23 : vector<1x16x16xf32> to vector<16x16xf32>
    %cst_20 = arith.constant dense<0.000000e+00> : vector<32x16xf32>
    %25 = tpu.matmul %4, %24, %cst_20 {dimension_numbers = #tpu.dot_dimension_numbers<[1], [0], [0], [1], [0, 0, 1, 1], [], []>} : vector<32x16xf32>, vector<16x16xf32>, vector<32x16xf32> -> vector<32x16xf32>
    %cst_21 = arith.constant dense<0.000000e+00> : vector<32x16xf32>
    %26 = tpu.matmul %22, %8, %cst_21 {dimension_numbers = #tpu.dot_dimension_numbers<[1], [0], [0], [1], [0, 0, 1, 1], [], []>} : vector<32x8xf32>, vector<8x16xf32>, vector<32x16xf32> -> vector<32x16xf32>
    %27 = arith.mulf %26, %25 : vector<32x16xf32>
    %c0_22 = arith.constant 0 : index
    %c0_23 = arith.constant 0 : index
    %28 = vector.load %arg10[%c0_22, %c0_23] : memref<16x16xf32, #tpu.memory_space<vmem>>, vector<16x16xf32>
    %cst_24 = arith.constant dense<0.000000e+00> : vector<16x16xf32>
    %29 = tpu.matmul %6, %27, %cst_24 {dimension_numbers = #tpu.dot_dimension_numbers<[0], [0], [1], [1], [0, 1, 1, 1], [], []>} : vector<32x16xf32>, vector<32x16xf32>, vector<16x16xf32> -> vector<16x16xf32>
    %30 = arith.addf %28, %29 : vector<16x16xf32>
    %c0_25 = arith.constant 0 : index
    %c0_26 = arith.constant 0 : index
    %31 = vector.load %arg10[%c0_25, %c0_26] : memref<16x16xf32, #tpu.memory_space<vmem>>, vector<16x16xf32>
    tpu.vector_store %arg10[%c0_25, %c0_26], %30 {strides = array<i32>} : memref<16x16xf32, #tpu.memory_space<vmem>>, vector<16x16xf32>,
    %c0_i32_27 = arith.constant 0 : i32
    %32 = arith.cmpi eq, %arg0, %c0_i32_27 : i32
    %33 = arith.extui %32 : i1 to i32
    %c0_i32_28 = arith.constant 0 : i32
    %34 = arith.cmpi ne, %33, %c0_i32_28 : i32
    scf.if %34 {
      %c0_29 = arith.constant 0 : index
      %c0_30 = arith.constant 0 : index
      %35 = vector.load %arg10[%c0_29, %c0_30] : memref<16x16xf32, #tpu.memory_space<vmem>>, vector<16x16xf32>
      %cst_31 = arith.constant dense<0.000000e+00> : vector<16xf32>
      %36 = vector.multi_reduction <add>, %35, %cst_31 [0] : vector<16x16xf32> to vector<16xf32>
      %37 = vector.shape_cast %36 : vector<16xf32> to vector<1x16xf32>
      %cst_32 = arith.constant 1.600000e+01 : f32
      %38 = vector.broadcast %cst_32 : f32 to vector<1x16xf32>
      %39 = arith.divf %37, %38 : vector<1x16xf32>
      %40 = vector.broadcast %39 : vector<1x16xf32> to vector<16x16xf32>
      %41 = arith.subf %35, %40 : vector<16x16xf32>
      %42 = arith.mulf %41, %41 : vector<16x16xf32>
      %cst_33 = arith.constant dense<0.000000e+00> : vector<16xf32>
      %43 = vector.multi_reduction <add>, %42, %cst_33 [0] : vector<16x16xf32> to vector<16xf32>
      %44 = vector.shape_cast %43 : vector<16xf32> to vector<1x16xf32>
      %cst_34 = arith.constant 1.600000e+01 : f32
      %45 = vector.broadcast %cst_34 : f32 to vector<1x16xf32>
      %46 = arith.divf %44, %45 : vector<1x16xf32>
      %47 = vector.broadcast %39 : vector<1x16xf32> to vector<16x16xf32>
      %48 = arith.subf %35, %47 : vector<16x16xf32>
      %cst_35 = arith.constant 9.99999974E-6 : f32
      %49 = vector.broadcast %cst_35 : f32 to vector<1x16xf32>
      %50 = arith.addf %46, %49 : vector<1x16xf32>
      %51 = math.rsqrt %50 : vector<1x16xf32>
      %52 = vector.broadcast %51 : vector<1x16xf32> to vector<16x16xf32>
      %53 = arith.mulf %48, %52 : vector<16x16xf32>
      %cst_36 = arith.constant 0.000000e+00 : f32
      %54 = vector.broadcast %cst_36 : f32 to vector<16x16xf32>
      %55 = arith.maximumf %53, %54 : vector<16x16xf32>
      %c0_37 = arith.constant 0 : index
      %c0_38 = arith.constant 0 : index
      %56 = vector.load %arg10[%c0_37, %c0_38] : memref<16x16xf32, #tpu.memory_space<vmem>>, vector<16x16xf32>
      tpu.vector_store %arg10[%c0_37, %c0_38], %55 {strides = array<i32>} : memref<16x16xf32, #tpu.memory_space<vmem>>, vector<16x16xf32>,
    } else {
    }
    return
  }
  func.func @transform_0(%arg0: i32) -> (i32, i32, i32) {
    %c0_i32 = arith.constant 0 : i32
    %c0_i32_0 = arith.constant 0 : i32
    %c0_i32_1 = arith.constant 0 : i32
    %c0_i32_2 = arith.constant 0 : i32
    return %c0_i32, %c0_i32_0, %c0_i32_1 : i32, i32, i32
  }
  func.func @transform_1(%arg0: i32) -> (i32, i32) {
    %c0_i32 = arith.constant 0 : i32
    %c0_i32_0 = arith.constant 0 : i32
    %c0_i32_1 = arith.constant 0 : i32
    return %c0_i32, %c0_i32_0 : i32, i32
  }
  func.func @transform_2(%arg0: i32) -> (i32, i32) {
    %c0_i32 = arith.constant 0 : i32
    %c0_i32_0 = arith.constant 0 : i32
    %c0_i32_1 = arith.constant 0 : i32
    return %c0_i32, %c0_i32_0 : i32, i32
  }
  func.func @transform_3(%arg0: i32) -> (i32, i32) {
    %c0_i32 = arith.constant 0 : i32
    %c0_i32_0 = arith.constant 0 : i32
    %c0_i32_1 = arith.constant 0 : i32
    return %c0_i32, %c0_i32_0 : i32, i32
  }
  func.func @transform_4(%arg0: i32) -> (i32, i32) {
    %c0_i32 = arith.constant 0 : i32
    %c0_i32_0 = arith.constant 0 : i32
    %c0_i32_1 = arith.constant 0 : i32
    return %c0_i32, %c0_i32_0 : i32, i32
  }
  func.func @transform_5(%arg0: i32) -> (i32, i32) {
    %c0_i32 = arith.constant 0 : i32
    %c0_i32_0 = arith.constant 0 : i32
    %c0_i32_1 = arith.constant 0 : i32
    return %c0_i32, %c0_i32_0 : i32, i32
  }
  func.func @transform_6(%arg0: i32) -> (i32, i32) {
    %c0_i32 = arith.constant 0 : i32
    %c0_i32_0 = arith.constant 0 : i32
    return %arg0, %c0_i32 : i32, i32
  }
  func.func @transform_7(%arg0: i32) -> (i32, i32) {
    %c0_i32 = arith.constant 0 : i32
    %c0_i32_0 = arith.constant 0 : i32
    return %arg0, %c0_i32 : i32, i32
  }
  func.func @transform_8(%arg0: i32) -> (i32, i32) {
    %c0_i32 = arith.constant 0 : i32
    %c0_i32_0 = arith.constant 0 : i32
    return %arg0, %c0_i32 : i32, i32
  }
  func.func @transform_9(%arg0: i32) -> (i32, i32) {
    %c0_i32 = arith.constant 0 : i32
    %c0_i32_0 = arith.constant 0 : i32
    %c0_i32_1 = arith.constant 0 : i32
    return %c0_i32, %c0_i32_0 : i32, i32
  }
}

module attributes {stable_mosaic.version = 11 : i64} {
  func.func @_gat_conv_kernel(%arg0: i32, %arg1: memref<1x16x16xf32, #tpu.memory_space<vmem>>, %arg2: memref<16x16xf32, #tpu.memory_space<vmem>>, %arg3: memref<1x16xf32, #tpu.memory_space<vmem>>, %arg4: memref<16x8xf32, #tpu.memory_space<vmem>>, %arg5: memref<16x8xf32, #tpu.memory_space<vmem>>, %arg6: memref<8x16xf32, #tpu.memory_space<vmem>>, %arg7: memref<32x16xbf16, #tpu.memory_space<vmem>>, %arg8: memref<32x16xbf16, #tpu.memory_space<vmem>>, %arg9: memref<32x1xf32, #tpu.memory_space<vmem>>, %arg10: memref<16x16xf32, #tpu.memory_space<vmem>>, %arg11: memref<1x16x16xf32, #tpu.memory_space<vmem>>, %arg12: memref<1x16x8xf32, #tpu.memory_space<vmem>>, %arg13: memref<1x16x8xf32, #tpu.memory_space<vmem>>) attributes {dimension_semantics = [#tpu.dimension_semantics<arbitrary>], iteration_bounds = array<i64: 1>, scalar_prefetch = 0 : i64, scratch_operands = 3 : i64, tpu.core_type = #tpu.core_type<tc>, window_params = [{pipeline_mode = #tpu.pipeline_mode<synchronous>, transform_indices = @transform_0, window_bounds = array<i64: 1, 16, 16>}, {pipeline_mode = #tpu.pipeline_mode<synchronous>, transform_indices = @transform_1, window_bounds = array<i64: 16, 16>}, {pipeline_mode = #tpu.pipeline_mode<synchronous>, transform_indices = @transform_2, window_bounds = array<i64: 1, 16>}, {pipeline_mode = #tpu.pipeline_mode<synchronous>, transform_indices = @transform_3, window_bounds = array<i64: 16, 8>}, {pipeline_mode = #tpu.pipeline_mode<synchronous>, transform_indices = @transform_4, window_bounds = array<i64: 16, 8>}, {pipeline_mode = #tpu.pipeline_mode<synchronous>, transform_indices = @transform_5, window_bounds = array<i64: 8, 16>}, {transform_indices = @transform_6, window_bounds = array<i64: 32, 16>}, {transform_indices = @transform_7, window_bounds = array<i64: 32, 16>}, {transform_indices = @transform_8, window_bounds = array<i64: 32, 1>}, {pipeline_mode = #tpu.pipeline_mode<synchronous>, transform_indices = @transform_9, window_bounds = array<i64: 16, 16>}]} {
    %c0_i32 = arith.constant 0 : i32
    %0 = arith.cmpi eq, %arg0, %c0_i32 : i32
    %1 = arith.extui %0 : i1 to i32
    %c0_i32_0 = arith.constant 0 : i32
    %2 = arith.cmpi ne, %1, %c0_i32_0 : i32
    scf.if %2 {
      %cst_29 = arith.constant 0.000000e+00 : f32
      %35 = vector.broadcast %cst_29 : f32 to vector<16x16xf32>
      %c0_30 = arith.constant 0 : index
      %c0_31 = arith.constant 0 : index
      %36 = vector.load %arg10[%c0_30, %c0_31] : memref<16x16xf32, #tpu.memory_space<vmem>>, vector<16x16xf32>
      tpu.vector_store %arg10[%c0_30, %c0_31], %35 {strides = array<i32>} : memref<16x16xf32, #tpu.memory_space<vmem>>, vector<16x16xf32>,
      %c0_32 = arith.constant 0 : index
      %c0_33 = arith.constant 0 : index
      %37 = vector.load %arg2[%c0_32, %c0_33] : memref<16x16xf32, #tpu.memory_space<vmem>>, vector<16x16xf32>
      %c0_34 = arith.constant 0 : index
      %c0_35 = arith.constant 0 : index
      %38 = vector.load %arg3[%c0_34, %c0_35] : memref<1x16xf32, #tpu.memory_space<vmem>>, vector<1x16xf32>
      %c0_36 = arith.constant 0 : index
      %c0_37 = arith.constant 0 : index
      %39 = vector.load %arg4[%c0_36, %c0_37] : memref<16x8xf32, #tpu.memory_space<vmem>>, vector<16x8xf32>
      %c0_38 = arith.constant 0 : index
      %c0_39 = arith.constant 0 : index
      %40 = vector.load %arg5[%c0_38, %c0_39] : memref<16x8xf32, #tpu.memory_space<vmem>>, vector<16x8xf32>
      %c0_40 = arith.constant 0 : index
      %c0_41 = arith.constant 0 : index
      %c0_42 = arith.constant 0 : index
      %41 = vector.load %arg1[%c0_40, %c0_41, %c0_42] : memref<1x16x16xf32, #tpu.memory_space<vmem>>, vector<1x16x16xf32>
      %42 = vector.shape_cast %41 : vector<1x16x16xf32> to vector<16x16xf32>
      %cst_43 = arith.constant dense<0.000000e+00> : vector<16x16xf32>
      %43 = tpu.matmul %42, %37, %cst_43 {dimension_numbers = #tpu.dot_dimension_numbers<[1], [0], [0], [1], [0, 0, 1, 1], [], []>} : vector<16x16xf32>, vector<16x16xf32>, vector<16x16xf32> -> vector<16x16xf32>
      %44 = vector.broadcast %38 : vector<1x16xf32> to vector<16x16xf32>
      %45 = arith.addf %43, %44 : vector<16x16xf32>
      %c0_44 = arith.constant 0 : index
      %c0_45 = arith.constant 0 : index
      %c0_46 = arith.constant 0 : index
      %46 = vector.load %arg11[%c0_44, %c0_45, %c0_46] : memref<1x16x16xf32, #tpu.memory_space<vmem>>, vector<1x16x16xf32>
      %47 = vector.shape_cast %46 : vector<1x16x16xf32> to vector<16x16xf32>
      %48 = vector.shape_cast %45 : vector<16x16xf32> to vector<1x16x16xf32>
      tpu.vector_store %arg11[%c0_44, %c0_45, %c0_46], %48 {strides = array<i32>} : memref<1x16x16xf32, #tpu.memory_space<vmem>>, vector<1x16x16xf32>,
      %cst_47 = arith.constant dense<0.000000e+00> : vector<16x8xf32>
      %49 = tpu.matmul %45, %39, %cst_47 {dimension_numbers = #tpu.dot_dimension_numbers<[1], [0], [0], [1], [0, 0, 1, 1], [], []>} : vector<16x16xf32>, vector<16x8xf32>, vector<16x8xf32> -> vector<16x8xf32>
      %c0_48 = arith.constant 0 : index
      %c0_49 = arith.constant 0 : index
      %c0_50 = arith.constant 0 : index
      %50 = vector.load %arg12[%c0_48, %c0_49, %c0_50] : memref<1x16x8xf32, #tpu.memory_space<vmem>>, vector<1x16x8xf32>
      %51 = vector.shape_cast %50 : vector<1x16x8xf32> to vector<16x8xf32>
      %52 = vector.shape_cast %49 : vector<16x8xf32> to vector<1x16x8xf32>
      tpu.vector_store %arg12[%c0_48, %c0_49, %c0_50], %52 {strides = array<i32>} : memref<1x16x8xf32, #tpu.memory_space<vmem>>, vector<1x16x8xf32>,
      %cst_51 = arith.constant dense<0.000000e+00> : vector<16x8xf32>
      %53 = tpu.matmul %45, %40, %cst_51 {dimension_numbers = #tpu.dot_dimension_numbers<[1], [0], [0], [1], [0, 0, 1, 1], [], []>} : vector<16x16xf32>, vector<16x8xf32>, vector<16x8xf32> -> vector<16x8xf32>
      %c0_52 = arith.constant 0 : index
      %c0_53 = arith.constant 0 : index
      %c0_54 = arith.constant 0 : index
      %54 = vector.load %arg13[%c0_52, %c0_53, %c0_54] : memref<1x16x8xf32, #tpu.memory_space<vmem>>, vector<1x16x8xf32>
      %55 = vector.shape_cast %54 : vector<1x16x8xf32> to vector<16x8xf32>
      %56 = vector.shape_cast %53 : vector<16x8xf32> to vector<1x16x8xf32>
      tpu.vector_store %arg13[%c0_52, %c0_53, %c0_54], %56 {strides = array<i32>} : memref<1x16x8xf32, #tpu.memory_space<vmem>>, vector<1x16x8xf32>,
    } else {
    }
    %c0 = arith.constant 0 : index
    %c0_1 = arith.constant 0 : index
    %3 = vector.load %arg7[%c0, %c0_1] : memref<32x16xbf16, #tpu.memory_space<vmem>>, vector<32x16xbf16>
    %4 = arith.extf %3 : vector<32x16xbf16> to vector<32x16xf32>
    %c0_2 = arith.constant 0 : index
    %c0_3 = arith.constant 0 : index
    %5 = vector.load %arg8[%c0_2, %c0_3] : memref<32x16xbf16, #tpu.memory_space<vmem>>, vector<32x16xbf16>
    %6 = arith.extf %5 : vector<32x16xbf16> to vector<32x16xf32>
    %c0_4 = arith.constant 0 : index
    %c0_5 = arith.constant 0 : index
    %7 = vector.load %arg9[%c0_4, %c0_5] : memref<32x1xf32, #tpu.memory_space<vmem>>, vector<32x1xf32>
    %c0_6 = arith.constant 0 : index
    %c0_7 = arith.constant 0 : index
    %8 = vector.load %arg6[%c0_6, %c0_7] : memref<8x16xf32, #tpu.memory_space<vmem>>, vector<8x16xf32>
    %c0_8 = arith.constant 0 : index
    %c0_9 = arith.constant 0 : index
    %c0_10 = arith.constant 0 : index
    %9 = vector.load %arg12[%c0_8, %c0_9, %c0_10] : memref<1x16x8xf32, #tpu.memory_space<vmem>>, vector<1x16x8xf32>
    %10 = vector.shape_cast %9 : vector<1x16x8xf32> to vector<16x8xf32>
    %cst = arith.constant dense<0.000000e+00> : vector<32x8xf32>
    %11 = tpu.matmul %6, %10, %cst {dimension_numbers = #tpu.dot_dimension_numbers<[1], [0], [0], [1], [0, 0, 1, 1], [], []>} : vector<32x16xf32>, vector<16x8xf32>, vector<32x8xf32> -> vector<32x8xf32>
    %c0_11 = arith.constant 0 : index
    %c0_12 = arith.constant 0 : index
    %c0_13 = arith.constant 0 : index
    %12 = vector.load %arg13[%c0_11, %c0_12, %c0_13] : memref<1x16x8xf32, #tpu.memory_space<vmem>>, vector<1x16x8xf32>
    %13 = vector.shape_cast %12 : vector<1x16x8xf32> to vector<16x8xf32>
    %cst_14 = arith.constant dense<0.000000e+00> : vector<32x8xf32>
    %14 = tpu.matmul %4, %13, %cst_14 {dimension_numbers = #tpu.dot_dimension_numbers<[1], [0], [0], [1], [0, 0, 1, 1], [], []>} : vector<32x16xf32>, vector<16x8xf32>, vector<32x8xf32> -> vector<32x8xf32>
    %15 = arith.addf %11, %14 : vector<32x8xf32>
    %cst_15 = arith.constant 0.000000e+00 : f32
    %16 = vector.broadcast %cst_15 : f32 to vector<32x8xf32>
    %17 = arith.cmpf ogt, %15, %16 : vector<32x8xf32>
    %cst_16 = arith.constant 0.00999999977 : f32
    %18 = vector.broadcast %cst_16 : f32 to vector<32x8xf32>
    %19 = arith.mulf %18, %15 : vector<32x8xf32>
    %20 = arith.select %17, %15, %19 : vector<32x8xi1>, vector<32x8xf32>
    %21 = vector.broadcast %7 : vector<32x1xf32> to vector<32x8xf32>
    %22 = arith.mulf %20, %21 : vector<32x8xf32>
    %c0_17 = arith.constant 0 : index
    %c0_18 = arith.constant 0 : index
    %c0_19 = arith.constant 0 : index
    %23 = vector.load %arg11[%c0_17, %c0_18, %c0_19] : memref<1x16x16xf32, #tpu.memory_space<vmem>>, vector<1x16x16xf32>
    %24 = vector.shape_cast %23 : vector<1x16x16xf32> to vector<16x16xf32>
    %cst_20 = arith.constant dense<0.000000e+00> : vector<32x16xf32>
    %25 = tpu.matmul %4, %24, %cst_20 {dimension_numbers = #tpu.dot_dimension_numbers<[1], [0], [0], [1], [0, 0, 1, 1], [], []>} : vector<32x16xf32>, vector<16x16xf32>, vector<32x16xf32> -> vector<32x16xf32>
    %cst_21 = arith.constant dense<0.000000e+00> : vector<32x16xf32>
    %26 = tpu.matmul %22, %8, %cst_21 {dimension_numbers = #tpu.dot_dimension_numbers<[1], [0], [0], [1], [0, 0, 1, 1], [], []>} : vector<32x8xf32>, vector<8x16xf32>, vector<32x16xf32> -> vector<32x16xf32>
    %27 = arith.mulf %26, %25 : vector<32x16xf32>
    %c0_22 = arith.constant 0 : index
    %c0_23 = arith.constant 0 : index
    %28 = vector.load %arg10[%c0_22, %c0_23] : memref<16x16xf32, #tpu.memory_space<vmem>>, vector<16x16xf32>
    %cst_24 = arith.constant dense<0.000000e+00> : vector<16x16xf32>
    %29 = tpu.matmul %6, %27, %cst_24 {dimension_numbers = #tpu.dot_dimension_numbers<[0], [0], [1], [1], [0, 1, 1, 1], [], []>} : vector<32x16xf32>, vector<32x16xf32>, vector<16x16xf32> -> vector<16x16xf32>
    %30 = arith.addf %28, %29 : vector<16x16xf32>
    %c0_25 = arith.constant 0 : index
    %c0_26 = arith.constant 0 : index
    %31 = vector.load %arg10[%c0_25, %c0_26] : memref<16x16xf32, #tpu.memory_space<vmem>>, vector<16x16xf32>
    tpu.vector_store %arg10[%c0_25, %c0_26], %30 {strides = array<i32>} : memref<16x16xf32, #tpu.memory_space<vmem>>, vector<16x16xf32>,
    %c0_i32_27 = arith.constant 0 : i32
    %32 = arith.cmpi eq, %arg0, %c0_i32_27 : i32
    %33 = arith.extui %32 : i1 to i32
    %c0_i32_28 = arith.constant 0 : i32
    %34 = arith.cmpi ne, %33, %c0_i32_28 : i32
    scf.if %34 {
      %c0_29 = arith.constant 0 : index
      %c0_30 = arith.constant 0 : index
      %35 = vector.load %arg10[%c0_29, %c0_30] : memref<16x16xf32, #tpu.memory_space<vmem>>, vector<16x16xf32>
      %cst_31 = arith.constant dense<0.000000e+00> : vector<16xf32>
      %36 = vector.multi_reduction <add>, %35, %cst_31 [0] : vector<16x16xf32> to vector<16xf32>
      %37 = vector.shape_cast %36 : vector<16xf32> to vector<1x16xf32>
      %cst_32 = arith.constant 1.600000e+01 : f32
      %38 = vector.broadcast %cst_32 : f32 to vector<1x16xf32>
      %39 = arith.divf %37, %38 : vector<1x16xf32>
      %40 = vector.broadcast %39 : vector<1x16xf32> to vector<16x16xf32>
      %41 = arith.subf %35, %40 : vector<16x16xf32>
      %42 = arith.mulf %41, %41 : vector<16x16xf32>
      %cst_33 = arith.constant dense<0.000000e+00> : vector<16xf32>
      %43 = vector.multi_reduction <add>, %42, %cst_33 [0] : vector<16x16xf32> to vector<16xf32>
      %44 = vector.shape_cast %43 : vector<16xf32> to vector<1x16xf32>
      %cst_34 = arith.constant 1.600000e+01 : f32
      %45 = vector.broadcast %cst_34 : f32 to vector<1x16xf32>
      %46 = arith.divf %44, %45 : vector<1x16xf32>
      %47 = vector.broadcast %39 : vector<1x16xf32> to vector<16x16xf32>
      %48 = arith.subf %35, %47 : vector<16x16xf32>
      %cst_35 = arith.constant 9.99999974E-6 : f32
      %49 = vector.broadcast %cst_35 : f32 to vector<1x16xf32>
      %50 = arith.addf %46, %49 : vector<1x16xf32>
      %51 = math.rsqrt %50 : vector<1x16xf32>
      %52 = vector.broadcast %51 : vector<1x16xf32> to vector<16x16xf32>
      %53 = arith.mulf %48, %52 : vector<16x16xf32>
      %cst_36 = arith.constant 0.000000e+00 : f32
      %54 = vector.broadcast %cst_36 : f32 to vector<16x16xf32>
      %55 = arith.maximumf %53, %54 : vector<16x16xf32>
      %c0_37 = arith.constant 0 : index
      %c0_38 = arith.constant 0 : index
      %56 = vector.load %arg10[%c0_37, %c0_38] : memref<16x16xf32, #tpu.memory_space<vmem>>, vector<16x16xf32>
      tpu.vector_store %arg10[%c0_37, %c0_38], %55 {strides = array<i32>} : memref<16x16xf32, #tpu.memory_space<vmem>>, vector<16x16xf32>,
    } else {
    }
    return
  }
  func.func @transform_0(%arg0: i32) -> (i32, i32, i32) {
    %c0_i32 = arith.constant 0 : i32
    %c0_i32_0 = arith.constant 0 : i32
    %c0_i32_1 = arith.constant 0 : i32
    %c0_i32_2 = arith.constant 0 : i32
    return %c0_i32, %c0_i32_0, %c0_i32_1 : i32, i32, i32
  }
  func.func @transform_1(%arg0: i32) -> (i32, i32) {
    %c0_i32 = arith.constant 0 : i32
    %c0_i32_0 = arith.constant 0 : i32
    %c0_i32_1 = arith.constant 0 : i32
    return %c0_i32, %c0_i32_0 : i32, i32
  }
  func.func @transform_2(%arg0: i32) -> (i32, i32) {
    %c0_i32 = arith.constant 0 : i32
    %c0_i32_0 = arith.constant 0 : i32
    %c0_i32_1 = arith.constant 0 : i32
    return %c0_i32, %c0_i32_0 : i32, i32
  }
  func.func @transform_3(%arg0: i32) -> (i32, i32) {
    %c0_i32 = arith.constant 0 : i32
    %c0_i32_0 = arith.constant 0 : i32
    %c0_i32_1 = arith.constant 0 : i32
    return %c0_i32, %c0_i32_0 : i32, i32
  }
  func.func @transform_4(%arg0: i32) -> (i32, i32) {
    %c0_i32 = arith.constant 0 : i32
    %c0_i32_0 = arith.constant 0 : i32
    %c0_i32_1 = arith.constant 0 : i32
    return %c0_i32, %c0_i32_0 : i32, i32
  }
  func.func @transform_5(%arg0: i32) -> (i32, i32) {
    %c0_i32 = arith.constant 0 : i32
    %c0_i32_0 = arith.constant 0 : i32
    %c0_i32_1 = arith.constant 0 : i32
    return %c0_i32, %c0_i32_0 : i32, i32
  }
  func.func @transform_6(%arg0: i32) -> (i32, i32) {
    %c0_i32 = arith.constant 0 : i32
    %c0_i32_0 = arith.constant 0 : i32
    return %arg0, %c0_i32 : i32, i32
  }
  func.func @transform_7(%arg0: i32) -> (i32, i32) {
    %c0_i32 = arith.constant 0 : i32
    %c0_i32_0 = arith.constant 0 : i32
    return %arg0, %c0_i32 : i32, i32
  }
  func.func @transform_8(%arg0: i32) -> (i32, i32) {
    %c0_i32 = arith.constant 0 : i32
    %c0_i32_0 = arith.constant 0 : i32
    return %arg0, %c0_i32 : i32, i32
  }
  func.func @transform_9(%arg0: i32) -> (i32, i32) {
    %c0_i32 = arith.constant 0 : i32
    %c0_i32_0 = arith.constant 0 : i32
    %c0_i32_1 = arith.constant 0 : i32
    return %c0_i32, %c0_i32_0 : i32, i32
  }
}

module attributes {stable_mosaic.version = 11 : i64} {
  func.func @_gat_conv_kernel(%arg0: i32, %arg1: memref<2x16x16xf32, #tpu.memory_space<vmem>>, %arg2: memref<16x16xf32, #tpu.memory_space<vmem>>, %arg3: memref<1x16xf32, #tpu.memory_space<vmem>>, %arg4: memref<16x8xf32, #tpu.memory_space<vmem>>, %arg5: memref<16x8xf32, #tpu.memory_space<vmem>>, %arg6: memref<8x16xf32, #tpu.memory_space<vmem>>, %arg7: memref<32x16xbf16, #tpu.memory_space<vmem>>, %arg8: memref<32x16xbf16, #tpu.memory_space<vmem>>, %arg9: memref<32x1xf32, #tpu.memory_space<vmem>>, %arg10: memref<16x16xf32, #tpu.memory_space<vmem>>, %arg11: memref<2x16x16xf32, #tpu.memory_space<vmem>>, %arg12: memref<2x16x8xf32, #tpu.memory_space<vmem>>, %arg13: memref<2x16x8xf32, #tpu.memory_space<vmem>>) attributes {dimension_semantics = [#tpu.dimension_semantics<arbitrary>], iteration_bounds = array<i64: 1>, scalar_prefetch = 0 : i64, scratch_operands = 3 : i64, tpu.core_type = #tpu.core_type<tc>, window_params = [{pipeline_mode = #tpu.pipeline_mode<synchronous>, transform_indices = @transform_0, window_bounds = array<i64: 2, 16, 16>}, {pipeline_mode = #tpu.pipeline_mode<synchronous>, transform_indices = @transform_1, window_bounds = array<i64: 16, 16>}, {pipeline_mode = #tpu.pipeline_mode<synchronous>, transform_indices = @transform_2, window_bounds = array<i64: 1, 16>}, {pipeline_mode = #tpu.pipeline_mode<synchronous>, transform_indices = @transform_3, window_bounds = array<i64: 16, 8>}, {pipeline_mode = #tpu.pipeline_mode<synchronous>, transform_indices = @transform_4, window_bounds = array<i64: 16, 8>}, {pipeline_mode = #tpu.pipeline_mode<synchronous>, transform_indices = @transform_5, window_bounds = array<i64: 8, 16>}, {transform_indices = @transform_6, window_bounds = array<i64: 32, 16>}, {transform_indices = @transform_7, window_bounds = array<i64: 32, 16>}, {transform_indices = @transform_8, window_bounds = array<i64: 32, 1>}, {pipeline_mode = #tpu.pipeline_mode<synchronous>, transform_indices = @transform_9, window_bounds = array<i64: 16, 16>}]} {
    %c0_i32 = arith.constant 0 : i32
    %0 = arith.cmpi eq, %arg0, %c0_i32 : i32
    %1 = arith.extui %0 : i1 to i32
    %c0_i32_0 = arith.constant 0 : i32
    %2 = arith.cmpi ne, %1, %c0_i32_0 : i32
    scf.if %2 {
      %cst_43 = arith.constant 0.000000e+00 : f32
      %55 = vector.broadcast %cst_43 : f32 to vector<16x16xf32>
      %c0_44 = arith.constant 0 : index
      %c0_45 = arith.constant 0 : index
      %56 = vector.load %arg10[%c0_44, %c0_45] : memref<16x16xf32, #tpu.memory_space<vmem>>, vector<16x16xf32>
      tpu.vector_store %arg10[%c0_44, %c0_45], %55 {strides = array<i32>} : memref<16x16xf32, #tpu.memory_space<vmem>>, vector<16x16xf32>,
      %c0_46 = arith.constant 0 : index
      %c0_47 = arith.constant 0 : index
      %57 = vector.load %arg2[%c0_46, %c0_47] : memref<16x16xf32, #tpu.memory_space<vmem>>, vector<16x16xf32>
      %c0_48 = arith.constant 0 : index
      %c0_49 = arith.constant 0 : index
      %58 = vector.load %arg3[%c0_48, %c0_49] : memref<1x16xf32, #tpu.memory_space<vmem>>, vector<1x16xf32>
      %c0_50 = arith.constant 0 : index
      %c0_51 = arith.constant 0 : index
      %59 = vector.load %arg4[%c0_50, %c0_51] : memref<16x8xf32, #tpu.memory_space<vmem>>, vector<16x8xf32>
      %c0_52 = arith.constant 0 : index
      %c0_53 = arith.constant 0 : index
      %60 = vector.load %arg5[%c0_52, %c0_53] : memref<16x8xf32, #tpu.memory_space<vmem>>, vector<16x8xf32>
      %c0_54 = arith.constant 0 : index
      %c0_55 = arith.constant 0 : index
      %c0_56 = arith.constant 0 : index
      %61 = vector.load %arg1[%c0_54, %c0_55, %c0_56] : memref<2x16x16xf32, #tpu.memory_space<vmem>>, vector<1x16x16xf32>
      %62 = vector.shape_cast %61 : vector<1x16x16xf32> to vector<16x16xf32>
      %cst_57 = arith.constant dense<0.000000e+00> : vector<16x16xf32>
      %63 = tpu.matmul %62, %57, %cst_57 {dimension_numbers = #tpu.dot_dimension_numbers<[1], [0], [0], [1], [0, 0, 1, 1], [], []>} : vector<16x16xf32>, vector<16x16xf32>, vector<16x16xf32> -> vector<16x16xf32>
      %64 = vector.broadcast %58 : vector<1x16xf32> to vector<16x16xf32>
      %65 = arith.addf %63, %64 : vector<16x16xf32>
      %c0_58 = arith.constant 0 : index
      %c0_59 = arith.constant 0 : index
      %c0_60 = arith.constant 0 : index
      %66 = vector.load %arg11[%c0_58, %c0_59, %c0_60] : memref<2x16x16xf32, #tpu.memory_space<vmem>>, vector<1x16x16xf32>
      %67 = vector.shape_cast %66 : vector<1x16x16xf32> to vector<16x16xf32>
      %68 = vector.shape_cast %65 : vector<16x16xf32> to vector<1x16x16xf32>
      tpu.vector_store %arg11[%c0_58, %c0_59, %c0_60], %68 {strides = array<i32>} : memref<2x16x16xf32, #tpu.memory_space<vmem>>, vector<1x16x16xf32>,
      %cst_61 = arith.constant dense<0.000000e+00> : vector<16x8xf32>
      %69 = tpu.matmul %65, %59, %cst_61 {dimension_numbers = #tpu.dot_dimension_numbers<[1], [0], [0], [1], [0, 0, 1, 1], [], []>} : vector<16x16xf32>, vector<16x8xf32>, vector<16x8xf32> -> vector<16x8xf32>
      %c0_62 = arith.constant 0 : index
      %c0_63 = arith.constant 0 : index
      %c0_64 = arith.constant 0 : index
      %70 = vector.load %arg12[%c0_62, %c0_63, %c0_64] : memref<2x16x8xf32, #tpu.memory_space<vmem>>, vector<1x16x8xf32>
      %71 = vector.shape_cast %70 : vector<1x16x8xf32> to vector<16x8xf32>
      %72 = vector.shape_cast %69 : vector<16x8xf32> to vector<1x16x8xf32>
      tpu.vector_store %arg12[%c0_62, %c0_63, %c0_64], %72 {strides = array<i32>} : memref<2x16x8xf32, #tpu.memory_space<vmem>>, vector<1x16x8xf32>,
      %cst_65 = arith.constant dense<0.000000e+00> : vector<16x8xf32>
      %73 = tpu.matmul %65, %60, %cst_65 {dimension_numbers = #tpu.dot_dimension_numbers<[1], [0], [0], [1], [0, 0, 1, 1], [], []>} : vector<16x16xf32>, vector<16x8xf32>, vector<16x8xf32> -> vector<16x8xf32>
      %c0_66 = arith.constant 0 : index
      %c0_67 = arith.constant 0 : index
      %c0_68 = arith.constant 0 : index
      %74 = vector.load %arg13[%c0_66, %c0_67, %c0_68] : memref<2x16x8xf32, #tpu.memory_space<vmem>>, vector<1x16x8xf32>
      %75 = vector.shape_cast %74 : vector<1x16x8xf32> to vector<16x8xf32>
      %76 = vector.shape_cast %73 : vector<16x8xf32> to vector<1x16x8xf32>
      tpu.vector_store %arg13[%c0_66, %c0_67, %c0_68], %76 {strides = array<i32>} : memref<2x16x8xf32, #tpu.memory_space<vmem>>, vector<1x16x8xf32>,
      %c1_69 = arith.constant 1 : index
      %c0_70 = arith.constant 0 : index
      %c0_71 = arith.constant 0 : index
      %77 = vector.load %arg1[%c1_69, %c0_70, %c0_71] : memref<2x16x16xf32, #tpu.memory_space<vmem>>, vector<1x16x16xf32>
      %78 = vector.shape_cast %77 : vector<1x16x16xf32> to vector<16x16xf32>
      %cst_72 = arith.constant dense<0.000000e+00> : vector<16x16xf32>
      %79 = tpu.matmul %78, %57, %cst_72 {dimension_numbers = #tpu.dot_dimension_numbers<[1], [0], [0], [1], [0, 0, 1, 1], [], []>} : vector<16x16xf32>, vector<16x16xf32>, vector<16x16xf32> -> vector<16x16xf32>
      %80 = vector.broadcast %58 : vector<1x16xf32> to vector<16x16xf32>
      %81 = arith.addf %79, %80 : vector<16x16xf32>
      %c1_73 = arith.constant 1 : index
      %c0_74 = arith.constant 0 : index
      %c0_75 = arith.constant 0 : index
      %82 = vector.load %arg11[%c1_73, %c0_74, %c0_75] : memref<2x16x16xf32, #tpu.memory_space<vmem>>, vector<1x16x16xf32>
      %83 = vector.shape_cast %82 : vector<1x16x16xf32> to vector<16x16xf32>
      %84 = vector.shape_cast %81 : vector<16x16xf32> to vector<1x16x16xf32>
      tpu.vector_store %arg11[%c1_73, %c0_74, %c0_75], %84 {strides = array<i32>} : memref<2x16x16xf32, #tpu.memory_space<vmem>>, vector<1x16x16xf32>,
      %cst_76 = arith.constant dense<0.000000e+00> : vector<16x8xf32>
      %85 = tpu.matmul %81, %59, %cst_76 {dimension_numbers = #tpu.dot_dimension_numbers<[1], [0], [0], [1], [0, 0, 1, 1], [], []>} : vector<16x16xf32>, vector<16x8xf32>, vector<16x8xf32> -> vector<16x8xf32>
      %c1_77 = arith.constant 1 : index
      %c0_78 = arith.constant 0 : index
      %c0_79 = arith.constant 0 : index
      %86 = vector.load %arg12[%c1_77, %c0_78, %c0_79] : memref<2x16x8xf32, #tpu.memory_space<vmem>>, vector<1x16x8xf32>
      %87 = vector.shape_cast %86 : vector<1x16x8xf32> to vector<16x8xf32>
      %88 = vector.shape_cast %85 : vector<16x8xf32> to vector<1x16x8xf32>
      tpu.vector_store %arg12[%c1_77, %c0_78, %c0_79], %88 {strides = array<i32>} : memref<2x16x8xf32, #tpu.memory_space<vmem>>, vector<1x16x8xf32>,
      %cst_80 = arith.constant dense<0.000000e+00> : vector<16x8xf32>
      %89 = tpu.matmul %81, %60, %cst_80 {dimension_numbers = #tpu.dot_dimension_numbers<[1], [0], [0], [1], [0, 0, 1, 1], [], []>} : vector<16x16xf32>, vector<16x8xf32>, vector<16x8xf32> -> vector<16x8xf32>
      %c1_81 = arith.constant 1 : index
      %c0_82 = arith.constant 0 : index
      %c0_83 = arith.constant 0 : index
      %90 = vector.load %arg13[%c1_81, %c0_82, %c0_83] : memref<2x16x8xf32, #tpu.memory_space<vmem>>, vector<1x16x8xf32>
      %91 = vector.shape_cast %90 : vector<1x16x8xf32> to vector<16x8xf32>
      %92 = vector.shape_cast %89 : vector<16x8xf32> to vector<1x16x8xf32>
      tpu.vector_store %arg13[%c1_81, %c0_82, %c0_83], %92 {strides = array<i32>} : memref<2x16x8xf32, #tpu.memory_space<vmem>>, vector<1x16x8xf32>,
    } else {
    }
    %c0 = arith.constant 0 : index
    %c0_1 = arith.constant 0 : index
    %3 = vector.load %arg7[%c0, %c0_1] : memref<32x16xbf16, #tpu.memory_space<vmem>>, vector<32x16xbf16>
    %4 = arith.extf %3 : vector<32x16xbf16> to vector<32x16xf32>
    %c0_2 = arith.constant 0 : index
    %c0_3 = arith.constant 0 : index
    %5 = vector.load %arg8[%c0_2, %c0_3] : memref<32x16xbf16, #tpu.memory_space<vmem>>, vector<32x16xbf16>
    %6 = arith.extf %5 : vector<32x16xbf16> to vector<32x16xf32>
    %c0_4 = arith.constant 0 : index
    %c0_5 = arith.constant 0 : index
    %7 = vector.load %arg9[%c0_4, %c0_5] : memref<32x1xf32, #tpu.memory_space<vmem>>, vector<32x1xf32>
    %c0_6 = arith.constant 0 : index
    %c0_7 = arith.constant 0 : index
    %8 = vector.load %arg6[%c0_6, %c0_7] : memref<8x16xf32, #tpu.memory_space<vmem>>, vector<8x16xf32>
    %c0_8 = arith.constant 0 : index
    %c0_9 = arith.constant 0 : index
    %c0_10 = arith.constant 0 : index
    %9 = vector.load %arg12[%c0_8, %c0_9, %c0_10] : memref<2x16x8xf32, #tpu.memory_space<vmem>>, vector<1x16x8xf32>
    %10 = vector.shape_cast %9 : vector<1x16x8xf32> to vector<16x8xf32>
    %cst = arith.constant dense<0.000000e+00> : vector<32x8xf32>
    %11 = tpu.matmul %6, %10, %cst {dimension_numbers = #tpu.dot_dimension_numbers<[1], [0], [0], [1], [0, 0, 1, 1], [], []>} : vector<32x16xf32>, vector<16x8xf32>, vector<32x8xf32> -> vector<32x8xf32>
    %c0_11 = arith.constant 0 : index
    %c0_12 = arith.constant 0 : index
    %c0_13 = arith.constant 0 : index
    %12 = vector.load %arg13[%c0_11, %c0_12, %c0_13] : memref<2x16x8xf32, #tpu.memory_space<vmem>>, vector<1x16x8xf32>
    %13 = vector.shape_cast %12 : vector<1x16x8xf32> to vector<16x8xf32>
    %cst_14 = arith.constant dense<0.000000e+00> : vector<32x8xf32>
    %14 = tpu.matmul %4, %13, %cst_14 {dimension_numbers = #tpu.dot_dimension_numbers<[1], [0], [0], [1], [0, 0, 1, 1], [], []>} : vector<32x16xf32>, vector<16x8xf32>, vector<32x8xf32> -> vector<32x8xf32>
    %15 = arith.addf %11, %14 : vector<32x8xf32>
    %cst_15 = arith.constant 0.000000e+00 : f32
    %16 = vector.broadcast %cst_15 : f32 to vector<32x8xf32>
    %17 = arith.cmpf ogt, %15, %16 : vector<32x8xf32>
    %cst_16 = arith.constant 0.00999999977 : f32
    %18 = vector.broadcast %cst_16 : f32 to vector<32x8xf32>
    %19 = arith.mulf %18, %15 : vector<32x8xf32>
    %20 = arith.select %17, %15, %19 : vector<32x8xi1>, vector<32x8xf32>
    %21 = vector.broadcast %7 : vector<32x1xf32> to vector<32x8xf32>
    %22 = arith.mulf %20, %21 : vector<32x8xf32>
    %c0_17 = arith.constant 0 : index
    %c0_18 = arith.constant 0 : index
    %c0_19 = arith.constant 0 : index
    %23 = vector.load %arg11[%c0_17, %c0_18, %c0_19] : memref<2x16x16xf32, #tpu.memory_space<vmem>>, vector<1x16x16xf32>
    %24 = vector.shape_cast %23 : vector<1x16x16xf32> to vector<16x16xf32>
    %cst_20 = arith.constant dense<0.000000e+00> : vector<32x16xf32>
    %25 = tpu.matmul %4, %24, %cst_20 {dimension_numbers = #tpu.dot_dimension_numbers<[1], [0], [0], [1], [0, 0, 1, 1], [], []>} : vector<32x16xf32>, vector<16x16xf32>, vector<32x16xf32> -> vector<32x16xf32>
    %cst_21 = arith.constant dense<0.000000e+00> : vector<32x16xf32>
    %26 = tpu.matmul %22, %8, %cst_21 {dimension_numbers = #tpu.dot_dimension_numbers<[1], [0], [0], [1], [0, 0, 1, 1], [], []>} : vector<32x8xf32>, vector<8x16xf32>, vector<32x16xf32> -> vector<32x16xf32>
    %27 = arith.mulf %26, %25 : vector<32x16xf32>
    %c1 = arith.constant 1 : index
    %c0_22 = arith.constant 0 : index
    %c0_23 = arith.constant 0 : index
    %28 = vector.load %arg12[%c1, %c0_22, %c0_23] : memref<2x16x8xf32, #tpu.memory_space<vmem>>, vector<1x16x8xf32>
    %29 = vector.shape_cast %28 : vector<1x16x8xf32> to vector<16x8xf32>
    %cst_24 = arith.constant dense<0.000000e+00> : vector<32x8xf32>
    %30 = tpu.matmul %6, %29, %cst_24 {dimension_numbers = #tpu.dot_dimension_numbers<[1], [0], [0], [1], [0, 0, 1, 1], [], []>} : vector<32x16xf32>, vector<16x8xf32>, vector<32x8xf32> -> vector<32x8xf32>
    %c1_25 = arith.constant 1 : index
    %c0_26 = arith.constant 0 : index
    %c0_27 = arith.constant 0 : index
    %31 = vector.load %arg13[%c1_25, %c0_26, %c0_27] : memref<2x16x8xf32, #tpu.memory_space<vmem>>, vector<1x16x8xf32>
    %32 = vector.shape_cast %31 : vector<1x16x8xf32> to vector<16x8xf32>
    %cst_28 = arith.constant dense<0.000000e+00> : vector<32x8xf32>
    %33 = tpu.matmul %4, %32, %cst_28 {dimension_numbers = #tpu.dot_dimension_numbers<[1], [0], [0], [1], [0, 0, 1, 1], [], []>} : vector<32x16xf32>, vector<16x8xf32>, vector<32x8xf32> -> vector<32x8xf32>
    %34 = arith.addf %30, %33 : vector<32x8xf32>
    %cst_29 = arith.constant 0.000000e+00 : f32
    %35 = vector.broadcast %cst_29 : f32 to vector<32x8xf32>
    %36 = arith.cmpf ogt, %34, %35 : vector<32x8xf32>
    %cst_30 = arith.constant 0.00999999977 : f32
    %37 = vector.broadcast %cst_30 : f32 to vector<32x8xf32>
    %38 = arith.mulf %37, %34 : vector<32x8xf32>
    %39 = arith.select %36, %34, %38 : vector<32x8xi1>, vector<32x8xf32>
    %40 = vector.broadcast %7 : vector<32x1xf32> to vector<32x8xf32>
    %41 = arith.mulf %39, %40 : vector<32x8xf32>
    %c1_31 = arith.constant 1 : index
    %c0_32 = arith.constant 0 : index
    %c0_33 = arith.constant 0 : index
    %42 = vector.load %arg11[%c1_31, %c0_32, %c0_33] : memref<2x16x16xf32, #tpu.memory_space<vmem>>, vector<1x16x16xf32>
    %43 = vector.shape_cast %42 : vector<1x16x16xf32> to vector<16x16xf32>
    %cst_34 = arith.constant dense<0.000000e+00> : vector<32x16xf32>
    %44 = tpu.matmul %4, %43, %cst_34 {dimension_numbers = #tpu.dot_dimension_numbers<[1], [0], [0], [1], [0, 0, 1, 1], [], []>} : vector<32x16xf32>, vector<16x16xf32>, vector<32x16xf32> -> vector<32x16xf32>
    %cst_35 = arith.constant dense<0.000000e+00> : vector<32x16xf32>
    %45 = tpu.matmul %41, %8, %cst_35 {dimension_numbers = #tpu.dot_dimension_numbers<[1], [0], [0], [1], [0, 0, 1, 1], [], []>} : vector<32x8xf32>, vector<8x16xf32>, vector<32x16xf32> -> vector<32x16xf32>
    %46 = arith.mulf %45, %44 : vector<32x16xf32>
    %47 = arith.addf %27, %46 : vector<32x16xf32>
    %c0_36 = arith.constant 0 : index
    %c0_37 = arith.constant 0 : index
    %48 = vector.load %arg10[%c0_36, %c0_37] : memref<16x16xf32, #tpu.memory_space<vmem>>, vector<16x16xf32>
    %cst_38 = arith.constant dense<0.000000e+00> : vector<16x16xf32>
    %49 = tpu.matmul %6, %47, %cst_38 {dimension_numbers = #tpu.dot_dimension_numbers<[0], [0], [1], [1], [0, 1, 1, 1], [], []>} : vector<32x16xf32>, vector<32x16xf32>, vector<16x16xf32> -> vector<16x16xf32>
    %50 = arith.addf %48, %49 : vector<16x16xf32>
    %c0_39 = arith.constant 0 : index
    %c0_40 = arith.constant 0 : index
    %51 = vector.load %arg10[%c0_39, %c0_40] : memref<16x16xf32, #tpu.memory_space<vmem>>, vector<16x16xf32>
    tpu.vector_store %arg10[%c0_39, %c0_40], %50 {strides = array<i32>} : memref<16x16xf32, #tpu.memory_space<vmem>>, vector<16x16xf32>,
    %c0_i32_41 = arith.constant 0 : i32
    %52 = arith.cmpi eq, %arg0, %c0_i32_41 : i32
    %53 = arith.extui %52 : i1 to i32
    %c0_i32_42 = arith.constant 0 : i32
    %54 = arith.cmpi ne, %53, %c0_i32_42 : i32
    scf.if %54 {
      %c0_43 = arith.constant 0 : index
      %c0_44 = arith.constant 0 : index
      %55 = vector.load %arg10[%c0_43, %c0_44] : memref<16x16xf32, #tpu.memory_space<vmem>>, vector<16x16xf32>
      %cst_45 = arith.constant dense<0.000000e+00> : vector<16xf32>
      %56 = vector.multi_reduction <add>, %55, %cst_45 [0] : vector<16x16xf32> to vector<16xf32>
      %57 = vector.shape_cast %56 : vector<16xf32> to vector<1x16xf32>
      %cst_46 = arith.constant 1.600000e+01 : f32
      %58 = vector.broadcast %cst_46 : f32 to vector<1x16xf32>
      %59 = arith.divf %57, %58 : vector<1x16xf32>
      %60 = vector.broadcast %59 : vector<1x16xf32> to vector<16x16xf32>
      %61 = arith.subf %55, %60 : vector<16x16xf32>
      %62 = arith.mulf %61, %61 : vector<16x16xf32>
      %cst_47 = arith.constant dense<0.000000e+00> : vector<16xf32>
      %63 = vector.multi_reduction <add>, %62, %cst_47 [0] : vector<16x16xf32> to vector<16xf32>
      %64 = vector.shape_cast %63 : vector<16xf32> to vector<1x16xf32>
      %cst_48 = arith.constant 1.600000e+01 : f32
      %65 = vector.broadcast %cst_48 : f32 to vector<1x16xf32>
      %66 = arith.divf %64, %65 : vector<1x16xf32>
      %67 = vector.broadcast %59 : vector<1x16xf32> to vector<16x16xf32>
      %68 = arith.subf %55, %67 : vector<16x16xf32>
      %cst_49 = arith.constant 9.99999974E-6 : f32
      %69 = vector.broadcast %cst_49 : f32 to vector<1x16xf32>
      %70 = arith.addf %66, %69 : vector<1x16xf32>
      %71 = math.rsqrt %70 : vector<1x16xf32>
      %72 = vector.broadcast %71 : vector<1x16xf32> to vector<16x16xf32>
      %73 = arith.mulf %68, %72 : vector<16x16xf32>
      %cst_50 = arith.constant 0.000000e+00 : f32
      %74 = vector.broadcast %cst_50 : f32 to vector<16x16xf32>
      %75 = arith.maximumf %73, %74 : vector<16x16xf32>
      %c0_51 = arith.constant 0 : index
      %c0_52 = arith.constant 0 : index
      %76 = vector.load %arg10[%c0_51, %c0_52] : memref<16x16xf32, #tpu.memory_space<vmem>>, vector<16x16xf32>
      tpu.vector_store %arg10[%c0_51, %c0_52], %75 {strides = array<i32>} : memref<16x16xf32, #tpu.memory_space<vmem>>, vector<16x16xf32>,
    } else {
    }
    return
  }
  func.func @transform_0(%arg0: i32) -> (i32, i32, i32) {
    %c0_i32 = arith.constant 0 : i32
    %c0_i32_0 = arith.constant 0 : i32
    %c0_i32_1 = arith.constant 0 : i32
    %c0_i32_2 = arith.constant 0 : i32
    return %c0_i32, %c0_i32_0, %c0_i32_1 : i32, i32, i32
  }
  func.func @transform_1(%arg0: i32) -> (i32, i32) {
    %c0_i32 = arith.constant 0 : i32
    %c0_i32_0 = arith.constant 0 : i32
    %c0_i32_1 = arith.constant 0 : i32
    return %c0_i32, %c0_i32_0 : i32, i32
  }
  func.func @transform_2(%arg0: i32) -> (i32, i32) {
    %c0_i32 = arith.constant 0 : i32
    %c0_i32_0 = arith.constant 0 : i32
    %c0_i32_1 = arith.constant 0 : i32
    return %c0_i32, %c0_i32_0 : i32, i32
  }
  func.func @transform_3(%arg0: i32) -> (i32, i32) {
    %c0_i32 = arith.constant 0 : i32
    %c0_i32_0 = arith.constant 0 : i32
    %c0_i32_1 = arith.constant 0 : i32
    return %c0_i32, %c0_i32_0 : i32, i32
  }
  func.func @transform_4(%arg0: i32) -> (i32, i32) {
    %c0_i32 = arith.constant 0 : i32
    %c0_i32_0 = arith.constant 0 : i32
    %c0_i32_1 = arith.constant 0 : i32
    return %c0_i32, %c0_i32_0 : i32, i32
  }
  func.func @transform_5(%arg0: i32) -> (i32, i32) {
    %c0_i32 = arith.constant 0 : i32
    %c0_i32_0 = arith.constant 0 : i32
    %c0_i32_1 = arith.constant 0 : i32
    return %c0_i32, %c0_i32_0 : i32, i32
  }
  func.func @transform_6(%arg0: i32) -> (i32, i32) {
    %c0_i32 = arith.constant 0 : i32
    %c0_i32_0 = arith.constant 0 : i32
    return %arg0, %c0_i32 : i32, i32
  }
  func.func @transform_7(%arg0: i32) -> (i32, i32) {
    %c0_i32 = arith.constant 0 : i32
    %c0_i32_0 = arith.constant 0 : i32
    return %arg0, %c0_i32 : i32, i32
  }
  func.func @transform_8(%arg0: i32) -> (i32, i32) {
    %c0_i32 = arith.constant 0 : i32
    %c0_i32_0 = arith.constant 0 : i32
    return %arg0, %c0_i32 : i32, i32
  }
  func.func @transform_9(%arg0: i32) -> (i32, i32) {
    %c0_i32 = arith.constant 0 : i32
    %c0_i32_0 = arith.constant 0 : i32
    %c0_i32_1 = arith.constant 0 : i32
    return %c0_i32, %c0_i32_0 : i32, i32
  }
}

module attributes {stable_mosaic.version = 11 : i64} {
  func.func @_gat_conv_kernel(%arg0: i32, %arg1: memref<1x16x16xf32, #tpu.memory_space<vmem>>, %arg2: memref<16x16xf32, #tpu.memory_space<vmem>>, %arg3: memref<1x16xf32, #tpu.memory_space<vmem>>, %arg4: memref<16x8xf32, #tpu.memory_space<vmem>>, %arg5: memref<16x8xf32, #tpu.memory_space<vmem>>, %arg6: memref<8x16xf32, #tpu.memory_space<vmem>>, %arg7: memref<32x16xbf16, #tpu.memory_space<vmem>>, %arg8: memref<32x16xbf16, #tpu.memory_space<vmem>>, %arg9: memref<32x1xf32, #tpu.memory_space<vmem>>, %arg10: memref<16x16xf32, #tpu.memory_space<vmem>>, %arg11: memref<1x16x16xf32, #tpu.memory_space<vmem>>, %arg12: memref<1x16x8xf32, #tpu.memory_space<vmem>>, %arg13: memref<1x16x8xf32, #tpu.memory_space<vmem>>) attributes {dimension_semantics = [#tpu.dimension_semantics<arbitrary>], iteration_bounds = array<i64: 1>, scalar_prefetch = 0 : i64, scratch_operands = 3 : i64, tpu.core_type = #tpu.core_type<tc>, window_params = [{pipeline_mode = #tpu.pipeline_mode<synchronous>, transform_indices = @transform_0, window_bounds = array<i64: 1, 16, 16>}, {pipeline_mode = #tpu.pipeline_mode<synchronous>, transform_indices = @transform_1, window_bounds = array<i64: 16, 16>}, {pipeline_mode = #tpu.pipeline_mode<synchronous>, transform_indices = @transform_2, window_bounds = array<i64: 1, 16>}, {pipeline_mode = #tpu.pipeline_mode<synchronous>, transform_indices = @transform_3, window_bounds = array<i64: 16, 8>}, {pipeline_mode = #tpu.pipeline_mode<synchronous>, transform_indices = @transform_4, window_bounds = array<i64: 16, 8>}, {pipeline_mode = #tpu.pipeline_mode<synchronous>, transform_indices = @transform_5, window_bounds = array<i64: 8, 16>}, {transform_indices = @transform_6, window_bounds = array<i64: 32, 16>}, {transform_indices = @transform_7, window_bounds = array<i64: 32, 16>}, {transform_indices = @transform_8, window_bounds = array<i64: 32, 1>}, {pipeline_mode = #tpu.pipeline_mode<synchronous>, transform_indices = @transform_9, window_bounds = array<i64: 16, 16>}]} {
    %c0_i32 = arith.constant 0 : i32
    %0 = arith.cmpi eq, %arg0, %c0_i32 : i32
    %1 = arith.extui %0 : i1 to i32
    %c0_i32_0 = arith.constant 0 : i32
    %2 = arith.cmpi ne, %1, %c0_i32_0 : i32
    scf.if %2 {
      %cst_27 = arith.constant 0.000000e+00 : f32
      %32 = vector.broadcast %cst_27 : f32 to vector<16x16xf32>
      %c0_28 = arith.constant 0 : index
      %c0_29 = arith.constant 0 : index
      %33 = vector.load %arg10[%c0_28, %c0_29] : memref<16x16xf32, #tpu.memory_space<vmem>>, vector<16x16xf32>
      tpu.vector_store %arg10[%c0_28, %c0_29], %32 {strides = array<i32>} : memref<16x16xf32, #tpu.memory_space<vmem>>, vector<16x16xf32>,
      %c0_30 = arith.constant 0 : index
      %c0_31 = arith.constant 0 : index
      %34 = vector.load %arg2[%c0_30, %c0_31] : memref<16x16xf32, #tpu.memory_space<vmem>>, vector<16x16xf32>
      %c0_32 = arith.constant 0 : index
      %c0_33 = arith.constant 0 : index
      %35 = vector.load %arg3[%c0_32, %c0_33] : memref<1x16xf32, #tpu.memory_space<vmem>>, vector<1x16xf32>
      %c0_34 = arith.constant 0 : index
      %c0_35 = arith.constant 0 : index
      %36 = vector.load %arg4[%c0_34, %c0_35] : memref<16x8xf32, #tpu.memory_space<vmem>>, vector<16x8xf32>
      %c0_36 = arith.constant 0 : index
      %c0_37 = arith.constant 0 : index
      %37 = vector.load %arg5[%c0_36, %c0_37] : memref<16x8xf32, #tpu.memory_space<vmem>>, vector<16x8xf32>
      %c0_38 = arith.constant 0 : index
      %c0_39 = arith.constant 0 : index
      %c0_40 = arith.constant 0 : index
      %38 = vector.load %arg1[%c0_38, %c0_39, %c0_40] : memref<1x16x16xf32, #tpu.memory_space<vmem>>, vector<1x16x16xf32>
      %39 = vector.shape_cast %38 : vector<1x16x16xf32> to vector<16x16xf32>
      %cst_41 = arith.constant dense<0.000000e+00> : vector<16x16xf32>
      %40 = tpu.matmul %39, %34, %cst_41 {dimension_numbers = #tpu.dot_dimension_numbers<[1], [0], [0], [1], [0, 0, 1, 1], [], []>} : vector<16x16xf32>, vector<16x16xf32>, vector<16x16xf32> -> vector<16x16xf32>
      %41 = vector.broadcast %35 : vector<1x16xf32> to vector<16x16xf32>
      %42 = arith.addf %40, %41 : vector<16x16xf32>
      %c0_42 = arith.constant 0 : index
      %c0_43 = arith.constant 0 : index
      %c0_44 = arith.constant 0 : index
      %43 = vector.load %arg11[%c0_42, %c0_43, %c0_44] : memref<1x16x16xf32, #tpu.memory_space<vmem>>, vector<1x16x16xf32>
      %44 = vector.shape_cast %43 : vector<1x16x16xf32> to vector<16x16xf32>
      %45 = vector.shape_cast %42 : vector<16x16xf32> to vector<1x16x16xf32>
      tpu.vector_store %arg11[%c0_42, %c0_43, %c0_44], %45 {strides = array<i32>} : memref<1x16x16xf32, #tpu.memory_space<vmem>>, vector<1x16x16xf32>,
      %cst_45 = arith.constant dense<0.000000e+00> : vector<16x8xf32>
      %46 = tpu.matmul %42, %36, %cst_45 {dimension_numbers = #tpu.dot_dimension_numbers<[1], [0], [0], [1], [0, 0, 1, 1], [], []>} : vector<16x16xf32>, vector<16x8xf32>, vector<16x8xf32> -> vector<16x8xf32>
      %c0_46 = arith.constant 0 : index
      %c0_47 = arith.constant 0 : index
      %c0_48 = arith.constant 0 : index
      %47 = vector.load %arg12[%c0_46, %c0_47, %c0_48] : memref<1x16x8xf32, #tpu.memory_space<vmem>>, vector<1x16x8xf32>
      %48 = vector.shape_cast %47 : vector<1x16x8xf32> to vector<16x8xf32>
      %49 = vector.shape_cast %46 : vector<16x8xf32> to vector<1x16x8xf32>
      tpu.vector_store %arg12[%c0_46, %c0_47, %c0_48], %49 {strides = array<i32>} : memref<1x16x8xf32, #tpu.memory_space<vmem>>, vector<1x16x8xf32>,
      %cst_49 = arith.constant dense<0.000000e+00> : vector<16x8xf32>
      %50 = tpu.matmul %42, %37, %cst_49 {dimension_numbers = #tpu.dot_dimension_numbers<[1], [0], [0], [1], [0, 0, 1, 1], [], []>} : vector<16x16xf32>, vector<16x8xf32>, vector<16x8xf32> -> vector<16x8xf32>
      %c0_50 = arith.constant 0 : index
      %c0_51 = arith.constant 0 : index
      %c0_52 = arith.constant 0 : index
      %51 = vector.load %arg13[%c0_50, %c0_51, %c0_52] : memref<1x16x8xf32, #tpu.memory_space<vmem>>, vector<1x16x8xf32>
      %52 = vector.shape_cast %51 : vector<1x16x8xf32> to vector<16x8xf32>
      %53 = vector.shape_cast %50 : vector<16x8xf32> to vector<1x16x8xf32>
      tpu.vector_store %arg13[%c0_50, %c0_51, %c0_52], %53 {strides = array<i32>} : memref<1x16x8xf32, #tpu.memory_space<vmem>>, vector<1x16x8xf32>,
    } else {
    }
    %c0 = arith.constant 0 : index
    %c0_1 = arith.constant 0 : index
    %3 = vector.load %arg7[%c0, %c0_1] : memref<32x16xbf16, #tpu.memory_space<vmem>>, vector<32x16xbf16>
    %4 = arith.extf %3 : vector<32x16xbf16> to vector<32x16xf32>
    %c0_2 = arith.constant 0 : index
    %c0_3 = arith.constant 0 : index
    %5 = vector.load %arg8[%c0_2, %c0_3] : memref<32x16xbf16, #tpu.memory_space<vmem>>, vector<32x16xbf16>
    %6 = arith.extf %5 : vector<32x16xbf16> to vector<32x16xf32>
    %c0_4 = arith.constant 0 : index
    %c0_5 = arith.constant 0 : index
    %7 = vector.load %arg9[%c0_4, %c0_5] : memref<32x1xf32, #tpu.memory_space<vmem>>, vector<32x1xf32>
    %c0_6 = arith.constant 0 : index
    %c0_7 = arith.constant 0 : index
    %8 = vector.load %arg6[%c0_6, %c0_7] : memref<8x16xf32, #tpu.memory_space<vmem>>, vector<8x16xf32>
    %c0_8 = arith.constant 0 : index
    %c0_9 = arith.constant 0 : index
    %c0_10 = arith.constant 0 : index
    %9 = vector.load %arg12[%c0_8, %c0_9, %c0_10] : memref<1x16x8xf32, #tpu.memory_space<vmem>>, vector<1x16x8xf32>
    %10 = vector.shape_cast %9 : vector<1x16x8xf32> to vector<16x8xf32>
    %cst = arith.constant dense<0.000000e+00> : vector<32x8xf32>
    %11 = tpu.matmul %6, %10, %cst {dimension_numbers = #tpu.dot_dimension_numbers<[1], [0], [0], [1], [0, 0, 1, 1], [], []>} : vector<32x16xf32>, vector<16x8xf32>, vector<32x8xf32> -> vector<32x8xf32>
    %c0_11 = arith.constant 0 : index
    %c0_12 = arith.constant 0 : index
    %c0_13 = arith.constant 0 : index
    %12 = vector.load %arg13[%c0_11, %c0_12, %c0_13] : memref<1x16x8xf32, #tpu.memory_space<vmem>>, vector<1x16x8xf32>
    %13 = vector.shape_cast %12 : vector<1x16x8xf32> to vector<16x8xf32>
    %cst_14 = arith.constant dense<0.000000e+00> : vector<32x8xf32>
    %14 = tpu.matmul %4, %13, %cst_14 {dimension_numbers = #tpu.dot_dimension_numbers<[1], [0], [0], [1], [0, 0, 1, 1], [], []>} : vector<32x16xf32>, vector<16x8xf32>, vector<32x8xf32> -> vector<32x8xf32>
    %15 = arith.addf %11, %14 : vector<32x8xf32>
    %cst_15 = arith.constant 0.000000e+00 : f32
    %16 = vector.broadcast %cst_15 : f32 to vector<32x8xf32>
    %17 = arith.cmpf ogt, %15, %16 : vector<32x8xf32>
    %cst_16 = arith.constant 0.00999999977 : f32
    %18 = vector.broadcast %cst_16 : f32 to vector<32x8xf32>
    %19 = arith.mulf %18, %15 : vector<32x8xf32>
    %20 = arith.select %17, %15, %19 : vector<32x8xi1>, vector<32x8xf32>
    %21 = vector.broadcast %7 : vector<32x1xf32> to vector<32x8xf32>
    %22 = arith.mulf %20, %21 : vector<32x8xf32>
    %c0_17 = arith.constant 0 : index
    %c0_18 = arith.constant 0 : index
    %c0_19 = arith.constant 0 : index
    %23 = vector.load %arg11[%c0_17, %c0_18, %c0_19] : memref<1x16x16xf32, #tpu.memory_space<vmem>>, vector<1x16x16xf32>
    %24 = vector.shape_cast %23 : vector<1x16x16xf32> to vector<16x16xf32>
    %cst_20 = arith.constant dense<0.000000e+00> : vector<32x16xf32>
    %25 = tpu.matmul %4, %24, %cst_20 {dimension_numbers = #tpu.dot_dimension_numbers<[1], [0], [0], [1], [0, 0, 1, 1], [], []>} : vector<32x16xf32>, vector<16x16xf32>, vector<32x16xf32> -> vector<32x16xf32>
    %cst_21 = arith.constant dense<0.000000e+00> : vector<32x16xf32>
    %26 = tpu.matmul %22, %8, %cst_21 {dimension_numbers = #tpu.dot_dimension_numbers<[1], [0], [0], [1], [0, 0, 1, 1], [], []>} : vector<32x8xf32>, vector<8x16xf32>, vector<32x16xf32> -> vector<32x16xf32>
    %27 = arith.mulf %26, %25 : vector<32x16xf32>
    %c0_22 = arith.constant 0 : index
    %c0_23 = arith.constant 0 : index
    %28 = vector.load %arg10[%c0_22, %c0_23] : memref<16x16xf32, #tpu.memory_space<vmem>>, vector<16x16xf32>
    %cst_24 = arith.constant dense<0.000000e+00> : vector<16x16xf32>
    %29 = tpu.matmul %6, %27, %cst_24 {dimension_numbers = #tpu.dot_dimension_numbers<[0], [0], [1], [1], [0, 1, 1, 1], [], []>} : vector<32x16xf32>, vector<32x16xf32>, vector<16x16xf32> -> vector<16x16xf32>
    %30 = arith.addf %28, %29 : vector<16x16xf32>
    %c0_25 = arith.constant 0 : index
    %c0_26 = arith.constant 0 : index
    %31 = vector.load %arg10[%c0_25, %c0_26] : memref<16x16xf32, #tpu.memory_space<vmem>>, vector<16x16xf32>
    tpu.vector_store %arg10[%c0_25, %c0_26], %30 {strides = array<i32>} : memref<16x16xf32, #tpu.memory_space<vmem>>, vector<16x16xf32>,
    return
  }
  func.func @transform_0(%arg0: i32) -> (i32, i32, i32) {
    %c0_i32 = arith.constant 0 : i32
    %c0_i32_0 = arith.constant 0 : i32
    %c0_i32_1 = arith.constant 0 : i32
    %c0_i32_2 = arith.constant 0 : i32
    return %c0_i32, %c0_i32_0, %c0_i32_1 : i32, i32, i32
  }
  func.func @transform_1(%arg0: i32) -> (i32, i32) {
    %c0_i32 = arith.constant 0 : i32
    %c0_i32_0 = arith.constant 0 : i32
    %c0_i32_1 = arith.constant 0 : i32
    return %c0_i32, %c0_i32_0 : i32, i32
  }
  func.func @transform_2(%arg0: i32) -> (i32, i32) {
    %c0_i32 = arith.constant 0 : i32
    %c0_i32_0 = arith.constant 0 : i32
    %c0_i32_1 = arith.constant 0 : i32
    return %c0_i32, %c0_i32_0 : i32, i32
  }
  func.func @transform_3(%arg0: i32) -> (i32, i32) {
    %c0_i32 = arith.constant 0 : i32
    %c0_i32_0 = arith.constant 0 : i32
    %c0_i32_1 = arith.constant 0 : i32
    return %c0_i32, %c0_i32_0 : i32, i32
  }
  func.func @transform_4(%arg0: i32) -> (i32, i32) {
    %c0_i32 = arith.constant 0 : i32
    %c0_i32_0 = arith.constant 0 : i32
    %c0_i32_1 = arith.constant 0 : i32
    return %c0_i32, %c0_i32_0 : i32, i32
  }
  func.func @transform_5(%arg0: i32) -> (i32, i32) {
    %c0_i32 = arith.constant 0 : i32
    %c0_i32_0 = arith.constant 0 : i32
    %c0_i32_1 = arith.constant 0 : i32
    return %c0_i32, %c0_i32_0 : i32, i32
  }
  func.func @transform_6(%arg0: i32) -> (i32, i32) {
    %c0_i32 = arith.constant 0 : i32
    %c0_i32_0 = arith.constant 0 : i32
    return %arg0, %c0_i32 : i32, i32
  }
  func.func @transform_7(%arg0: i32) -> (i32, i32) {
    %c0_i32 = arith.constant 0 : i32
    %c0_i32_0 = arith.constant 0 : i32
    return %arg0, %c0_i32 : i32, i32
  }
  func.func @transform_8(%arg0: i32) -> (i32, i32) {
    %c0_i32 = arith.constant 0 : i32
    %c0_i32_0 = arith.constant 0 : i32
    return %arg0, %c0_i32 : i32, i32
  }
  func.func @transform_9(%arg0: i32) -> (i32, i32) {
    %c0_i32 = arith.constant 0 : i32
    %c0_i32_0 = arith.constant 0 : i32
    %c0_i32_1 = arith.constant 0 : i32
    return %c0_i32, %c0_i32_0 : i32, i32
  }
}

module attributes {stable_mosaic.version = 11 : i64} {
  func.func @_mlp_head_kernel(%arg0: memref<2x8xf32, #tpu.memory_space<vmem>>, %arg1: memref<8x16xf32, #tpu.memory_space<vmem>>, %arg2: memref<1x16xf32, #tpu.memory_space<vmem>>, %arg3: memref<16x16xf32, #tpu.memory_space<vmem>>, %arg4: memref<1x16xf32, #tpu.memory_space<vmem>>, %arg5: memref<16x16xf32, #tpu.memory_space<vmem>>, %arg6: memref<1x16xf32, #tpu.memory_space<vmem>>, %arg7: memref<16x16xf32, #tpu.memory_space<vmem>>, %arg8: memref<1x16xf32, #tpu.memory_space<vmem>>, %arg9: memref<16x1xf32, #tpu.memory_space<vmem>>, %arg10: memref<1x1xf32, #tpu.memory_space<vmem>>, %arg11: memref<2x1xf32, #tpu.memory_space<vmem>>) attributes {dimension_semantics = [], scalar_prefetch = 0 : i64, scratch_operands = 0 : i64, tpu.core_type = #tpu.core_type<tc>} {
    %c0 = arith.constant 0 : index
    %c0_0 = arith.constant 0 : index
    %0 = vector.load %arg0[%c0, %c0_0] : memref<2x8xf32, #tpu.memory_space<vmem>>, vector<2x8xf32>
    %cst = arith.constant dense<0.000000e+00> : vector<8xf32>
    %1 = vector.multi_reduction <add>, %0, %cst [0] : vector<2x8xf32> to vector<8xf32>
    %2 = vector.shape_cast %1 : vector<8xf32> to vector<1x8xf32>
    %cst_1 = arith.constant 2.000000e+00 : f32
    %3 = vector.broadcast %cst_1 : f32 to vector<1x8xf32>
    %4 = arith.divf %2, %3 : vector<1x8xf32>
    %5 = vector.broadcast %4 : vector<1x8xf32> to vector<2x8xf32>
    %6 = arith.subf %0, %5 : vector<2x8xf32>
    %7 = arith.mulf %6, %6 : vector<2x8xf32>
    %cst_2 = arith.constant dense<0.000000e+00> : vector<8xf32>
    %8 = vector.multi_reduction <add>, %7, %cst_2 [0] : vector<2x8xf32> to vector<8xf32>
    %9 = vector.shape_cast %8 : vector<8xf32> to vector<1x8xf32>
    %cst_3 = arith.constant 2.000000e+00 : f32
    %10 = vector.broadcast %cst_3 : f32 to vector<1x8xf32>
    %11 = arith.divf %9, %10 : vector<1x8xf32>
    %12 = vector.broadcast %4 : vector<1x8xf32> to vector<2x8xf32>
    %13 = arith.subf %0, %12 : vector<2x8xf32>
    %cst_4 = arith.constant 9.99999974E-6 : f32
    %14 = vector.broadcast %cst_4 : f32 to vector<1x8xf32>
    %15 = arith.addf %11, %14 : vector<1x8xf32>
    %16 = math.rsqrt %15 : vector<1x8xf32>
    %17 = vector.broadcast %16 : vector<1x8xf32> to vector<2x8xf32>
    %18 = arith.mulf %13, %17 : vector<2x8xf32>
    %cst_5 = arith.constant 0.000000e+00 : f32
    %19 = vector.broadcast %cst_5 : f32 to vector<2x8xf32>
    %20 = arith.maximumf %18, %19 : vector<2x8xf32>
    %c0_6 = arith.constant 0 : index
    %c0_7 = arith.constant 0 : index
    %21 = vector.load %arg1[%c0_6, %c0_7] : memref<8x16xf32, #tpu.memory_space<vmem>>, vector<8x16xf32>
    %cst_8 = arith.constant dense<0.000000e+00> : vector<2x16xf32>
    %22 = tpu.matmul %20, %21, %cst_8 {dimension_numbers = #tpu.dot_dimension_numbers<[1], [0], [0], [1], [0, 0, 1, 1], [], []>} : vector<2x8xf32>, vector<8x16xf32>, vector<2x16xf32> -> vector<2x16xf32>
    %c0_9 = arith.constant 0 : index
    %c0_10 = arith.constant 0 : index
    %23 = vector.load %arg2[%c0_9, %c0_10] : memref<1x16xf32, #tpu.memory_space<vmem>>, vector<1x16xf32>
    %24 = vector.broadcast %23 : vector<1x16xf32> to vector<2x16xf32>
    %25 = arith.addf %22, %24 : vector<2x16xf32>
    %cst_11 = arith.constant dense<0.000000e+00> : vector<16xf32>
    %26 = vector.multi_reduction <add>, %25, %cst_11 [0] : vector<2x16xf32> to vector<16xf32>
    %27 = vector.shape_cast %26 : vector<16xf32> to vector<1x16xf32>
    %cst_12 = arith.constant 2.000000e+00 : f32
    %28 = vector.broadcast %cst_12 : f32 to vector<1x16xf32>
    %29 = arith.divf %27, %28 : vector<1x16xf32>
    %30 = vector.broadcast %29 : vector<1x16xf32> to vector<2x16xf32>
    %31 = arith.subf %25, %30 : vector<2x16xf32>
    %32 = arith.mulf %31, %31 : vector<2x16xf32>
    %cst_13 = arith.constant dense<0.000000e+00> : vector<16xf32>
    %33 = vector.multi_reduction <add>, %32, %cst_13 [0] : vector<2x16xf32> to vector<16xf32>
    %34 = vector.shape_cast %33 : vector<16xf32> to vector<1x16xf32>
    %cst_14 = arith.constant 2.000000e+00 : f32
    %35 = vector.broadcast %cst_14 : f32 to vector<1x16xf32>
    %36 = arith.divf %34, %35 : vector<1x16xf32>
    %37 = vector.broadcast %29 : vector<1x16xf32> to vector<2x16xf32>
    %38 = arith.subf %25, %37 : vector<2x16xf32>
    %cst_15 = arith.constant 9.99999974E-6 : f32
    %39 = vector.broadcast %cst_15 : f32 to vector<1x16xf32>
    %40 = arith.addf %36, %39 : vector<1x16xf32>
    %41 = math.rsqrt %40 : vector<1x16xf32>
    %42 = vector.broadcast %41 : vector<1x16xf32> to vector<2x16xf32>
    %43 = arith.mulf %38, %42 : vector<2x16xf32>
    %cst_16 = arith.constant 0.000000e+00 : f32
    %44 = vector.broadcast %cst_16 : f32 to vector<2x16xf32>
    %45 = arith.maximumf %43, %44 : vector<2x16xf32>
    %c0_17 = arith.constant 0 : index
    %c0_18 = arith.constant 0 : index
    %46 = vector.load %arg3[%c0_17, %c0_18] : memref<16x16xf32, #tpu.memory_space<vmem>>, vector<16x16xf32>
    %cst_19 = arith.constant dense<0.000000e+00> : vector<2x16xf32>
    %47 = tpu.matmul %45, %46, %cst_19 {dimension_numbers = #tpu.dot_dimension_numbers<[1], [0], [0], [1], [0, 0, 1, 1], [], []>} : vector<2x16xf32>, vector<16x16xf32>, vector<2x16xf32> -> vector<2x16xf32>
    %c0_20 = arith.constant 0 : index
    %c0_21 = arith.constant 0 : index
    %48 = vector.load %arg4[%c0_20, %c0_21] : memref<1x16xf32, #tpu.memory_space<vmem>>, vector<1x16xf32>
    %49 = vector.broadcast %48 : vector<1x16xf32> to vector<2x16xf32>
    %50 = arith.addf %47, %49 : vector<2x16xf32>
    %51 = arith.addf %50, %25 : vector<2x16xf32>
    %cst_22 = arith.constant dense<0.000000e+00> : vector<16xf32>
    %52 = vector.multi_reduction <add>, %51, %cst_22 [0] : vector<2x16xf32> to vector<16xf32>
    %53 = vector.shape_cast %52 : vector<16xf32> to vector<1x16xf32>
    %cst_23 = arith.constant 2.000000e+00 : f32
    %54 = vector.broadcast %cst_23 : f32 to vector<1x16xf32>
    %55 = arith.divf %53, %54 : vector<1x16xf32>
    %56 = vector.broadcast %55 : vector<1x16xf32> to vector<2x16xf32>
    %57 = arith.subf %51, %56 : vector<2x16xf32>
    %58 = arith.mulf %57, %57 : vector<2x16xf32>
    %cst_24 = arith.constant dense<0.000000e+00> : vector<16xf32>
    %59 = vector.multi_reduction <add>, %58, %cst_24 [0] : vector<2x16xf32> to vector<16xf32>
    %60 = vector.shape_cast %59 : vector<16xf32> to vector<1x16xf32>
    %cst_25 = arith.constant 2.000000e+00 : f32
    %61 = vector.broadcast %cst_25 : f32 to vector<1x16xf32>
    %62 = arith.divf %60, %61 : vector<1x16xf32>
    %63 = vector.broadcast %55 : vector<1x16xf32> to vector<2x16xf32>
    %64 = arith.subf %51, %63 : vector<2x16xf32>
    %cst_26 = arith.constant 9.99999974E-6 : f32
    %65 = vector.broadcast %cst_26 : f32 to vector<1x16xf32>
    %66 = arith.addf %62, %65 : vector<1x16xf32>
    %67 = math.rsqrt %66 : vector<1x16xf32>
    %68 = vector.broadcast %67 : vector<1x16xf32> to vector<2x16xf32>
    %69 = arith.mulf %64, %68 : vector<2x16xf32>
    %cst_27 = arith.constant 0.000000e+00 : f32
    %70 = vector.broadcast %cst_27 : f32 to vector<2x16xf32>
    %71 = arith.maximumf %69, %70 : vector<2x16xf32>
    %c0_28 = arith.constant 0 : index
    %c0_29 = arith.constant 0 : index
    %72 = vector.load %arg5[%c0_28, %c0_29] : memref<16x16xf32, #tpu.memory_space<vmem>>, vector<16x16xf32>
    %cst_30 = arith.constant dense<0.000000e+00> : vector<2x16xf32>
    %73 = tpu.matmul %71, %72, %cst_30 {dimension_numbers = #tpu.dot_dimension_numbers<[1], [0], [0], [1], [0, 0, 1, 1], [], []>} : vector<2x16xf32>, vector<16x16xf32>, vector<2x16xf32> -> vector<2x16xf32>
    %c0_31 = arith.constant 0 : index
    %c0_32 = arith.constant 0 : index
    %74 = vector.load %arg6[%c0_31, %c0_32] : memref<1x16xf32, #tpu.memory_space<vmem>>, vector<1x16xf32>
    %75 = vector.broadcast %74 : vector<1x16xf32> to vector<2x16xf32>
    %76 = arith.addf %73, %75 : vector<2x16xf32>
    %77 = arith.addf %76, %51 : vector<2x16xf32>
    %cst_33 = arith.constant dense<0.000000e+00> : vector<16xf32>
    %78 = vector.multi_reduction <add>, %77, %cst_33 [0] : vector<2x16xf32> to vector<16xf32>
    %79 = vector.shape_cast %78 : vector<16xf32> to vector<1x16xf32>
    %cst_34 = arith.constant 2.000000e+00 : f32
    %80 = vector.broadcast %cst_34 : f32 to vector<1x16xf32>
    %81 = arith.divf %79, %80 : vector<1x16xf32>
    %82 = vector.broadcast %81 : vector<1x16xf32> to vector<2x16xf32>
    %83 = arith.subf %77, %82 : vector<2x16xf32>
    %84 = arith.mulf %83, %83 : vector<2x16xf32>
    %cst_35 = arith.constant dense<0.000000e+00> : vector<16xf32>
    %85 = vector.multi_reduction <add>, %84, %cst_35 [0] : vector<2x16xf32> to vector<16xf32>
    %86 = vector.shape_cast %85 : vector<16xf32> to vector<1x16xf32>
    %cst_36 = arith.constant 2.000000e+00 : f32
    %87 = vector.broadcast %cst_36 : f32 to vector<1x16xf32>
    %88 = arith.divf %86, %87 : vector<1x16xf32>
    %89 = vector.broadcast %81 : vector<1x16xf32> to vector<2x16xf32>
    %90 = arith.subf %77, %89 : vector<2x16xf32>
    %cst_37 = arith.constant 9.99999974E-6 : f32
    %91 = vector.broadcast %cst_37 : f32 to vector<1x16xf32>
    %92 = arith.addf %88, %91 : vector<1x16xf32>
    %93 = math.rsqrt %92 : vector<1x16xf32>
    %94 = vector.broadcast %93 : vector<1x16xf32> to vector<2x16xf32>
    %95 = arith.mulf %90, %94 : vector<2x16xf32>
    %cst_38 = arith.constant 0.000000e+00 : f32
    %96 = vector.broadcast %cst_38 : f32 to vector<2x16xf32>
    %97 = arith.maximumf %95, %96 : vector<2x16xf32>
    %c0_39 = arith.constant 0 : index
    %c0_40 = arith.constant 0 : index
    %98 = vector.load %arg7[%c0_39, %c0_40] : memref<16x16xf32, #tpu.memory_space<vmem>>, vector<16x16xf32>
    %cst_41 = arith.constant dense<0.000000e+00> : vector<2x16xf32>
    %99 = tpu.matmul %97, %98, %cst_41 {dimension_numbers = #tpu.dot_dimension_numbers<[1], [0], [0], [1], [0, 0, 1, 1], [], []>} : vector<2x16xf32>, vector<16x16xf32>, vector<2x16xf32> -> vector<2x16xf32>
    %c0_42 = arith.constant 0 : index
    %c0_43 = arith.constant 0 : index
    %100 = vector.load %arg8[%c0_42, %c0_43] : memref<1x16xf32, #tpu.memory_space<vmem>>, vector<1x16xf32>
    %101 = vector.broadcast %100 : vector<1x16xf32> to vector<2x16xf32>
    %102 = arith.addf %99, %101 : vector<2x16xf32>
    %103 = arith.addf %102, %77 : vector<2x16xf32>
    %c0_44 = arith.constant 0 : index
    %c0_45 = arith.constant 0 : index
    %104 = vector.load %arg9[%c0_44, %c0_45] : memref<16x1xf32, #tpu.memory_space<vmem>>, vector<16x1xf32>
    %cst_46 = arith.constant dense<0.000000e+00> : vector<2x1xf32>
    %105 = tpu.matmul %103, %104, %cst_46 {dimension_numbers = #tpu.dot_dimension_numbers<[1], [0], [0], [1], [0, 0, 1, 1], [], []>} : vector<2x16xf32>, vector<16x1xf32>, vector<2x1xf32> -> vector<2x1xf32>
    %c0_47 = arith.constant 0 : index
    %c0_48 = arith.constant 0 : index
    %106 = vector.load %arg10[%c0_47, %c0_48] : memref<1x1xf32, #tpu.memory_space<vmem>>, vector<1x1xf32>
    %107 = vector.broadcast %106 : vector<1x1xf32> to vector<2x1xf32>
    %108 = arith.addf %105, %107 : vector<2x1xf32>
    %c0_49 = arith.constant 0 : index
    %c0_50 = arith.constant 0 : index
    %109 = vector.load %arg11[%c0_49, %c0_50] : memref<2x1xf32, #tpu.memory_space<vmem>>, vector<2x1xf32>
    tpu.vector_store %arg11[%c0_49, %c0_50], %108 {strides = array<i32>} : memref<2x1xf32, #tpu.memory_space<vmem>>, vector<2x1xf32>,
    return
  }
}

</mosaic_0001>

<llo_original>
// kernel: gat_forward.10
$region0: #{gat_forward.10}
  #allocation0 [shape = 'u32[]', space=smem, size = 0x4, offset = 0x4, fixed_abs, tag = 'smem constant byte address 0x4 - core index']
  #allocation1 [shape = 'u32[144,128]{1,0:T(1,128)}', space=vmem, size = 0x12000, scoped, tag = 'internal scratch']
  #allocation2 [shape = 'f32[1,16,16]{2,1,0:T(8,128)}', space=vmem, size = 0x2000, scoped, tag = 'scratch operand']
  #allocation3 [shape = 'f32[1,16,8]{2,1,0:T(8,128)}', space=vmem, size = 0x2000, scoped, tag = 'scratch operand']
  #allocation4 [shape = 'f32[1,16,8]{2,1,0:T(8,128)}', space=vmem, size = 0x2000, scoped, tag = 'scratch operand']
  %s0 = inlined_call_operand.vmem [shape: f32[1,16,16], index: 0, kind: input, shape index: {}]
  %s1 = inlined_call_operand.vmem [shape: f32[16,16], index: 1, kind: input, shape index: {}]
  %s2 = inlined_call_operand.vmem [shape: f32[1,16], index: 2, kind: input, shape index: {}]
  %s3 = inlined_call_operand.vmem [shape: f32[16,8], index: 3, kind: input, shape index: {}]
  %s4 = inlined_call_operand.vmem [shape: f32[16,8], index: 4, kind: input, shape index: {}]
  %s5 = inlined_call_operand.vmem [shape: f32[8,16], index: 5, kind: input, shape index: {}]
  %s6 = inlined_call_operand.vmem [shape: bf16[32,16], index: 6, kind: input, shape index: {}]
  %s7 = inlined_call_operand.vmem [shape: bf16[32,16], index: 7, kind: input, shape index: {}]
  %s8 = inlined_call_operand.vmem [shape: f32[32,1], index: 8, kind: input, shape index: {}]
  %s9 = inlined_call_operand.vmem [shape: f32[16,16], index: 9, kind: output, shape index: {}]
  %s10 = sld [smem:[#allocation0]]
  $region50: #{gat_forward.10} parent=0
    _
  %s12 = ssub.s32 1, %s10
  %s13 = scalar_select 0, %s12, %s10
  // Predicated region
  $region2: #{gat_forward.10} parent=0 // pred_check
    _
  $region3: #{gat_forward.10} parent=0 // pred_check_branch
    %15 = sbr.rel (0) target = $region5
  $region4: #{gat_forward.10} parent=0 // pred_region
    _
  $region5: #{gat_forward.10} parent=0 // pred_fallthru
    _
  // Predicated region
  $region6: #{gat_forward.10} parent=0 // pred_check
    _
  $region7: #{gat_forward.10} parent=0 // pred_check_branch
    %17 = sbr.rel (0) target = $region9
  $region8: #{gat_forward.10} parent=0 // pred_region
    _
  $region9: #{gat_forward.10} parent=0 // pred_fallthru
    _
  // Predicated region
  $region10: #{gat_forward.10} parent=0 // pred_check
    _
  $region11: #{gat_forward.10} parent=0 // pred_check_branch
    %19 = sbr.rel (0) target = $region13
  $region12: #{gat_forward.10} parent=0 // pred_region
    _
  $region13: #{gat_forward.10} parent=0 // pred_fallthru
    _
  // Predicated region
  $region14: #{gat_forward.10} parent=0 // pred_check
    _
  $region15: #{gat_forward.10} parent=0 // pred_check_branch
    %21 = sbr.rel (0) target = $region17
  $region16: #{gat_forward.10} parent=0 // pred_region
    _
  $region17: #{gat_forward.10} parent=0 // pred_fallthru
    _
  // Predicated region
  $region18: #{gat_forward.10} parent=0 // pred_check
    _
  $region19: #{gat_forward.10} parent=0 // pred_check_branch
    %23 = sbr.rel (0) target = $region21
  $region20: #{gat_forward.10} parent=0 // pred_region
    _
  $region21: #{gat_forward.10} parent=0 // pred_fallthru
    _
  // Predicated region
  $region22: #{gat_forward.10} parent=0 // pred_check
    _
  $region23: #{gat_forward.10} parent=0 // pred_check_branch
    %25 = sbr.rel (0) target = $region25
  $region24: #{gat_forward.10} parent=0 // pred_region
    _
  $region25: #{gat_forward.10} parent=0 // pred_fallthru
    _
  // Predicated region
  $region26: #{gat_forward.10} parent=0 // pred_check
    _
  $region27: #{gat_forward.10} parent=0 // pred_check_branch
    %27 = sbr.rel (0) target = $region29
  $region28: #{gat_forward.10} parent=0 // pred_region
    _
  $region29: #{gat_forward.10} parent=0 // pred_fallthru
    _
  // Predicated region
  $region30: #{gat_forward.10} parent=0 // pred_check
    _
  $region31: #{gat_forward.10} parent=0 // pred_check_branch
    %29 = sbr.rel (0) target = $region33
  $region32: #{gat_forward.10} parent=0 // pred_region
    _
  $region33: #{gat_forward.10} parent=0 // pred_fallthru
    _
  // Predicated region
  $region34: #{gat_forward.10} parent=0 // pred_check
    _
  $region35: #{gat_forward.10} parent=0 // pred_check_branch
    %31 = sbr.rel (0) target = $region37
  $region36: #{gat_forward.10} parent=0 // pred_region
    _
  $region37: #{gat_forward.10} parent=0 // pred_fallthru
    _
  %p32 = scmp.eq.s32.totalorder 0, 0
  // Predicated region
  $region38: #{gat_forward.10} parent=0 // pred_check
    %p33 = pneg %p32
  $region39: #{gat_forward.10} parent=0 // pred_check_branch
    %35 = sbr.rel (%p33) target = $region41
  $region40: #{gat_forward.10} parent=0 // pred_region
    %vm36 = vcmask 130048
    %37 = vst.msk [vmem:[%s9] sm:$0xff] %vm36, 0.0
    %38 = vst.msk [vmem:[%s9 + $0x8] sm:$0xff] %vm36, 0.0
    %v39 = vld [vmem:[%s1] sm:$0xff]
    %v40 = vld [vmem:[%s1 + $0x8] sm:$0xff]
    %v41 = vld [vmem:[%s2] sm:$0x1]
    %v42 = vld [vmem:[%s3] sm:$0xff]
    %v43 = vld [vmem:[%s3 + $0x8] sm:$0xff]
    %v44 = vld [vmem:[%s4] sm:$0xff]
    %v45 = vld [vmem:[%s4 + $0x8] sm:$0xff]
    %v46 = vld [vmem:[%s0] sm:$0xff]
    %v47 = vld [vmem:[%s0 + $0x8] sm:$0xff]
    %v49 = vlaneseq
    %v50 = vshrl.u32 %v49, 7
    %v51 = vsub.s32 0, %v50
    %v52 = vrot.slane %v41, %v51
    %v55 = vsel %vm36, %v46, 0
    %v58 = vsel %vm36, %v47, 0
    %60 = vmatprep.subr.mxu0 0.0
    %61 = vmatpush1.msra.mxu0 %v39
    %62 = vmatprep.subr.mxu0 0.0
    %63 = vmatpush1.msra.mxu0 %v40
    %64 = vmatprep.subr.mxu0 0.0
    %65 = vmatpush1.msra.mxu0 0.0
    %66 = vmatprep.subr.mxu0 0.0
    %67 = vmatpush1.msra.mxu0 0.0
    %68 = vmatprep.subr.mxu0 0.0
    %69 = vmatpush1.msra.mxu0 0.0
    %70 = vmatprep.subr.mxu0 0.0
    %71 = vmatpush1.msra.mxu0 0.0
    %72 = vmatprep.subr.mxu0 0.0
    %73 = vmatpush1.msra.mxu0 0.0
    %74 = vmatprep.subr.mxu0 0.0
    %75 = vmatpush1.msra.mxu0 0.0
    %76 = vmatprep.subr.mxu0 0.0
    %77 = vmatpush1.msra.mxu0 0.0
    %78 = vmatprep.subr.mxu0 0.0
    %79 = vmatpush1.msra.mxu0 0.0
    %80 = vmatprep.subr.mxu0 0.0
    %81 = vmatpush1.msra.mxu0 0.0
    %82 = vmatprep.subr.mxu0 0.0
    %83 = vmatpush1.msra.mxu0 0.0
    %84 = vmatprep.subr.mxu0 0.0
    %85 = vmatpush1.msra.mxu0 0.0
    %86 = vmatprep.subr.mxu0 0.0
    %87 = vmatpush1.msra.mxu0 0.0
    %88 = vmatprep.subr.mxu0 0.0
    %89 = vmatpush1.msra.mxu0 0.0
    %90 = vmatprep.subr.mxu0 0.0
    %91 = vmatpush1.msra.mxu0 0.0
    %92 = vmatprep.subr.mxu0 0.0
    %93 = vmatpush1.msra.mxu0 0.0
    %94 = vmatprep.subr.mxu0 0.0
    %95 = vmatpush1.msra.mxu0 0.0
    %96 = vmatprep.subr.mxu0 0.0
    %97 = vmatpush1.msra.mxu0 0.0
    %98 = vmatprep.subr.mxu0 0.0
    %99 = vmatpush1.msra.mxu0 0.0
    %100 = vmatprep.subr.mxu0 0.0
    %101 = vmatpush1.msra.mxu0 0.0
    %102 = vmatprep.subr.mxu0 0.0
    %103 = vmatpush1.msra.mxu0 0.0
    %104 = vmatprep.subr.mxu0 0.0
    %105 = vmatpush1.msra.mxu0 0.0
    %106 = vmatprep.subr.mxu0 0.0
    %107 = vmatpush1.msra.mxu0 0.0
    %108 = vmatprep.subr.mxu0 0.0
    %109 = vmatpush1.msra.mxu0 0.0
    %110 = vmatprep.subr.mxu0 0.0
    %111 = vmatpush1.msra.mxu0 0.0
    %112 = vmatprep.subr.mxu0 0.0
    %113 = vmatpush1.msra.mxu0 0.0
    %114 = vmatprep.subr.mxu0 0.0
    %115 = vmatpush1.msra.mxu0 0.0
    %116 = vmatprep.subr.mxu0 0.0
    %117 = vmatpush1.msra.mxu0 0.0
    %118 = vmatprep.subr.mxu0 0.0
    %119 = vmatpush1.msra.mxu0 0.0
    %120 = vmatprep.subr.mxu0 0.0
    %121 = vmatpush1.msra.mxu0 0.0
    %122 = vmatprep.subr.mxu0 0.0
    %123 = vmatpush1.msra.mxu0 0.0
    %124 = vmatprep.mubr.f32.mxu0 0.0
    %125 = vmatmul.mubr.f32.gmra.mrb[0].mxu0 %v55
    %v126 = vpop.f32.mrb[0].mxu0
    %v127 = vadd.f32 %v52, %v126
    %v128 = vpop.f32.mrb[0].mxu0
    %129 = vmatprep.mubr.f32.mxu0 0.0
    %130 = vmatmul.mubr.f32.gmra.mrb[0].mxu0 %v58
    %v131 = vpop.f32.mrb[0].mxu0
    %v132 = vadd.f32 %v52, %v131
    %v133 = vpop.f32.mrb[0].mxu0
    %134 = vdwg.mxu0
    %135 = vst.msk [vmem:[#allocation2] sm:$0xff] %vm36, %v127
    %136 = vst.msk [vmem:[#allocation2 + $0x8] sm:$0xff] %vm36, %v132
    %v138 = vsel %vm36, %v127, 0
    %v141 = vsel %vm36, %v132, 0
    %143 = vmatprep.subr.mxu0 0.0
    %144 = vmatpush1.msra.mxu0 %v42
    %145 = vmatprep.subr.mxu0 0.0
    %146 = vmatpush1.msra.mxu0 %v43
    %147 = vmatprep.subr.mxu0 0.0
    %148 = vmatpush1.msra.mxu0 0.0
    %149 = vmatprep.subr.mxu0 0.0
    %150 = vmatpush1.msra.mxu0 0.0
    %151 = vmatprep.subr.mxu0 0.0
    %152 = vmatpush1.msra.mxu0 0.0
    %153 = vmatprep.subr.mxu0 0.0
    %154 = vmatpush1.msra.mxu0 0.0
    %155 = vmatprep.subr.mxu0 0.0
    %156 = vmatpush1.msra.mxu0 0.0
    %157 = vmatprep.subr.mxu0 0.0
    %158 = vmatpush1.msra.mxu0 0.0
    %159 = vmatprep.subr.mxu0 0.0
    %160 = vmatpush1.msra.mxu0 0.0
    %161 = vmatprep.subr.mxu0 0.0
    %162 = vmatpush1.msra.mxu0 0.0
    %163 = vmatprep.subr.mxu0 0.0
    %164 = vmatpush1.msra.mxu0 0.0
    %165 = vmatprep.subr.mxu0 0.0
    %166 = vmatpush1.msra.mxu0 0.0
    %167 = vmatprep.subr.mxu0 0.0
    %168 = vmatpush1.msra.mxu0 0.0
    %169 = vmatprep.subr.mxu0 0.0
    %170 = vmatpush1.msra.mxu0 0.0
    %171 = vmatprep.subr.mxu0 0.0
    %172 = vmatpush1.msra.mxu0 0.0
    %173 = vmatprep.subr.mxu0 0.0
    %174 = vmatpush1.msra.mxu0 0.0
    %175 = vmatprep.subr.mxu0 0.0
    %176 = vmatpush1.msra.mxu0 0.0
    %177 = vmatprep.subr.mxu0 0.0
    %178 = vmatpush1.msra.mxu0 0.0
    %179 = vmatprep.subr.mxu0 0.0
    %180 = vmatpush1.msra.mxu0 0.0
    %181 = vmatprep.subr.mxu0 0.0
    %182 = vmatpush1.msra.mxu0 0.0
    %183 = vmatprep.subr.mxu0 0.0
    %184 = vmatpush1.msra.mxu0 0.0
    %185 = vmatprep.subr.mxu0 0.0
    %186 = vmatpush1.msra.mxu0 0.0
    %187 = vmatprep.subr.mxu0 0.0
    %188 = vmatpush1.msra.mxu0 0.0
    %189 = vmatprep.subr.mxu0 0.0
    %190 = vmatpush1.msra.mxu0 0.0
    %191 = vmatprep.subr.mxu0 0.0
    %192 = vmatpush1.msra.mxu0 0.0
    %193 = vmatprep.subr.mxu0 0.0
    %194 = vmatpush1.msra.mxu0 0.0
    %195 = vmatprep.subr.mxu0 0.0
    %196 = vmatpush1.msra.mxu0 0.0
    %197 = vmatprep.subr.mxu0 0.0
    %198 = vmatpush1.msra.mxu0 0.0
    %199 = vmatprep.subr.mxu0 0.0
    %200 = vmatpush1.msra.mxu0 0.0
    %201 = vmatprep.subr.mxu0 0.0
    %202 = vmatpush1.msra.mxu0 0.0
    %203 = vmatprep.subr.mxu0 0.0
    %204 = vmatpush1.msra.mxu0 0.0
    %205 = vmatprep.subr.mxu0 0.0
    %206 = vmatpush1.msra.mxu0 0.0
    %207 = vmatprep.mubr.f32.mxu0 0.0
    %208 = vmatmul.mubr.f32.gmra.mrb[0].mxu0 %v138
    %v209 = vpop.f32.mrb[0].mxu0
    %v210 = vadd.f32 0.0, %v209
    %v211 = vpop.f32.mrb[0].mxu0
    %212 = vmatprep.mubr.f32.mxu0 0.0
    %213 = vmatmul.mubr.f32.gmra.mrb[0].mxu0 %v141
    %v214 = vpop.f32.mrb[0].mxu0
    %v215 = vadd.f32 0.0, %v214
    %v216 = vpop.f32.mrb[0].mxu0
    %217 = vdwg.mxu0
    %vm218 = vcmask 64512
    %219 = vst.msk [vmem:[#allocation3] sm:$0xff] %vm218, %v210
    %220 = vst.msk [vmem:[#allocation3 + $0x8] sm:$0xff] %vm218, %v215
    %221 = vmatprep.subr.mxu0 0.0
    %222 = vmatpush1.msra.mxu0 %v44
    %223 = vmatprep.subr.mxu0 0.0
    %224 = vmatpush1.msra.mxu0 %v45
    %225 = vmatprep.subr.mxu0 0.0
    %226 = vmatpush1.msra.mxu0 0.0
    %227 = vmatprep.subr.mxu0 0.0
    %228 = vmatpush1.msra.mxu0 0.0
    %229 = vmatprep.subr.mxu0 0.0
    %230 = vmatpush1.msra.mxu0 0.0
    %231 = vmatprep.subr.mxu0 0.0
    %232 = vmatpush1.msra.mxu0 0.0
    %233 = vmatprep.subr.mxu0 0.0
    %234 = vmatpush1.msra.mxu0 0.0
    %235 = vmatprep.subr.mxu0 0.0
    %236 = vmatpush1.msra.mxu0 0.0
    %237 = vmatprep.subr.mxu0 0.0
    %238 = vmatpush1.msra.mxu0 0.0
    %239 = vmatprep.subr.mxu0 0.0
    %240 = vmatpush1.msra.mxu0 0.0
    %241 = vmatprep.subr.mxu0 0.0
    %242 = vmatpush1.msra.mxu0 0.0
    %243 = vmatprep.subr.mxu0 0.0
    %244 = vmatpush1.msra.mxu0 0.0
    %245 = vmatprep.subr.mxu0 0.0
    %246 = vmatpush1.msra.mxu0 0.0
    %247 = vmatprep.subr.mxu0 0.0
    %248 = vmatpush1.msra.mxu0 0.0
    %249 = vmatprep.subr.mxu0 0.0
    %250 = vmatpush1.msra.mxu0 0.0
    %251 = vmatprep.subr.mxu0 0.0
    %252 = vmatpush1.msra.mxu0 0.0
    %253 = vmatprep.subr.mxu0 0.0
    %254 = vmatpush1.msra.mxu0 0.0
    %255 = vmatprep.subr.mxu0 0.0
    %256 = vmatpush1.msra.mxu0 0.0
    %257 = vmatprep.subr.mxu0 0.0
    %258 = vmatpush1.msra.mxu0 0.0
    %259 = vmatprep.subr.mxu0 0.0
    %260 = vmatpush1.msra.mxu0 0.0
    %261 = vmatprep.subr.mxu0 0.0
    %262 = vmatpush1.msra.mxu0 0.0
    %263 = vmatprep.subr.mxu0 0.0
    %264 = vmatpush1.msra.mxu0 0.0
    %265 = vmatprep.subr.mxu0 0.0
    %266 = vmatpush1.msra.mxu0 0.0
    %267 = vmatprep.subr.mxu0 0.0
    %268 = vmatpush1.msra.mxu0 0.0
    %269 = vmatprep.subr.mxu0 0.0
    %270 = vmatpush1.msra.mxu0 0.0
    %271 = vmatprep.subr.mxu0 0.0
    %272 = vmatpush1.msra.mxu0 0.0
    %273 = vmatprep.subr.mxu0 0.0
    %274 = vmatpush1.msra.mxu0 0.0
    %275 = vmatprep.subr.mxu0 0.0
    %276 = vmatpush1.msra.mxu0 0.0
    %277 = vmatprep.subr.mxu0 0.0
    %278 = vmatpush1.msra.mxu0 0.0
    %279 = vmatprep.subr.mxu0 0.0
    %280 = vmatpush1.msra.mxu0 0.0
    %281 = vmatprep.subr.mxu0 0.0
    %282 = vmatpush1.msra.mxu0 0.0
    %283 = vmatprep.subr.mxu0 0.0
    %284 = vmatpush1.msra.mxu0 0.0
    %285 = vmatprep.mubr.f32.mxu0 0.0
    %286 = vmatmul.mubr.f32.gmra.mrb[0].mxu0 %v138
    %v287 = vpop.f32.mrb[0].mxu0
    %v288 = vadd.f32 0.0, %v287
    %v289 = vpop.f32.mrb[0].mxu0
    %290 = vmatprep.mubr.f32.mxu0 0.0
    %291 = vmatmul.mubr.f32.gmra.mrb[0].mxu0 %v141
    %v292 = vpop.f32.mrb[0].mxu0
    %v293 = vadd.f32 0.0, %v292
    %v294 = vpop.f32.mrb[0].mxu0
    %295 = vdwg.mxu0
    %296 = vst.msk [vmem:[#allocation4] sm:$0xff] %vm218, %v288
    %297 = vst.msk [vmem:[#allocation4 + $0x8] sm:$0xff] %vm218, %v293
  $region41: #{gat_forward.10} parent=0 // pred_fallthru
    _
  %v298 = vld [vmem:[%s6] sm:$0xf]
  %v299 = vld [vmem:[%s6 + $0x4] sm:$0xf]
  %v300 = vld [vmem:[%s6 + $0x8] sm:$0xf]
  %v301 = vld [vmem:[%s6 + $0xc] sm:$0xf]
  %v302 = vunpack.c.l.bf16 %v298
  %v303 = vunpack.c.l.bf16 %v299
  %v304 = vunpack.c.l.bf16 %v300
  %v305 = vunpack.c.l.bf16 %v301
  %v306 = vld [vmem:[%s7] sm:$0xf]
  %v307 = vld [vmem:[%s7 + $0x4] sm:$0xf]
  %v308 = vld [vmem:[%s7 + $0x8] sm:$0xf]
  %v309 = vld [vmem:[%s7 + $0xc] sm:$0xf]
  %v310 = vunpack.c.l.bf16 %v306
  %v311 = vunpack.c.l.bf16 %v307
  %v312 = vunpack.c.l.bf16 %v308
  %v313 = vunpack.c.l.bf16 %v309
  %v314 = vld [vmem:[%s8] sm:$0xff]
  %v315 = vld [vmem:[%s8 + $0x8] sm:$0xff]
  %v316 = vld [vmem:[%s8 + $0x10] sm:$0xff]
  %v317 = vld [vmem:[%s8 + $0x18] sm:$0xff]
  %v318 = vld [vmem:[%s5] sm:$0xff]
  %v319 = vld [vmem:[#allocation3] sm:$0xff]
  %v320 = vld [vmem:[#allocation3 + $0x8] sm:$0xff]
  %v321 = vld [vmem:[#allocation4] sm:$0xff]
  %v322 = vld [vmem:[#allocation4 + $0x8] sm:$0xff]
  %vm323 = vcmask 130048
  %v325 = vsel %vm323, %v302, 0
  %v328 = vsel %vm323, %v303, 0
  %v331 = vsel %vm323, %v304, 0
  %v334 = vsel %vm323, %v305, 0
  %336 = vmatprep.subr.mxu0 0.0
  %337 = vmatpush1.msra.mxu0 %v321
  %338 = vmatprep.subr.mxu0 0.0
  %339 = vmatpush1.msra.mxu0 %v322
  %340 = vmatprep.subr.mxu0 0.0
  %341 = vmatpush1.msra.mxu0 0.0
  %342 = vmatprep.subr.mxu0 0.0
  %343 = vmatpush1.msra.mxu0 0.0
  %344 = vmatprep.subr.mxu0 0.0
  %345 = vmatpush1.msra.mxu0 0.0
  %346 = vmatprep.subr.mxu0 0.0
  %347 = vmatpush1.msra.mxu0 0.0
  %348 = vmatprep.subr.mxu0 0.0
  %349 = vmatpush1.msra.mxu0 0.0
  %350 = vmatprep.subr.mxu0 0.0
  %351 = vmatpush1.msra.mxu0 0.0
  %352 = vmatprep.subr.mxu0 0.0
  %353 = vmatpush1.msra.mxu0 0.0
  %354 = vmatprep.subr.mxu0 0.0
  %355 = vmatpush1.msra.mxu0 0.0
  %356 = vmatprep.subr.mxu0 0.0
  %357 = vmatpush1.msra.mxu0 0.0
  %358 = vmatprep.subr.mxu0 0.0
  %359 = vmatpush1.msra.mxu0 0.0
  %360 = vmatprep.subr.mxu0 0.0
  %361 = vmatpush1.msra.mxu0 0.0
  %362 = vmatprep.subr.mxu0 0.0
  %363 = vmatpush1.msra.mxu0 0.0
  %364 = vmatprep.subr.mxu0 0.0
  %365 = vmatpush1.msra.mxu0 0.0
  %366 = vmatprep.subr.mxu0 0.0
  %367 = vmatpush1.msra.mxu0 0.0
  %368 = vmatprep.subr.mxu0 0.0
  %369 = vmatpush1.msra.mxu0 0.0
  %370 = vmatprep.subr.mxu0 0.0
  %371 = vmatpush1.msra.mxu0 0.0
  %372 = vmatprep.subr.mxu0 0.0
  %373 = vmatpush1.msra.mxu0 0.0
  %374 = vmatprep.subr.mxu0 0.0
  %375 = vmatpush1.msra.mxu0 0.0
  %376 = vmatprep.subr.mxu0 0.0
  %377 = vmatpush1.msra.mxu0 0.0
  %378 = vmatprep.subr.mxu0 0.0
  %379 = vmatpush1.msra.mxu0 0.0
  %380 = vmatprep.subr.mxu0 0.0
  %381 = vmatpush1.msra.mxu0 0.0
  %382 = vmatprep.subr.mxu0 0.0
  %383 = vmatpush1.msra.mxu0 0.0
  %384 = vmatprep.subr.mxu0 0.0
  %385 = vmatpush1.msra.mxu0 0.0
  %386 = vmatprep.subr.mxu0 0.0
  %387 = vmatpush1.msra.mxu0 0.0
  %388 = vmatprep.subr.mxu0 0.0
  %389 = vmatpush1.msra.mxu0 0.0
  %390 = vmatprep.subr.mxu0 0.0
  %391 = vmatpush1.msra.mxu0 0.0
  %392 = vmatprep.subr.mxu0 0.0
  %393 = vmatpush1.msra.mxu0 0.0
  %394 = vmatprep.subr.mxu0 0.0
  %395 = vmatpush1.msra.mxu0 0.0
  %396 = vmatprep.subr.mxu0 0.0
  %397 = vmatpush1.msra.mxu0 0.0
  %398 = vmatprep.subr.mxu0 0.0
  %399 = vmatpush1.msra.mxu0 0.0
  %400 = vmatprep.mubr.f32.mxu0 0.0
  %401 = vmatmul.mubr.f32.gmra.mrb[0].mxu0 %v325
  %v402 = vpop.f32.mrb[0].mxu0
  %v403 = vadd.f32 0.0, %v402
  %v404 = vpop.f32.mrb[0].mxu0
  %405 = vmatprep.mubr.f32.mxu0 0.0
  %406 = vmatmul.mubr.f32.gmra.mrb[0].mxu0 %v328
  %v407 = vpop.f32.mrb[0].mxu0
  %v408 = vadd.f32 0.0, %v407
  %v409 = vpop.f32.mrb[0].mxu0
  %410 = vmatprep.mubr.f32.mxu0 0.0
  %411 = vmatmul.mubr.f32.gmra.mrb[0].mxu0 %v331
  %v412 = vpop.f32.mrb[0].mxu0
  %v413 = vadd.f32 0.0, %v412
  %v414 = vpop.f32.mrb[0].mxu0
  %415 = vmatprep.mubr.f32.mxu0 0.0
  %416 = vmatmul.mubr.f32.gmra.mrb[0].mxu0 %v334
  %v417 = vpop.f32.mrb[0].mxu0
  %v418 = vadd.f32 0.0, %v417
  %v419 = vpop.f32.mrb[0].mxu0
  %420 = vdwg.mxu0
  %v422 = vsel %vm323, %v310, 0
  %v425 = vsel %vm323, %v311, 0
  %v428 = vsel %vm323, %v312, 0
  %v431 = vsel %vm323, %v313, 0
  %433 = vmatprep.subr.mxu0 0.0
  %434 = vmatpush1.msra.mxu0 %v319
  %435 = vmatprep.subr.mxu0 0.0
  %436 = vmatpush1.msra.mxu0 %v320
  %437 = vmatprep.subr.mxu0 0.0
  %438 = vmatpush1.msra.mxu0 0.0
  %439 = vmatprep.subr.mxu0 0.0
  %440 = vmatpush1.msra.mxu0 0.0
  %441 = vmatprep.subr.mxu0 0.0
  %442 = vmatpush1.msra.mxu0 0.0
  %443 = vmatprep.subr.mxu0 0.0
  %444 = vmatpush1.msra.mxu0 0.0
  %445 = vmatprep.subr.mxu0 0.0
  %446 = vmatpush1.msra.mxu0 0.0
  %447 = vmatprep.subr.mxu0 0.0
  %448 = vmatpush1.msra.mxu0 0.0
  %449 = vmatprep.subr.mxu0 0.0
  %450 = vmatpush1.msra.mxu0 0.0
  %451 = vmatprep.subr.mxu0 0.0
  %452 = vmatpush1.msra.mxu0 0.0
  %453 = vmatprep.subr.mxu0 0.0
  %454 = vmatpush1.msra.mxu0 0.0
  %455 = vmatprep.subr.mxu0 0.0
  %456 = vmatpush1.msra.mxu0 0.0
  %457 = vmatprep.subr.mxu0 0.0
  %458 = vmatpush1.msra.mxu0 0.0
  %459 = vmatprep.subr.mxu0 0.0
  %460 = vmatpush1.msra.mxu0 0.0
  %461 = vmatprep.subr.mxu0 0.0
  %462 = vmatpush1.msra.mxu0 0.0
  %463 = vmatprep.subr.mxu0 0.0
  %464 = vmatpush1.msra.mxu0 0.0
  %465 = vmatprep.subr.mxu0 0.0
  %466 = vmatpush1.msra.mxu0 0.0
  %467 = vmatprep.subr.mxu0 0.0
  %468 = vmatpush1.msra.mxu0 0.0
  %469 = vmatprep.subr.mxu0 0.0
  %470 = vmatpush1.msra.mxu0 0.0
  %471 = vmatprep.subr.mxu0 0.0
  %472 = vmatpush1.msra.mxu0 0.0
  %473 = vmatprep.subr.mxu0 0.0
  %474 = vmatpush1.msra.mxu0 0.0
  %475 = vmatprep.subr.mxu0 0.0
  %476 = vmatpush1.msra.mxu0 0.0
  %477 = vmatprep.subr.mxu0 0.0
  %478 = vmatpush1.msra.mxu0 0.0
  %479 = vmatprep.subr.mxu0 0.0
  %480 = vmatpush1.msra.mxu0 0.0
  %481 = vmatprep.subr.mxu0 0.0
  %482 = vmatpush1.msra.mxu0 0.0
  %483 = vmatprep.subr.mxu0 0.0
  %484 = vmatpush1.msra.mxu0 0.0
  %485 = vmatprep.subr.mxu0 0.0
  %486 = vmatpush1.msra.mxu0 0.0
  %487 = vmatprep.subr.mxu0 0.0
  %488 = vmatpush1.msra.mxu0 0.0
  %489 = vmatprep.subr.mxu0 0.0
  %490 = vmatpush1.msra.mxu0 0.0
  %491 = vmatprep.subr.mxu0 0.0
  %492 = vmatpush1.msra.mxu0 0.0
  %493 = vmatprep.subr.mxu0 0.0
  %494 = vmatpush1.msra.mxu0 0.0
  %495 = vmatprep.subr.mxu0 0.0
  %496 = vmatpush1.msra.mxu0 0.0
  %497 = vmatprep.mubr.f32.mxu0 0.0
  %498 = vmatmul.mubr.f32.gmra.mrb[0].mxu0 %v422
  %v499 = vpop.f32.mrb[0].mxu0
  %v500 = vadd.f32 %v403, %v499
  %v501 = vpop.f32.mrb[0].mxu0
  %502 = vmatprep.mubr.f32.mxu0 0.0
  %503 = vmatmul.mubr.f32.gmra.mrb[0].mxu0 %v425
  %v504 = vpop.f32.mrb[0].mxu0
  %v505 = vadd.f32 %v408, %v504
  %v506 = vpop.f32.mrb[0].mxu0
  %507 = vmatprep.mubr.f32.mxu0 0.0
  %508 = vmatmul.mubr.f32.gmra.mrb[0].mxu0 %v428
  %v509 = vpop.f32.mrb[0].mxu0
  %v510 = vadd.f32 %v413, %v509
  %v511 = vpop.f32.mrb[0].mxu0
  %512 = vmatprep.mubr.f32.mxu0 0.0
  %513 = vmatmul.mubr.f32.gmra.mrb[0].mxu0 %v431
  %v514 = vpop.f32.mrb[0].mxu0
  %v515 = vadd.f32 %v418, %v514
  %v516 = vpop.f32.mrb[0].mxu0
  %517 = vdwg.mxu0
  %vm518 = vcmp.gt.f32.partialorder %v500, 0.0
  %vm519 = vcmp.gt.f32.partialorder %v505, 0.0
  %vm520 = vcmp.gt.f32.partialorder %v510, 0.0
  %vm521 = vcmp.gt.f32.partialorder %v515, 0.0
  %v522 = vmul.f32 %v500, 0.01
  %v523 = vmul.f32 %v505, 0.01
  %v524 = vmul.f32 %v510, 0.01
  %v525 = vmul.f32 %v515, 0.01
  %v526 = vsel %vm518, %v500, %v522
  %v527 = vsel %vm519, %v505, %v523
  %v528 = vsel %vm520, %v510, %v524
  %v529 = vsel %vm521, %v515, %v525
  %531 = vset.pattern.permute.xlu0 0
  %532 = vperm.xlu0 %531, %v314
  %v533 = vpop.permute.xlu0 %532
  %536 = vset.pattern.permute.xlu0 0
  %537 = vperm.xlu0 %536, %v315
  %v538 = vpop.permute.xlu0 %537
  %541 = vset.pattern.permute.xlu0 0
  %542 = vperm.xlu0 %541, %v316
  %v543 = vpop.permute.xlu0 %542
  %546 = vset.pattern.permute.xlu0 0
  %547 = vperm.xlu0 %546, %v317
  %v548 = vpop.permute.xlu0 %547
  %v550 = vmul.f32 %v526, %v533
  %v551 = vmul.f32 %v527, %v538
  %v552 = vmul.f32 %v528, %v543
  %v553 = vmul.f32 %v529, %v548
  %v554 = vld [vmem:[#allocation2] sm:$0xff]
  %v555 = vld [vmem:[#allocation2 + $0x8] sm:$0xff]
  %556 = vmatprep.subr.mxu0 0.0
  %557 = vmatpush1.msra.mxu0 %v554
  %558 = vmatprep.subr.mxu0 0.0
  %559 = vmatpush1.msra.mxu0 %v555
  %560 = vmatprep.subr.mxu0 0.0
  %561 = vmatpush1.msra.mxu0 0.0
  %562 = vmatprep.subr.mxu0 0.0
  %563 = vmatpush1.msra.mxu0 0.0
  %564 = vmatprep.subr.mxu0 0.0
  %565 = vmatpush1.msra.mxu0 0.0
  %566 = vmatprep.subr.mxu0 0.0
  %567 = vmatpush1.msra.mxu0 0.0
  %568 = vmatprep.subr.mxu0 0.0
  %569 = vmatpush1.msra.mxu0 0.0
  %570 = vmatprep.subr.mxu0 0.0
  %571 = vmatpush1.msra.mxu0 0.0
  %572 = vmatprep.subr.mxu0 0.0
  %573 = vmatpush1.msra.mxu0 0.0
  %574 = vmatprep.subr.mxu0 0.0
  %575 = vmatpush1.msra.mxu0 0.0
  %576 = vmatprep.subr.mxu0 0.0
  %577 = vmatpush1.msra.mxu0 0.0
  %578 = vmatprep.subr.mxu0 0.0
  %579 = vmatpush1.msra.mxu0 0.0
  %580 = vmatprep.subr.mxu0 0.0
  %581 = vmatpush1.msra.mxu0 0.0
  %582 = vmatprep.subr.mxu0 0.0
  %583 = vmatpush1.msra.mxu0 0.0
  %584 = vmatprep.subr.mxu0 0.0
  %585 = vmatpush1.msra.mxu0 0.0
  %586 = vmatprep.subr.mxu0 0.0
  %587 = vmatpush1.msra.mxu0 0.0
  %588 = vmatprep.subr.mxu0 0.0
  %589 = vmatpush1.msra.mxu0 0.0
  %590 = vmatprep.subr.mxu0 0.0
  %591 = vmatpush1.msra.mxu0 0.0
  %592 = vmatprep.subr.mxu0 0.0
  %593 = vmatpush1.msra.mxu0 0.0
  %594 = vmatprep.subr.mxu0 0.0
  %595 = vmatpush1.msra.mxu0 0.0
  %596 = vmatprep.subr.mxu0 0.0
  %597 = vmatpush1.msra.mxu0 0.0
  %598 = vmatprep.subr.mxu0 0.0
  %599 = vmatpush1.msra.mxu0 0.0
  %600 = vmatprep.subr.mxu0 0.0
  %601 = vmatpush1.msra.mxu0 0.0
  %602 = vmatprep.subr.mxu0 0.0
  %603 = vmatpush1.msra.mxu0 0.0
  %604 = vmatprep.subr.mxu0 0.0
  %605 = vmatpush1.msra.mxu0 0.0
  %606 = vmatprep.subr.mxu0 0.0
  %607 = vmatpush1.msra.mxu0 0.0
  %608 = vmatprep.subr.mxu0 0.0
  %609 = vmatpush1.msra.mxu0 0.0
  %610 = vmatprep.subr.mxu0 0.0
  %611 = vmatpush1.msra.mxu0 0.0
  %612 = vmatprep.subr.mxu0 0.0
  %613 = vmatpush1.msra.mxu0 0.0
  %614 = vmatprep.subr.mxu0 0.0
  %615 = vmatpush1.msra.mxu0 0.0
  %616 = vmatprep.subr.mxu0 0.0
  %617 = vmatpush1.msra.mxu0 0.0
  %618 = vmatprep.subr.mxu0 0.0
  %619 = vmatpush1.msra.mxu0 0.0
  %620 = vmatprep.mubr.f32.mxu0 0.0
  %621 = vmatmul.mubr.f32.gmra.mrb[0].mxu0 %v325
  %v622 = vpop.f32.mrb[0].mxu0
  %v623 = vadd.f32 0.0, %v622
  %v624 = vpop.f32.mrb[0].mxu0
  %625 = vmatprep.mubr.f32.mxu0 0.0
  %626 = vmatmul.mubr.f32.gmra.mrb[0].mxu0 %v328
  %v627 = vpop.f32.mrb[0].mxu0
  %v628 = vadd.f32 0.0, %v627
  %v629 = vpop.f32.mrb[0].mxu0
  %630 = vmatprep.mubr.f32.mxu0 0.0
  %631 = vmatmul.mubr.f32.gmra.mrb[0].mxu0 %v331
  %v632 = vpop.f32.mrb[0].mxu0
  %v633 = vadd.f32 0.0, %v632
  %v634 = vpop.f32.mrb[0].mxu0
  %635 = vmatprep.mubr.f32.mxu0 0.0
  %636 = vmatmul.mubr.f32.gmra.mrb[0].mxu0 %v334
  %v637 = vpop.f32.mrb[0].mxu0
  %v638 = vadd.f32 0.0, %v637
  %v639 = vpop.f32.mrb[0].mxu0
  %640 = vdwg.mxu0
  %vm641 = vcmask 64512
  %v643 = vsel %vm641, %v550, 0
  %v646 = vsel %vm641, %v551, 0
  %v649 = vsel %vm641, %v552, 0
  %v652 = vsel %vm641, %v553, 0
  %654 = vmatprep.subr.mxu0 0.0
  %655 = vmatpush1.msra.mxu0 %v318
  %656 = vmatprep.subr.mxu0 0.0
  %657 = vmatpush1.msra.mxu0 0.0
  %658 = vmatprep.subr.mxu0 0.0
  %659 = vmatpush1.msra.mxu0 0.0
  %660 = vmatprep.subr.mxu0 0.0
  %661 = vmatpush1.msra.mxu0 0.0
  %662 = vmatprep.subr.mxu0 0.0
  %663 = vmatpush1.msra.mxu0 0.0
  %664 = vmatprep.subr.mxu0 0.0
  %665 = vmatpush1.msra.mxu0 0.0
  %666 = vmatprep.subr.mxu0 0.0
  %667 = vmatpush1.msra.mxu0 0.0
  %668 = vmatprep.subr.mxu0 0.0
  %669 = vmatpush1.msra.mxu0 0.0
  %670 = vmatprep.subr.mxu0 0.0
  %671 = vmatpush1.msra.mxu0 0.0
  %672 = vmatprep.subr.mxu0 0.0
  %673 = vmatpush1.msra.mxu0 0.0
  %674 = vmatprep.subr.mxu0 0.0
  %675 = vmatpush1.msra.mxu0 0.0
  %676 = vmatprep.subr.mxu0 0.0
  %677 = vmatpush1.msra.mxu0 0.0
  %678 = vmatprep.subr.mxu0 0.0
  %679 = vmatpush1.msra.mxu0 0.0
  %680 = vmatprep.subr.mxu0 0.0
  %681 = vmatpush1.msra.mxu0 0.0
  %682 = vmatprep.subr.mxu0 0.0
  %683 = vmatpush1.msra.mxu0 0.0
  %684 = vmatprep.subr.mxu0 0.0
  %685 = vmatpush1.msra.mxu0 0.0
  %686 = vmatprep.subr.mxu0 0.0
  %687 = vmatpush1.msra.mxu0 0.0
  %688 = vmatprep.subr.mxu0 0.0
  %689 = vmatpush1.msra.mxu0 0.0
  %690 = vmatprep.subr.mxu0 0.0
  %691 = vmatpush1.msra.mxu0 0.0
  %692 = vmatprep.subr.mxu0 0.0
  %693 = vmatpush1.msra.mxu0 0.0
  %694 = vmatprep.subr.mxu0 0.0
  %695 = vmatpush1.msra.mxu0 0.0
  %696 = vmatprep.subr.mxu0 0.0
  %697 = vmatpush1.msra.mxu0 0.0
  %698 = vmatprep.subr.mxu0 0.0
  %699 = vmatpush1.msra.mxu0 0.0
  %700 = vmatprep.subr.mxu0 0.0
  %701 = vmatpush1.msra.mxu0 0.0
  %702 = vmatprep.subr.mxu0 0.0
  %703 = vmatpush1.msra.mxu0 0.0
  %704 = vmatprep.subr.mxu0 0.0
  %705 = vmatpush1.msra.mxu0 0.0
  %706 = vmatprep.subr.mxu0 0.0
  %707 = vmatpush1.msra.mxu0 0.0
  %708 = vmatprep.subr.mxu0 0.0
  %709 = vmatpush1.msra.mxu0 0.0
  %710 = vmatprep.subr.mxu0 0.0
  %711 = vmatpush1.msra.mxu0 0.0
  %712 = vmatprep.subr.mxu0 0.0
  %713 = vmatpush1.msra.mxu0 0.0
  %714 = vmatprep.subr.mxu0 0.0
  %715 = vmatpush1.msra.mxu0 0.0
  %716 = vmatprep.subr.mxu0 0.0
  %717 = vmatpush1.msra.mxu0 0.0
  %718 = vmatprep.mubr.f32.mxu0 0.0
  %719 = vmatmul.mubr.f32.gmra.mrb[0].mxu0 %v643
  %v720 = vpop.f32.mrb[0].mxu0
  %v721 = vadd.f32 0.0, %v720
  %v722 = vpop.f32.mrb[0].mxu0
  %723 = vmatprep.mubr.f32.mxu0 0.0
  %724 = vmatmul.mubr.f32.gmra.mrb[0].mxu0 %v646
  %v725 = vpop.f32.mrb[0].mxu0
  %v726 = vadd.f32 0.0, %v725
  %v727 = vpop.f32.mrb[0].mxu0
  %728 = vmatprep.mubr.f32.mxu0 0.0
  %729 = vmatmul.mubr.f32.gmra.mrb[0].mxu0 %v649
  %v730 = vpop.f32.mrb[0].mxu0
  %v731 = vadd.f32 0.0, %v730
  %v732 = vpop.f32.mrb[0].mxu0
  %733 = vmatprep.mubr.f32.mxu0 0.0
  %734 = vmatmul.mubr.f32.gmra.mrb[0].mxu0 %v652
  %v735 = vpop.f32.mrb[0].mxu0
  %v736 = vadd.f32 0.0, %v735
  %v737 = vpop.f32.mrb[0].mxu0
  %738 = vdwg.mxu0
  %v739 = vmul.f32 %v721, %v623
  %v740 = vmul.f32 %v726, %v628
  %v741 = vmul.f32 %v731, %v633
  %v742 = vmul.f32 %v736, %v638
  %v743 = vld [vmem:[%s9] sm:$0xff]
  %v744 = vld [vmem:[%s9 + $0x8] sm:$0xff]
  %745 = vxpose.xlu0.b32.start [1/16] %v310, 128
  %746 = vxpose.xlu0.b32.cont [2/16] %v311, 128
  %747 = vxpose.xlu0.b32.cont [3/16] %v312, 128
  %748 = vxpose.xlu0.b32.cont [4/16] %v313, 128
  %749 = vxpose.xlu0.b32.cont [5/16] 0.0, 128
  %750 = vxpose.xlu0.b32.cont [6/16] 0.0, 128
  %751 = vxpose.xlu0.b32.cont [7/16] 0.0, 128
  %752 = vxpose.xlu0.b32.cont [8/16] 0.0, 128
  %753 = vxpose.xlu0.b32.cont [9/16] 0.0, 128
  %754 = vxpose.xlu0.b32.cont [10/16] 0.0, 128
  %755 = vxpose.xlu0.b32.cont [11/16] 0.0, 128
  %756 = vxpose.xlu0.b32.cont [12/16] 0.0, 128
  %757 = vxpose.xlu0.b32.cont [13/16] 0.0, 128
  %758 = vxpose.xlu0.b32.cont [14/16] 0.0, 128
  %759 = vxpose.xlu0.b32.cont [15/16] 0.0, 128
  %760 = vxpose.xlu0.b32.end [16/16] 0.0, 128
  %v761 = vpop.trf.xlu0
  %v762 = vpop.trf.xlu0
  %v763 = vpop.trf.xlu0
  %v764 = vpop.trf.xlu0
  %v765 = vpop.trf.xlu0
  %v766 = vpop.trf.xlu0
  %v767 = vpop.trf.xlu0
  %v768 = vpop.trf.xlu0
  %v769 = vpop.trf.xlu0
  %v770 = vpop.trf.xlu0
  %v771 = vpop.trf.xlu0
  %v772 = vpop.trf.xlu0
  %v773 = vpop.trf.xlu0
  %v774 = vpop.trf.xlu0
  %v775 = vpop.trf.xlu0
  %v776 = vpop.trf.xlu0
  %vm777 = vcmask 261120
  %v779 = vsel %vm777, %v761, 0
  %v782 = vsel %vm777, %v762, 0
  %784 = vmatprep.subr.mxu0 0.0
  %785 = vmatpush1.msra.mxu0 %v739
  %786 = vmatprep.subr.mxu0 0.0
  %787 = vmatpush1.msra.mxu0 %v740
  %788 = vmatprep.subr.mxu0 0.0
  %789 = vmatpush1.msra.mxu0 %v741
  %790 = vmatprep.subr.mxu0 0.0
  %791 = vmatpush1.msra.mxu0 %v742
  %792 = vmatprep.subr.mxu0 0.0
  %793 = vmatpush1.msra.mxu0 0.0
  %794 = vmatprep.subr.mxu0 0.0
  %795 = vmatpush1.msra.mxu0 0.0
  %796 = vmatprep.subr.mxu0 0.0
  %797 = vmatpush1.msra.mxu0 0.0
  %798 = vmatprep.subr.mxu0 0.0
  %799 = vmatpush1.msra.mxu0 0.0
  %800 = vmatprep.subr.mxu0 0.0
  %801 = vmatpush1.msra.mxu0 0.0
  %802 = vmatprep.subr.mxu0 0.0
  %803 = vmatpush1.msra.mxu0 0.0
  %804 = vmatprep.subr.mxu0 0.0
  %805 = vmatpush1.msra.mxu0 0.0
  %806 = vmatprep.subr.mxu0 0.0
  %807 = vmatpush1.msra.mxu0 0.0
  %808 = vmatprep.subr.mxu0 0.0
  %809 = vmatpush1.msra.mxu0 0.0
  %810 = vmatprep.subr.mxu0 0.0
  %811 = vmatpush1.msra.mxu0 0.0
  %812 = vmatprep.subr.mxu0 0.0
  %813 = vmatpush1.msra.mxu0 0.0
  %814 = vmatprep.subr.mxu0 0.0
  %815 = vmatpush1.msra.mxu0 0.0
  %816 = vmatprep.subr.mxu0 0.0
  %817 = vmatpush1.msra.mxu0 0.0
  %818 = vmatprep.subr.mxu0 0.0
  %819 = vmatpush1.msra.mxu0 0.0
  %820 = vmatprep.subr.mxu0 0.0
  %821 = vmatpush1.msra.mxu0 0.0
  %822 = vmatprep.subr.mxu0 0.0
  %823 = vmatpush1.msra.mxu0 0.0
  %824 = vmatprep.subr.mxu0 0.0
  %825 = vmatpush1.msra.mxu0 0.0
  %826 = vmatprep.subr.mxu0 0.0
  %827 = vmatpush1.msra.mxu0 0.0
  %828 = vmatprep.subr.mxu0 0.0
  %829 = vmatpush1.msra.mxu0 0.0
  %830 = vmatprep.subr.mxu0 0.0
  %831 = vmatpush1.msra.mxu0 0.0
  %832 = vmatprep.subr.mxu0 0.0
  %833 = vmatpush1.msra.mxu0 0.0
  %834 = vmatprep.subr.mxu0 0.0
  %835 = vmatpush1.msra.mxu0 0.0
  %836 = vmatprep.subr.mxu0 0.0
  %837 = vmatpush1.msra.mxu0 0.0
  %838 = vmatprep.subr.mxu0 0.0
  %839 = vmatpush1.msra.mxu0 0.0
  %840 = vmatprep.subr.mxu0 0.0
  %841 = vmatpush1.msra.mxu0 0.0
  %842 = vmatprep.subr.mxu0 0.0
  %843 = vmatpush1.msra.mxu0 0.0
  %844 = vmatprep.subr.mxu0 0.0
  %845 = vmatpush1.msra.mxu0 0.0
  %846 = vmatprep.subr.mxu0 0.0
  %847 = vmatpush1.msra.mxu0 0.0
  %848 = vmatprep.mubr.f32.mxu0 0.0
  %849 = vmatmul.mubr.f32.gmra.mrb[0].mxu0 %v779
  %v850 = vpop.f32.mrb[0].mxu0
  %v851 = vadd.f32 0.0, %v850
  %v852 = vpop.f32.mrb[0].mxu0
  %853 = vmatprep.mubr.f32.mxu0 0.0
  %854 = vmatmul.mubr.f32.gmra.mrb[0].mxu0 %v782
  %v855 = vpop.f32.mrb[0].mxu0
  %v856 = vadd.f32 0.0, %v855
  %v857 = vpop.f32.mrb[0].mxu0
  %858 = vdwg.mxu0
  %v859 = vadd.f32 %v743, %v851
  %v860 = vadd.f32 %v744, %v856
  %861 = vst.msk [vmem:[%s9] sm:$0xff] %vm323, %v859
  %862 = vst.msk [vmem:[%s9 + $0x8] sm:$0xff] %vm323, %v860
  // Predicated region
  $region42: #{gat_forward.10} parent=0 // pred_check
    _
  $region43: #{gat_forward.10} parent=0 // pred_check_branch
    %864 = sbr.rel (0) target = $region45
  $region44: #{gat_forward.10} parent=0 // pred_region
    _
  $region45: #{gat_forward.10} parent=0 // pred_fallthru
    _
  // Predicated region
  $region46: #{gat_forward.10} parent=0 // pred_check
    _
  $region47: #{gat_forward.10} parent=0 // pred_check_branch
    %866 = sbr.rel (0) target = $region49
  $region48: #{gat_forward.10} parent=0 // pred_region
    _
  $region49: #{gat_forward.10} parent=0 // pred_fallthru
    _

// kernel: gat_forward.6
$region0: #{gat_forward.6}
  #allocation0 [shape = 'u32[]', space=smem, size = 0x4, offset = 0x4, fixed_abs, tag = 'smem constant byte address 0x4 - core index']
  #allocation1 [shape = 'u32[144,128]{1,0:T(1,128)}', space=vmem, size = 0x12000, scoped, tag = 'internal scratch']
  #allocation2 [shape = 'f32[1,16,16]{2,1,0:T(8,128)}', space=vmem, size = 0x2000, scoped, tag = 'scratch operand']
  #allocation3 [shape = 'f32[1,16,8]{2,1,0:T(8,128)}', space=vmem, size = 0x2000, scoped, tag = 'scratch operand']
  #allocation4 [shape = 'f32[1,16,8]{2,1,0:T(8,128)}', space=vmem, size = 0x2000, scoped, tag = 'scratch operand']
  %s0 = inlined_call_operand.vmem [shape: f32[1,16,8], index: 0, kind: input, shape index: {}]
  %s1 = inlined_call_operand.vmem [shape: f32[8,16], index: 1, kind: input, shape index: {}]
  %s2 = inlined_call_operand.vmem [shape: f32[1,16], index: 2, kind: input, shape index: {}]
  %s3 = inlined_call_operand.vmem [shape: f32[16,8], index: 3, kind: input, shape index: {}]
  %s4 = inlined_call_operand.vmem [shape: f32[16,8], index: 4, kind: input, shape index: {}]
  %s5 = inlined_call_operand.vmem [shape: f32[8,16], index: 5, kind: input, shape index: {}]
  %s6 = inlined_call_operand.vmem [shape: bf16[32,16], index: 6, kind: input, shape index: {}]
  %s7 = inlined_call_operand.vmem [shape: bf16[32,16], index: 7, kind: input, shape index: {}]
  %s8 = inlined_call_operand.vmem [shape: f32[32,1], index: 8, kind: input, shape index: {}]
  %s9 = inlined_call_operand.vmem [shape: f32[16,16], index: 9, kind: output, shape index: {}]
  %s10 = sld [smem:[#allocation0]]
  $region54: #{gat_forward.6} parent=0
    _
  %s12 = ssub.s32 1, %s10
  %s13 = scalar_select 0, %s12, %s10
  // Predicated region
  $region2: #{gat_forward.6} parent=0 // pred_check
    _
  $region3: #{gat_forward.6} parent=0 // pred_check_branch
    %15 = sbr.rel (0) target = $region5
  $region4: #{gat_forward.6} parent=0 // pred_region
    _
  $region5: #{gat_forward.6} parent=0 // pred_fallthru
    _
  // Predicated region
  $region6: #{gat_forward.6} parent=0 // pred_check
    _
  $region7: #{gat_forward.6} parent=0 // pred_check_branch
    %17 = sbr.rel (0) target = $region9
  $region8: #{gat_forward.6} parent=0 // pred_region
    _
  $region9: #{gat_forward.6} parent=0 // pred_fallthru
    _
  // Predicated region
  $region10: #{gat_forward.6} parent=0 // pred_check
    _
  $region11: #{gat_forward.6} parent=0 // pred_check_branch
    %19 = sbr.rel (0) target = $region13
  $region12: #{gat_forward.6} parent=0 // pred_region
    _
  $region13: #{gat_forward.6} parent=0 // pred_fallthru
    _
  // Predicated region
  $region14: #{gat_forward.6} parent=0 // pred_check
    _
  $region15: #{gat_forward.6} parent=0 // pred_check_branch
    %21 = sbr.rel (0) target = $region17
  $region16: #{gat_forward.6} parent=0 // pred_region
    _
  $region17: #{gat_forward.6} parent=0 // pred_fallthru
    _
  // Predicated region
  $region18: #{gat_forward.6} parent=0 // pred_check
    _
  $region19: #{gat_forward.6} parent=0 // pred_check_branch
    %23 = sbr.rel (0) target = $region21
  $region20: #{gat_forward.6} parent=0 // pred_region
    _
  $region21: #{gat_forward.6} parent=0 // pred_fallthru
    _
  // Predicated region
  $region22: #{gat_forward.6} parent=0 // pred_check
    _
  $region23: #{gat_forward.6} parent=0 // pred_check_branch
    %25 = sbr.rel (0) target = $region25
  $region24: #{gat_forward.6} parent=0 // pred_region
    _
  $region25: #{gat_forward.6} parent=0 // pred_fallthru
    _
  // Predicated region
  $region26: #{gat_forward.6} parent=0 // pred_check
    _
  $region27: #{gat_forward.6} parent=0 // pred_check_branch
    %27 = sbr.rel (0) target = $region29
  $region28: #{gat_forward.6} parent=0 // pred_region
    _
  $region29: #{gat_forward.6} parent=0 // pred_fallthru
    _
  // Predicated region
  $region30: #{gat_forward.6} parent=0 // pred_check
    _
  $region31: #{gat_forward.6} parent=0 // pred_check_branch
    %29 = sbr.rel (0) target = $region33
  $region32: #{gat_forward.6} parent=0 // pred_region
    _
  $region33: #{gat_forward.6} parent=0 // pred_fallthru
    _
  // Predicated region
  $region34: #{gat_forward.6} parent=0 // pred_check
    _
  $region35: #{gat_forward.6} parent=0 // pred_check_branch
    %31 = sbr.rel (0) target = $region37
  $region36: #{gat_forward.6} parent=0 // pred_region
    _
  $region37: #{gat_forward.6} parent=0 // pred_fallthru
    _
  %p32 = scmp.eq.s32.totalorder 0, 0
  // Predicated region
  $region38: #{gat_forward.6} parent=0 // pred_check
    %p33 = pneg %p32
  $region39: #{gat_forward.6} parent=0 // pred_check_branch
    %35 = sbr.rel (%p33) target = $region41
  $region40: #{gat_forward.6} parent=0 // pred_region
    %vm36 = vcmask 130048
    %37 = vst.msk [vmem:[%s9] sm:$0xff] %vm36, 0.0
    %38 = vst.msk [vmem:[%s9 + $0x8] sm:$0xff] %vm36, 0.0
    %v39 = vld [vmem:[%s1] sm:$0xff]
    %v40 = vld [vmem:[%s2] sm:$0x1]
    %v41 = vld [vmem:[%s3] sm:$0xff]
    %v42 = vld [vmem:[%s3 + $0x8] sm:$0xff]
    %v43 = vld [vmem:[%s4] sm:$0xff]
    %v44 = vld [vmem:[%s4 + $0x8] sm:$0xff]
    %v45 = vld [vmem:[%s0] sm:$0xff]
    %v46 = vld [vmem:[%s0 + $0x8] sm:$0xff]
    %v48 = vlaneseq
    %v49 = vshrl.u32 %v48, 7
    %v50 = vsub.s32 0, %v49
    %v51 = vrot.slane %v40, %v50
    %vm53 = vcmask 64512
    %v55 = vsel %vm53, %v45, 0
    %v58 = vsel %vm53, %v46, 0
    %60 = vmatprep.subr.mxu0 0.0
    %61 = vmatpush1.msra.mxu0 %v39
    %62 = vmatprep.subr.mxu0 0.0
    %63 = vmatpush1.msra.mxu0 0.0
    %64 = vmatprep.subr.mxu0 0.0
    %65 = vmatpush1.msra.mxu0 0.0
    %66 = vmatprep.subr.mxu0 0.0
    %67 = vmatpush1.msra.mxu0 0.0
    %68 = vmatprep.subr.mxu0 0.0
    %69 = vmatpush1.msra.mxu0 0.0
    %70 = vmatprep.subr.mxu0 0.0
    %71 = vmatpush1.msra.mxu0 0.0
    %72 = vmatprep.subr.mxu0 0.0
    %73 = vmatpush1.msra.mxu0 0.0
    %74 = vmatprep.subr.mxu0 0.0
    %75 = vmatpush1.msra.mxu0 0.0
    %76 = vmatprep.subr.mxu0 0.0
    %77 = vmatpush1.msra.mxu0 0.0
    %78 = vmatprep.subr.mxu0 0.0
    %79 = vmatpush1.msra.mxu0 0.0
    %80 = vmatprep.subr.mxu0 0.0
    %81 = vmatpush1.msra.mxu0 0.0
    %82 = vmatprep.subr.mxu0 0.0
    %83 = vmatpush1.msra.mxu0 0.0
    %84 = vmatprep.subr.mxu0 0.0
    %85 = vmatpush1.msra.mxu0 0.0
    %86 = vmatprep.subr.mxu0 0.0
    %87 = vmatpush1.msra.mxu0 0.0
    %88 = vmatprep.subr.mxu0 0.0
    %89 = vmatpush1.msra.mxu0 0.0
    %90 = vmatprep.subr.mxu0 0.0
    %91 = vmatpush1.msra.mxu0 0.0
    %92 = vmatprep.subr.mxu0 0.0
    %93 = vmatpush1.msra.mxu0 0.0
    %94 = vmatprep.subr.mxu0 0.0
    %95 = vmatpush1.msra.mxu0 0.0
    %96 = vmatprep.subr.mxu0 0.0
    %97 = vmatpush1.msra.mxu0 0.0
    %98 = vmatprep.subr.mxu0 0.0
    %99 = vmatpush1.msra.mxu0 0.0
    %100 = vmatprep.subr.mxu0 0.0
    %101 = vmatpush1.msra.mxu0 0.0
    %102 = vmatprep.subr.mxu0 0.0
    %103 = vmatpush1.msra.mxu0 0.0
    %104 = vmatprep.subr.mxu0 0.0
    %105 = vmatpush1.msra.mxu0 0.0
    %106 = vmatprep.subr.mxu0 0.0
    %107 = vmatpush1.msra.mxu0 0.0
    %108 = vmatprep.subr.mxu0 0.0
    %109 = vmatpush1.msra.mxu0 0.0
    %110 = vmatprep.subr.mxu0 0.0
    %111 = vmatpush1.msra.mxu0 0.0
    %112 = vmatprep.subr.mxu0 0.0
    %113 = vmatpush1.msra.mxu0 0.0
    %114 = vmatprep.subr.mxu0 0.0
    %115 = vmatpush1.msra.mxu0 0.0
    %116 = vmatprep.subr.mxu0 0.0
    %117 = vmatpush1.msra.mxu0 0.0
    %118 = vmatprep.subr.mxu0 0.0
    %119 = vmatpush1.msra.mxu0 0.0
    %120 = vmatprep.subr.mxu0 0.0
    %121 = vmatpush1.msra.mxu0 0.0
    %122 = vmatprep.subr.mxu0 0.0
    %123 = vmatpush1.msra.mxu0 0.0
    %124 = vmatprep.mubr.f32.mxu0 0.0
    %125 = vmatmul.mubr.f32.gmra.mrb[0].mxu0 %v55
    %v126 = vpop.f32.mrb[0].mxu0
    %v127 = vadd.f32 %v51, %v126
    %v128 = vpop.f32.mrb[0].mxu0
    %129 = vmatprep.mubr.f32.mxu0 0.0
    %130 = vmatmul.mubr.f32.gmra.mrb[0].mxu0 %v58
    %v131 = vpop.f32.mrb[0].mxu0
    %v132 = vadd.f32 %v51, %v131
    %v133 = vpop.f32.mrb[0].mxu0
    %134 = vdwg.mxu0
    %135 = vst.msk [vmem:[#allocation2] sm:$0xff] %vm36, %v127
    %136 = vst.msk [vmem:[#allocation2 + $0x8] sm:$0xff] %vm36, %v132
    %v138 = vsel %vm36, %v127, 0
    %v141 = vsel %vm36, %v132, 0
    %143 = vmatprep.subr.mxu0 0.0
    %144 = vmatpush1.msra.mxu0 %v41
    %145 = vmatprep.subr.mxu0 0.0
    %146 = vmatpush1.msra.mxu0 %v42
    %147 = vmatprep.subr.mxu0 0.0
    %148 = vmatpush1.msra.mxu0 0.0
    %149 = vmatprep.subr.mxu0 0.0
    %150 = vmatpush1.msra.mxu0 0.0
    %151 = vmatprep.subr.mxu0 0.0
    %152 = vmatpush1.msra.mxu0 0.0
    %153 = vmatprep.subr.mxu0 0.0
    %154 = vmatpush1.msra.mxu0 0.0
    %155 = vmatprep.subr.mxu0 0.0
    %156 = vmatpush1.msra.mxu0 0.0
    %157 = vmatprep.subr.mxu0 0.0
    %158 = vmatpush1.msra.mxu0 0.0
    %159 = vmatprep.subr.mxu0 0.0
    %160 = vmatpush1.msra.mxu0 0.0
    %161 = vmatprep.subr.mxu0 0.0
    %162 = vmatpush1.msra.mxu0 0.0
    %163 = vmatprep.subr.mxu0 0.0
    %164 = vmatpush1.msra.mxu0 0.0
    %165 = vmatprep.subr.mxu0 0.0
    %166 = vmatpush1.msra.mxu0 0.0
    %167 = vmatprep.subr.mxu0 0.0
    %168 = vmatpush1.msra.mxu0 0.0
    %169 = vmatprep.subr.mxu0 0.0
    %170 = vmatpush1.msra.mxu0 0.0
    %171 = vmatprep.subr.mxu0 0.0
    %172 = vmatpush1.msra.mxu0 0.0
    %173 = vmatprep.subr.mxu0 0.0
    %174 = vmatpush1.msra.mxu0 0.0
    %175 = vmatprep.subr.mxu0 0.0
    %176 = vmatpush1.msra.mxu0 0.0
    %177 = vmatprep.subr.mxu0 0.0
    %178 = vmatpush1.msra.mxu0 0.0
    %179 = vmatprep.subr.mxu0 0.0
    %180 = vmatpush1.msra.mxu0 0.0
    %181 = vmatprep.subr.mxu0 0.0
    %182 = vmatpush1.msra.mxu0 0.0
    %183 = vmatprep.subr.mxu0 0.0
    %184 = vmatpush1.msra.mxu0 0.0
    %185 = vmatprep.subr.mxu0 0.0
    %186 = vmatpush1.msra.mxu0 0.0
    %187 = vmatprep.subr.mxu0 0.0
    %188 = vmatpush1.msra.mxu0 0.0
    %189 = vmatprep.subr.mxu0 0.0
    %190 = vmatpush1.msra.mxu0 0.0
    %191 = vmatprep.subr.mxu0 0.0
    %192 = vmatpush1.msra.mxu0 0.0
    %193 = vmatprep.subr.mxu0 0.0
    %194 = vmatpush1.msra.mxu0 0.0
    %195 = vmatprep.subr.mxu0 0.0
    %196 = vmatpush1.msra.mxu0 0.0
    %197 = vmatprep.subr.mxu0 0.0
    %198 = vmatpush1.msra.mxu0 0.0
    %199 = vmatprep.subr.mxu0 0.0
    %200 = vmatpush1.msra.mxu0 0.0
    %201 = vmatprep.subr.mxu0 0.0
    %202 = vmatpush1.msra.mxu0 0.0
    %203 = vmatprep.subr.mxu0 0.0
    %204 = vmatpush1.msra.mxu0 0.0
    %205 = vmatprep.subr.mxu0 0.0
    %206 = vmatpush1.msra.mxu0 0.0
    %207 = vmatprep.mubr.f32.mxu0 0.0
    %208 = vmatmul.mubr.f32.gmra.mrb[0].mxu0 %v138
    %v209 = vpop.f32.mrb[0].mxu0
    %v210 = vadd.f32 0.0, %v209
    %v211 = vpop.f32.mrb[0].mxu0
    %212 = vmatprep.mubr.f32.mxu0 0.0
    %213 = vmatmul.mubr.f32.gmra.mrb[0].mxu0 %v141
    %v214 = vpop.f32.mrb[0].mxu0
    %v215 = vadd.f32 0.0, %v214
    %v216 = vpop.f32.mrb[0].mxu0
    %217 = vdwg.mxu0
    %218 = vst.msk [vmem:[#allocation3] sm:$0xff] %vm53, %v210
    %219 = vst.msk [vmem:[#allocation3 + $0x8] sm:$0xff] %vm53, %v215
    %220 = vmatprep.subr.mxu0 0.0
    %221 = vmatpush1.msra.mxu0 %v43
    %222 = vmatprep.subr.mxu0 0.0
    %223 = vmatpush1.msra.mxu0 %v44
    %224 = vmatprep.subr.mxu0 0.0
    %225 = vmatpush1.msra.mxu0 0.0
    %226 = vmatprep.subr.mxu0 0.0
    %227 = vmatpush1.msra.mxu0 0.0
    %228 = vmatprep.subr.mxu0 0.0
    %229 = vmatpush1.msra.mxu0 0.0
    %230 = vmatprep.subr.mxu0 0.0
    %231 = vmatpush1.msra.mxu0 0.0
    %232 = vmatprep.subr.mxu0 0.0
    %233 = vmatpush1.msra.mxu0 0.0
    %234 = vmatprep.subr.mxu0 0.0
    %235 = vmatpush1.msra.mxu0 0.0
    %236 = vmatprep.subr.mxu0 0.0
    %237 = vmatpush1.msra.mxu0 0.0
    %238 = vmatprep.subr.mxu0 0.0
    %239 = vmatpush1.msra.mxu0 0.0
    %240 = vmatprep.subr.mxu0 0.0
    %241 = vmatpush1.msra.mxu0 0.0
    %242 = vmatprep.subr.mxu0 0.0
    %243 = vmatpush1.msra.mxu0 0.0
    %244 = vmatprep.subr.mxu0 0.0
    %245 = vmatpush1.msra.mxu0 0.0
    %246 = vmatprep.subr.mxu0 0.0
    %247 = vmatpush1.msra.mxu0 0.0
    %248 = vmatprep.subr.mxu0 0.0
    %249 = vmatpush1.msra.mxu0 0.0
    %250 = vmatprep.subr.mxu0 0.0
    %251 = vmatpush1.msra.mxu0 0.0
    %252 = vmatprep.subr.mxu0 0.0
    %253 = vmatpush1.msra.mxu0 0.0
    %254 = vmatprep.subr.mxu0 0.0
    %255 = vmatpush1.msra.mxu0 0.0
    %256 = vmatprep.subr.mxu0 0.0
    %257 = vmatpush1.msra.mxu0 0.0
    %258 = vmatprep.subr.mxu0 0.0
    %259 = vmatpush1.msra.mxu0 0.0
    %260 = vmatprep.subr.mxu0 0.0
    %261 = vmatpush1.msra.mxu0 0.0
    %262 = vmatprep.subr.mxu0 0.0
    %263 = vmatpush1.msra.mxu0 0.0
    %264 = vmatprep.subr.mxu0 0.0
    %265 = vmatpush1.msra.mxu0 0.0
    %266 = vmatprep.subr.mxu0 0.0
    %267 = vmatpush1.msra.mxu0 0.0
    %268 = vmatprep.subr.mxu0 0.0
    %269 = vmatpush1.msra.mxu0 0.0
    %270 = vmatprep.subr.mxu0 0.0
    %271 = vmatpush1.msra.mxu0 0.0
    %272 = vmatprep.subr.mxu0 0.0
    %273 = vmatpush1.msra.mxu0 0.0
    %274 = vmatprep.subr.mxu0 0.0
    %275 = vmatpush1.msra.mxu0 0.0
    %276 = vmatprep.subr.mxu0 0.0
    %277 = vmatpush1.msra.mxu0 0.0
    %278 = vmatprep.subr.mxu0 0.0
    %279 = vmatpush1.msra.mxu0 0.0
    %280 = vmatprep.subr.mxu0 0.0
    %281 = vmatpush1.msra.mxu0 0.0
    %282 = vmatprep.subr.mxu0 0.0
    %283 = vmatpush1.msra.mxu0 0.0
    %284 = vmatprep.mubr.f32.mxu0 0.0
    %285 = vmatmul.mubr.f32.gmra.mrb[0].mxu0 %v138
    %v286 = vpop.f32.mrb[0].mxu0
    %v287 = vadd.f32 0.0, %v286
    %v288 = vpop.f32.mrb[0].mxu0
    %289 = vmatprep.mubr.f32.mxu0 0.0
    %290 = vmatmul.mubr.f32.gmra.mrb[0].mxu0 %v141
    %v291 = vpop.f32.mrb[0].mxu0
    %v292 = vadd.f32 0.0, %v291
    %v293 = vpop.f32.mrb[0].mxu0
    %294 = vdwg.mxu0
    %295 = vst.msk [vmem:[#allocation4] sm:$0xff] %vm53, %v287
    %296 = vst.msk [vmem:[#allocation4 + $0x8] sm:$0xff] %vm53, %v292
  $region41: #{gat_forward.6} parent=0 // pred_fallthru
    _
  %v297 = vld [vmem:[%s6] sm:$0xf]
  %v298 = vld [vmem:[%s6 + $0x4] sm:$0xf]
  %v299 = vld [vmem:[%s6 + $0x8] sm:$0xf]
  %v300 = vld [vmem:[%s6 + $0xc] sm:$0xf]
  %v301 = vunpack.c.l.bf16 %v297
  %v302 = vunpack.c.l.bf16 %v298
  %v303 = vunpack.c.l.bf16 %v299
  %v304 = vunpack.c.l.bf16 %v300
  %v305 = vld [vmem:[%s7] sm:$0xf]
  %v306 = vld [vmem:[%s7 + $0x4] sm:$0xf]
  %v307 = vld [vmem:[%s7 + $0x8] sm:$0xf]
  %v308 = vld [vmem:[%s7 + $0xc] sm:$0xf]
  %v309 = vunpack.c.l.bf16 %v305
  %v310 = vunpack.c.l.bf16 %v306
  %v311 = vunpack.c.l.bf16 %v307
  %v312 = vunpack.c.l.bf16 %v308
  %v313 = vld [vmem:[%s8] sm:$0xff]
  %v314 = vld [vmem:[%s8 + $0x8] sm:$0xff]
  %v315 = vld [vmem:[%s8 + $0x10] sm:$0xff]
  %v316 = vld [vmem:[%s8 + $0x18] sm:$0xff]
  %v317 = vld [vmem:[%s5] sm:$0xff]
  %v318 = vld [vmem:[#allocation3] sm:$0xff]
  %v319 = vld [vmem:[#allocation3 + $0x8] sm:$0xff]
  %v320 = vld [vmem:[#allocation4] sm:$0xff]
  %v321 = vld [vmem:[#allocation4 + $0x8] sm:$0xff]
  %vm322 = vcmask 130048
  %v324 = vsel %vm322, %v301, 0
  %v327 = vsel %vm322, %v302, 0
  %v330 = vsel %vm322, %v303, 0
  %v333 = vsel %vm322, %v304, 0
  %335 = vmatprep.subr.mxu0 0.0
  %336 = vmatpush1.msra.mxu0 %v320
  %337 = vmatprep.subr.mxu0 0.0
  %338 = vmatpush1.msra.mxu0 %v321
  %339 = vmatprep.subr.mxu0 0.0
  %340 = vmatpush1.msra.mxu0 0.0
  %341 = vmatprep.subr.mxu0 0.0
  %342 = vmatpush1.msra.mxu0 0.0
  %343 = vmatprep.subr.mxu0 0.0
  %344 = vmatpush1.msra.mxu0 0.0
  %345 = vmatprep.subr.mxu0 0.0
  %346 = vmatpush1.msra.mxu0 0.0
  %347 = vmatprep.subr.mxu0 0.0
  %348 = vmatpush1.msra.mxu0 0.0
  %349 = vmatprep.subr.mxu0 0.0
  %350 = vmatpush1.msra.mxu0 0.0
  %351 = vmatprep.subr.mxu0 0.0
  %352 = vmatpush1.msra.mxu0 0.0
  %353 = vmatprep.subr.mxu0 0.0
  %354 = vmatpush1.msra.mxu0 0.0
  %355 = vmatprep.subr.mxu0 0.0
  %356 = vmatpush1.msra.mxu0 0.0
  %357 = vmatprep.subr.mxu0 0.0
  %358 = vmatpush1.msra.mxu0 0.0
  %359 = vmatprep.subr.mxu0 0.0
  %360 = vmatpush1.msra.mxu0 0.0
  %361 = vmatprep.subr.mxu0 0.0
  %362 = vmatpush1.msra.mxu0 0.0
  %363 = vmatprep.subr.mxu0 0.0
  %364 = vmatpush1.msra.mxu0 0.0
  %365 = vmatprep.subr.mxu0 0.0
  %366 = vmatpush1.msra.mxu0 0.0
  %367 = vmatprep.subr.mxu0 0.0
  %368 = vmatpush1.msra.mxu0 0.0
  %369 = vmatprep.subr.mxu0 0.0
  %370 = vmatpush1.msra.mxu0 0.0
  %371 = vmatprep.subr.mxu0 0.0
  %372 = vmatpush1.msra.mxu0 0.0
  %373 = vmatprep.subr.mxu0 0.0
  %374 = vmatpush1.msra.mxu0 0.0
  %375 = vmatprep.subr.mxu0 0.0
  %376 = vmatpush1.msra.mxu0 0.0
  %377 = vmatprep.subr.mxu0 0.0
  %378 = vmatpush1.msra.mxu0 0.0
  %379 = vmatprep.subr.mxu0 0.0
  %380 = vmatpush1.msra.mxu0 0.0
  %381 = vmatprep.subr.mxu0 0.0
  %382 = vmatpush1.msra.mxu0 0.0
  %383 = vmatprep.subr.mxu0 0.0
  %384 = vmatpush1.msra.mxu0 0.0
  %385 = vmatprep.subr.mxu0 0.0
  %386 = vmatpush1.msra.mxu0 0.0
  %387 = vmatprep.subr.mxu0 0.0
  %388 = vmatpush1.msra.mxu0 0.0
  %389 = vmatprep.subr.mxu0 0.0
  %390 = vmatpush1.msra.mxu0 0.0
  %391 = vmatprep.subr.mxu0 0.0
  %392 = vmatpush1.msra.mxu0 0.0
  %393 = vmatprep.subr.mxu0 0.0
  %394 = vmatpush1.msra.mxu0 0.0
  %395 = vmatprep.subr.mxu0 0.0
  %396 = vmatpush1.msra.mxu0 0.0
  %397 = vmatprep.subr.mxu0 0.0
  %398 = vmatpush1.msra.mxu0 0.0
  %399 = vmatprep.mubr.f32.mxu0 0.0
  %400 = vmatmul.mubr.f32.gmra.mrb[0].mxu0 %v324
  %v401 = vpop.f32.mrb[0].mxu0
  %v402 = vadd.f32 0.0, %v401
  %v403 = vpop.f32.mrb[0].mxu0
  %404 = vmatprep.mubr.f32.mxu0 0.0
  %405 = vmatmul.mubr.f32.gmra.mrb[0].mxu0 %v327
  %v406 = vpop.f32.mrb[0].mxu0
  %v407 = vadd.f32 0.0, %v406
  %v408 = vpop.f32.mrb[0].mxu0
  %409 = vmatprep.mubr.f32.mxu0 0.0
  %410 = vmatmul.mubr.f32.gmra.mrb[0].mxu0 %v330
  %v411 = vpop.f32.mrb[0].mxu0
  %v412 = vadd.f32 0.0, %v411
  %v413 = vpop.f32.mrb[0].mxu0
  %414 = vmatprep.mubr.f32.mxu0 0.0
  %415 = vmatmul.mubr.f32.gmra.mrb[0].mxu0 %v333
  %v416 = vpop.f32.mrb[0].mxu0
  %v417 = vadd.f32 0.0, %v416
  %v418 = vpop.f32.mrb[0].mxu0
  %419 = vdwg.mxu0
  %v421 = vsel %vm322, %v309, 0
  %v424 = vsel %vm322, %v310, 0
  %v427 = vsel %vm322, %v311, 0
  %v430 = vsel %vm322, %v312, 0
  %432 = vmatprep.subr.mxu0 0.0
  %433 = vmatpush1.msra.mxu0 %v318
  %434 = vmatprep.subr.mxu0 0.0
  %435 = vmatpush1.msra.mxu0 %v319
  %436 = vmatprep.subr.mxu0 0.0
  %437 = vmatpush1.msra.mxu0 0.0
  %438 = vmatprep.subr.mxu0 0.0
  %439 = vmatpush1.msra.mxu0 0.0
  %440 = vmatprep.subr.mxu0 0.0
  %441 = vmatpush1.msra.mxu0 0.0
  %442 = vmatprep.subr.mxu0 0.0
  %443 = vmatpush1.msra.mxu0 0.0
  %444 = vmatprep.subr.mxu0 0.0
  %445 = vmatpush1.msra.mxu0 0.0
  %446 = vmatprep.subr.mxu0 0.0
  %447 = vmatpush1.msra.mxu0 0.0
  %448 = vmatprep.subr.mxu0 0.0
  %449 = vmatpush1.msra.mxu0 0.0
  %450 = vmatprep.subr.mxu0 0.0
  %451 = vmatpush1.msra.mxu0 0.0
  %452 = vmatprep.subr.mxu0 0.0
  %453 = vmatpush1.msra.mxu0 0.0
  %454 = vmatprep.subr.mxu0 0.0
  %455 = vmatpush1.msra.mxu0 0.0
  %456 = vmatprep.subr.mxu0 0.0
  %457 = vmatpush1.msra.mxu0 0.0
  %458 = vmatprep.subr.mxu0 0.0
  %459 = vmatpush1.msra.mxu0 0.0
  %460 = vmatprep.subr.mxu0 0.0
  %461 = vmatpush1.msra.mxu0 0.0
  %462 = vmatprep.subr.mxu0 0.0
  %463 = vmatpush1.msra.mxu0 0.0
  %464 = vmatprep.subr.mxu0 0.0
  %465 = vmatpush1.msra.mxu0 0.0
  %466 = vmatprep.subr.mxu0 0.0
  %467 = vmatpush1.msra.mxu0 0.0
  %468 = vmatprep.subr.mxu0 0.0
  %469 = vmatpush1.msra.mxu0 0.0
  %470 = vmatprep.subr.mxu0 0.0
  %471 = vmatpush1.msra.mxu0 0.0
  %472 = vmatprep.subr.mxu0 0.0
  %473 = vmatpush1.msra.mxu0 0.0
  %474 = vmatprep.subr.mxu0 0.0
  %475 = vmatpush1.msra.mxu0 0.0
  %476 = vmatprep.subr.mxu0 0.0
  %477 = vmatpush1.msra.mxu0 0.0
  %478 = vmatprep.subr.mxu0 0.0
  %479 = vmatpush1.msra.mxu0 0.0
  %480 = vmatprep.subr.mxu0 0.0
  %481 = vmatpush1.msra.mxu0 0.0
  %482 = vmatprep.subr.mxu0 0.0
  %483 = vmatpush1.msra.mxu0 0.0
  %484 = vmatprep.subr.mxu0 0.0
  %485 = vmatpush1.msra.mxu0 0.0
  %486 = vmatprep.subr.mxu0 0.0
  %487 = vmatpush1.msra.mxu0 0.0
  %488 = vmatprep.subr.mxu0 0.0
  %489 = vmatpush1.msra.mxu0 0.0
  %490 = vmatprep.subr.mxu0 0.0
  %491 = vmatpush1.msra.mxu0 0.0
  %492 = vmatprep.subr.mxu0 0.0
  %493 = vmatpush1.msra.mxu0 0.0
  %494 = vmatprep.subr.mxu0 0.0
  %495 = vmatpush1.msra.mxu0 0.0
  %496 = vmatprep.mubr.f32.mxu0 0.0
  %497 = vmatmul.mubr.f32.gmra.mrb[0].mxu0 %v421
  %v498 = vpop.f32.mrb[0].mxu0
  %v499 = vadd.f32 %v402, %v498
  %v500 = vpop.f32.mrb[0].mxu0
  %501 = vmatprep.mubr.f32.mxu0 0.0
  %502 = vmatmul.mubr.f32.gmra.mrb[0].mxu0 %v424
  %v503 = vpop.f32.mrb[0].mxu0
  %v504 = vadd.f32 %v407, %v503
  %v505 = vpop.f32.mrb[0].mxu0
  %506 = vmatprep.mubr.f32.mxu0 0.0
  %507 = vmatmul.mubr.f32.gmra.mrb[0].mxu0 %v427
  %v508 = vpop.f32.mrb[0].mxu0
  %v509 = vadd.f32 %v412, %v508
  %v510 = vpop.f32.mrb[0].mxu0
  %511 = vmatprep.mubr.f32.mxu0 0.0
  %512 = vmatmul.mubr.f32.gmra.mrb[0].mxu0 %v430
  %v513 = vpop.f32.mrb[0].mxu0
  %v514 = vadd.f32 %v417, %v513
  %v515 = vpop.f32.mrb[0].mxu0
  %516 = vdwg.mxu0
  %vm517 = vcmp.gt.f32.partialorder %v499, 0.0
  %vm518 = vcmp.gt.f32.partialorder %v504, 0.0
  %vm519 = vcmp.gt.f32.partialorder %v509, 0.0
  %vm520 = vcmp.gt.f32.partialorder %v514, 0.0
  %v521 = vmul.f32 %v499, 0.01
  %v522 = vmul.f32 %v504, 0.01
  %v523 = vmul.f32 %v509, 0.01
  %v524 = vmul.f32 %v514, 0.01
  %v525 = vsel %vm517, %v499, %v521
  %v526 = vsel %vm518, %v504, %v522
  %v527 = vsel %vm519, %v509, %v523
  %v528 = vsel %vm520, %v514, %v524
  %530 = vset.pattern.permute.xlu0 0
  %531 = vperm.xlu0 %530, %v313
  %v532 = vpop.permute.xlu0 %531
  %535 = vset.pattern.permute.xlu0 0
  %536 = vperm.xlu0 %535, %v314
  %v537 = vpop.permute.xlu0 %536
  %540 = vset.pattern.permute.xlu0 0
  %541 = vperm.xlu0 %540, %v315
  %v542 = vpop.permute.xlu0 %541
  %545 = vset.pattern.permute.xlu0 0
  %546 = vperm.xlu0 %545, %v316
  %v547 = vpop.permute.xlu0 %546
  %v549 = vmul.f32 %v525, %v532
  %v550 = vmul.f32 %v526, %v537
  %v551 = vmul.f32 %v527, %v542
  %v552 = vmul.f32 %v528, %v547
  %v553 = vld [vmem:[#allocation2] sm:$0xff]
  %v554 = vld [vmem:[#allocation2 + $0x8] sm:$0xff]
  %555 = vmatprep.subr.mxu0 0.0
  %556 = vmatpush1.msra.mxu0 %v553
  %557 = vmatprep.subr.mxu0 0.0
  %558 = vmatpush1.msra.mxu0 %v554
  %559 = vmatprep.subr.mxu0 0.0
  %560 = vmatpush1.msra.mxu0 0.0
  %561 = vmatprep.subr.mxu0 0.0
  %562 = vmatpush1.msra.mxu0 0.0
  %563 = vmatprep.subr.mxu0 0.0
  %564 = vmatpush1.msra.mxu0 0.0
  %565 = vmatprep.subr.mxu0 0.0
  %566 = vmatpush1.msra.mxu0 0.0
  %567 = vmatprep.subr.mxu0 0.0
  %568 = vmatpush1.msra.mxu0 0.0
  %569 = vmatprep.subr.mxu0 0.0
  %570 = vmatpush1.msra.mxu0 0.0
  %571 = vmatprep.subr.mxu0 0.0
  %572 = vmatpush1.msra.mxu0 0.0
  %573 = vmatprep.subr.mxu0 0.0
  %574 = vmatpush1.msra.mxu0 0.0
  %575 = vmatprep.subr.mxu0 0.0
  %576 = vmatpush1.msra.mxu0 0.0
  %577 = vmatprep.subr.mxu0 0.0
  %578 = vmatpush1.msra.mxu0 0.0
  %579 = vmatprep.subr.mxu0 0.0
  %580 = vmatpush1.msra.mxu0 0.0
  %581 = vmatprep.subr.mxu0 0.0
  %582 = vmatpush1.msra.mxu0 0.0
  %583 = vmatprep.subr.mxu0 0.0
  %584 = vmatpush1.msra.mxu0 0.0
  %585 = vmatprep.subr.mxu0 0.0
  %586 = vmatpush1.msra.mxu0 0.0
  %587 = vmatprep.subr.mxu0 0.0
  %588 = vmatpush1.msra.mxu0 0.0
  %589 = vmatprep.subr.mxu0 0.0
  %590 = vmatpush1.msra.mxu0 0.0
  %591 = vmatprep.subr.mxu0 0.0
  %592 = vmatpush1.msra.mxu0 0.0
  %593 = vmatprep.subr.mxu0 0.0
  %594 = vmatpush1.msra.mxu0 0.0
  %595 = vmatprep.subr.mxu0 0.0
  %596 = vmatpush1.msra.mxu0 0.0
  %597 = vmatprep.subr.mxu0 0.0
  %598 = vmatpush1.msra.mxu0 0.0
  %599 = vmatprep.subr.mxu0 0.0
  %600 = vmatpush1.msra.mxu0 0.0
  %601 = vmatprep.subr.mxu0 0.0
  %602 = vmatpush1.msra.mxu0 0.0
  %603 = vmatprep.subr.mxu0 0.0
  %604 = vmatpush1.msra.mxu0 0.0
  %605 = vmatprep.subr.mxu0 0.0
  %606 = vmatpush1.msra.mxu0 0.0
  %607 = vmatprep.subr.mxu0 0.0
  %608 = vmatpush1.msra.mxu0 0.0
  %609 = vmatprep.subr.mxu0 0.0
  %610 = vmatpush1.msra.mxu0 0.0
  %611 = vmatprep.subr.mxu0 0.0
  %612 = vmatpush1.msra.mxu0 0.0
  %613 = vmatprep.subr.mxu0 0.0
  %614 = vmatpush1.msra.mxu0 0.0
  %615 = vmatprep.subr.mxu0 0.0
  %616 = vmatpush1.msra.mxu0 0.0
  %617 = vmatprep.subr.mxu0 0.0
  %618 = vmatpush1.msra.mxu0 0.0
  %619 = vmatprep.mubr.f32.mxu0 0.0
  %620 = vmatmul.mubr.f32.gmra.mrb[0].mxu0 %v324
  %v621 = vpop.f32.mrb[0].mxu0
  %v622 = vadd.f32 0.0, %v621
  %v623 = vpop.f32.mrb[0].mxu0
  %624 = vmatprep.mubr.f32.mxu0 0.0
  %625 = vmatmul.mubr.f32.gmra.mrb[0].mxu0 %v327
  %v626 = vpop.f32.mrb[0].mxu0
  %v627 = vadd.f32 0.0, %v626
  %v628 = vpop.f32.mrb[0].mxu0
  %629 = vmatprep.mubr.f32.mxu0 0.0
  %630 = vmatmul.mubr.f32.gmra.mrb[0].mxu0 %v330
  %v631 = vpop.f32.mrb[0].mxu0
  %v632 = vadd.f32 0.0, %v631
  %v633 = vpop.f32.mrb[0].mxu0
  %634 = vmatprep.mubr.f32.mxu0 0.0
  %635 = vmatmul.mubr.f32.gmra.mrb[0].mxu0 %v333
  %v636 = vpop.f32.mrb[0].mxu0
  %v637 = vadd.f32 0.0, %v636
  %v638 = vpop.f32.mrb[0].mxu0
  %639 = vdwg.mxu0
  %vm640 = vcmask 64512
  %v642 = vsel %vm640, %v549, 0
  %v645 = vsel %vm640, %v550, 0
  %v648 = vsel %vm640, %v551, 0
  %v651 = vsel %vm640, %v552, 0
  %653 = vmatprep.subr.mxu0 0.0
  %654 = vmatpush1.msra.mxu0 %v317
  %655 = vmatprep.subr.mxu0 0.0
  %656 = vmatpush1.msra.mxu0 0.0
  %657 = vmatprep.subr.mxu0 0.0
  %658 = vmatpush1.msra.mxu0 0.0
  %659 = vmatprep.subr.mxu0 0.0
  %660 = vmatpush1.msra.mxu0 0.0
  %661 = vmatprep.subr.mxu0 0.0
  %662 = vmatpush1.msra.mxu0 0.0
  %663 = vmatprep.subr.mxu0 0.0
  %664 = vmatpush1.msra.mxu0 0.0
  %665 = vmatprep.subr.mxu0 0.0
  %666 = vmatpush1.msra.mxu0 0.0
  %667 = vmatprep.subr.mxu0 0.0
  %668 = vmatpush1.msra.mxu0 0.0
  %669 = vmatprep.subr.mxu0 0.0
  %670 = vmatpush1.msra.mxu0 0.0
  %671 = vmatprep.subr.mxu0 0.0
  %672 = vmatpush1.msra.mxu0 0.0
  %673 = vmatprep.subr.mxu0 0.0
  %674 = vmatpush1.msra.mxu0 0.0
  %675 = vmatprep.subr.mxu0 0.0
  %676 = vmatpush1.msra.mxu0 0.0
  %677 = vmatprep.subr.mxu0 0.0
  %678 = vmatpush1.msra.mxu0 0.0
  %679 = vmatprep.subr.mxu0 0.0
  %680 = vmatpush1.msra.mxu0 0.0
  %681 = vmatprep.subr.mxu0 0.0
  %682 = vmatpush1.msra.mxu0 0.0
  %683 = vmatprep.subr.mxu0 0.0
  %684 = vmatpush1.msra.mxu0 0.0
  %685 = vmatprep.subr.mxu0 0.0
  %686 = vmatpush1.msra.mxu0 0.0
  %687 = vmatprep.subr.mxu0 0.0
  %688 = vmatpush1.msra.mxu0 0.0
  %689 = vmatprep.subr.mxu0 0.0
  %690 = vmatpush1.msra.mxu0 0.0
  %691 = vmatprep.subr.mxu0 0.0
  %692 = vmatpush1.msra.mxu0 0.0
  %693 = vmatprep.subr.mxu0 0.0
  %694 = vmatpush1.msra.mxu0 0.0
  %695 = vmatprep.subr.mxu0 0.0
  %696 = vmatpush1.msra.mxu0 0.0
  %697 = vmatprep.subr.mxu0 0.0
  %698 = vmatpush1.msra.mxu0 0.0
  %699 = vmatprep.subr.mxu0 0.0
  %700 = vmatpush1.msra.mxu0 0.0
  %701 = vmatprep.subr.mxu0 0.0
  %702 = vmatpush1.msra.mxu0 0.0
  %703 = vmatprep.subr.mxu0 0.0
  %704 = vmatpush1.msra.mxu0 0.0
  %705 = vmatprep.subr.mxu0 0.0
  %706 = vmatpush1.msra.mxu0 0.0
  %707 = vmatprep.subr.mxu0 0.0
  %708 = vmatpush1.msra.mxu0 0.0
  %709 = vmatprep.subr.mxu0 0.0
  %710 = vmatpush1.msra.mxu0 0.0
  %711 = vmatprep.subr.mxu0 0.0
  %712 = vmatpush1.msra.mxu0 0.0
  %713 = vmatprep.subr.mxu0 0.0
  %714 = vmatpush1.msra.mxu0 0.0
  %715 = vmatprep.subr.mxu0 0.0
  %716 = vmatpush1.msra.mxu0 0.0
  %717 = vmatprep.mubr.f32.mxu0 0.0
  %718 = vmatmul.mubr.f32.gmra.mrb[0].mxu0 %v642
  %v719 = vpop.f32.mrb[0].mxu0
  %v720 = vadd.f32 0.0, %v719
  %v721 = vpop.f32.mrb[0].mxu0
  %722 = vmatprep.mubr.f32.mxu0 0.0
  %723 = vmatmul.mubr.f32.gmra.mrb[0].mxu0 %v645
  %v724 = vpop.f32.mrb[0].mxu0
  %v725 = vadd.f32 0.0, %v724
  %v726 = vpop.f32.mrb[0].mxu0
  %727 = vmatprep.mubr.f32.mxu0 0.0
  %728 = vmatmul.mubr.f32.gmra.mrb[0].mxu0 %v648
  %v729 = vpop.f32.mrb[0].mxu0
  %v730 = vadd.f32 0.0, %v729
  %v731 = vpop.f32.mrb[0].mxu0
  %732 = vmatprep.mubr.f32.mxu0 0.0
  %733 = vmatmul.mubr.f32.gmra.mrb[0].mxu0 %v651
  %v734 = vpop.f32.mrb[0].mxu0
  %v735 = vadd.f32 0.0, %v734
  %v736 = vpop.f32.mrb[0].mxu0
  %737 = vdwg.mxu0
  %v738 = vmul.f32 %v720, %v622
  %v739 = vmul.f32 %v725, %v627
  %v740 = vmul.f32 %v730, %v632
  %v741 = vmul.f32 %v735, %v637
  %v742 = vld [vmem:[%s9] sm:$0xff]
  %v743 = vld [vmem:[%s9 + $0x8] sm:$0xff]
  %744 = vxpose.xlu0.b32.start [1/16] %v309, 128
  %745 = vxpose.xlu0.b32.cont [2/16] %v310, 128
  %746 = vxpose.xlu0.b32.cont [3/16] %v311, 128
  %747 = vxpose.xlu0.b32.cont [4/16] %v312, 128
  %748 = vxpose.xlu0.b32.cont [5/16] 0.0, 128
  %749 = vxpose.xlu0.b32.cont [6/16] 0.0, 128
  %750 = vxpose.xlu0.b32.cont [7/16] 0.0, 128
  %751 = vxpose.xlu0.b32.cont [8/16] 0.0, 128
  %752 = vxpose.xlu0.b32.cont [9/16] 0.0, 128
  %753 = vxpose.xlu0.b32.cont [10/16] 0.0, 128
  %754 = vxpose.xlu0.b32.cont [11/16] 0.0, 128
  %755 = vxpose.xlu0.b32.cont [12/16] 0.0, 128
  %756 = vxpose.xlu0.b32.cont [13/16] 0.0, 128
  %757 = vxpose.xlu0.b32.cont [14/16] 0.0, 128
  %758 = vxpose.xlu0.b32.cont [15/16] 0.0, 128
  %759 = vxpose.xlu0.b32.end [16/16] 0.0, 128
  %v760 = vpop.trf.xlu0
  %v761 = vpop.trf.xlu0
  %v762 = vpop.trf.xlu0
  %v763 = vpop.trf.xlu0
  %v764 = vpop.trf.xlu0
  %v765 = vpop.trf.xlu0
  %v766 = vpop.trf.xlu0
  %v767 = vpop.trf.xlu0
  %v768 = vpop.trf.xlu0
  %v769 = vpop.trf.xlu0
  %v770 = vpop.trf.xlu0
  %v771 = vpop.trf.xlu0
  %v772 = vpop.trf.xlu0
  %v773 = vpop.trf.xlu0
  %v774 = vpop.trf.xlu0
  %v775 = vpop.trf.xlu0
  %vm776 = vcmask 261120
  %v778 = vsel %vm776, %v760, 0
  %v781 = vsel %vm776, %v761, 0
  %783 = vmatprep.subr.mxu0 0.0
  %784 = vmatpush1.msra.mxu0 %v738
  %785 = vmatprep.subr.mxu0 0.0
  %786 = vmatpush1.msra.mxu0 %v739
  %787 = vmatprep.subr.mxu0 0.0
  %788 = vmatpush1.msra.mxu0 %v740
  %789 = vmatprep.subr.mxu0 0.0
  %790 = vmatpush1.msra.mxu0 %v741
  %791 = vmatprep.subr.mxu0 0.0
  %792 = vmatpush1.msra.mxu0 0.0
  %793 = vmatprep.subr.mxu0 0.0
  %794 = vmatpush1.msra.mxu0 0.0
  %795 = vmatprep.subr.mxu0 0.0
  %796 = vmatpush1.msra.mxu0 0.0
  %797 = vmatprep.subr.mxu0 0.0
  %798 = vmatpush1.msra.mxu0 0.0
  %799 = vmatprep.subr.mxu0 0.0
  %800 = vmatpush1.msra.mxu0 0.0
  %801 = vmatprep.subr.mxu0 0.0
  %802 = vmatpush1.msra.mxu0 0.0
  %803 = vmatprep.subr.mxu0 0.0
  %804 = vmatpush1.msra.mxu0 0.0
  %805 = vmatprep.subr.mxu0 0.0
  %806 = vmatpush1.msra.mxu0 0.0
  %807 = vmatprep.subr.mxu0 0.0
  %808 = vmatpush1.msra.mxu0 0.0
  %809 = vmatprep.subr.mxu0 0.0
  %810 = vmatpush1.msra.mxu0 0.0
  %811 = vmatprep.subr.mxu0 0.0
  %812 = vmatpush1.msra.mxu0 0.0
  %813 = vmatprep.subr.mxu0 0.0
  %814 = vmatpush1.msra.mxu0 0.0
  %815 = vmatprep.subr.mxu0 0.0
  %816 = vmatpush1.msra.mxu0 0.0
  %817 = vmatprep.subr.mxu0 0.0
  %818 = vmatpush1.msra.mxu0 0.0
  %819 = vmatprep.subr.mxu0 0.0
  %820 = vmatpush1.msra.mxu0 0.0
  %821 = vmatprep.subr.mxu0 0.0
  %822 = vmatpush1.msra.mxu0 0.0
  %823 = vmatprep.subr.mxu0 0.0
  %824 = vmatpush1.msra.mxu0 0.0
  %825 = vmatprep.subr.mxu0 0.0
  %826 = vmatpush1.msra.mxu0 0.0
  %827 = vmatprep.subr.mxu0 0.0
  %828 = vmatpush1.msra.mxu0 0.0
  %829 = vmatprep.subr.mxu0 0.0
  %830 = vmatpush1.msra.mxu0 0.0
  %831 = vmatprep.subr.mxu0 0.0
  %832 = vmatpush1.msra.mxu0 0.0
  %833 = vmatprep.subr.mxu0 0.0
  %834 = vmatpush1.msra.mxu0 0.0
  %835 = vmatprep.subr.mxu0 0.0
  %836 = vmatpush1.msra.mxu0 0.0
  %837 = vmatprep.subr.mxu0 0.0
  %838 = vmatpush1.msra.mxu0 0.0
  %839 = vmatprep.subr.mxu0 0.0
  %840 = vmatpush1.msra.mxu0 0.0
  %841 = vmatprep.subr.mxu0 0.0
  %842 = vmatpush1.msra.mxu0 0.0
  %843 = vmatprep.subr.mxu0 0.0
  %844 = vmatpush1.msra.mxu0 0.0
  %845 = vmatprep.subr.mxu0 0.0
  %846 = vmatpush1.msra.mxu0 0.0
  %847 = vmatprep.mubr.f32.mxu0 0.0
  %848 = vmatmul.mubr.f32.gmra.mrb[0].mxu0 %v778
  %v849 = vpop.f32.mrb[0].mxu0
  %v850 = vadd.f32 0.0, %v849
  %v851 = vpop.f32.mrb[0].mxu0
  %852 = vmatprep.mubr.f32.mxu0 0.0
  %853 = vmatmul.mubr.f32.gmra.mrb[0].mxu0 %v781
  %v854 = vpop.f32.mrb[0].mxu0
  %v855 = vadd.f32 0.0, %v854
  %v856 = vpop.f32.mrb[0].mxu0
  %857 = vdwg.mxu0
  %v858 = vadd.f32 %v742, %v850
  %v859 = vadd.f32 %v743, %v855
  %860 = vst.msk [vmem:[%s9] sm:$0xff] %vm322, %v858
  %861 = vst.msk [vmem:[%s9 + $0x8] sm:$0xff] %vm322, %v859
  // Predicated region
  $region42: #{gat_forward.6} parent=0 // pred_check
    %p862 = pneg %p32
  $region43: #{gat_forward.6} parent=0 // pred_check_branch
    %864 = sbr.rel (%p862) target = $region45
  $region44: #{gat_forward.6} parent=0 // pred_region
    %v865 = vld [vmem:[%s9] sm:$0xff]
    %v866 = vld [vmem:[%s9 + $0x8] sm:$0xff]
    %v867 = vsel %vm322, %v865, 0.0
    %v868 = vsel %vm322, %v866, 0.0
    %v869 = vadd.f32 %v867, %v868
    %v870 = vrot.slane %v869, 4
    %v871 = vadd.f32 %v869, %v870
    %v872 = vrot.slane %v871, 2
    %v873 = vadd.f32 %v871, %v872
    %v874 = vrot.slane %v873, 1
    %v875 = vadd.f32 %v873, %v874
    %v876 = vrcp.pop 16.0
    %v877 = vmul.f32 %v875, %v876
    %v878 = vsub.f32 %v865, %v877
    %v879 = vsub.f32 %v866, %v877
    %v880 = vmul.f32 %v878, %v878
    %v881 = vmul.f32 %v879, %v879
    %v882 = vsel %vm322, %v880, 0.0
    %v883 = vsel %vm322, %v881, 0.0
    %v884 = vadd.f32 %v882, %v883
    %v885 = vrot.slane %v884, 4
    %v886 = vadd.f32 %v884, %v885
    %v887 = vrot.slane %v886, 2
    %v888 = vadd.f32 %v886, %v887
    %v889 = vrot.slane %v888, 1
    %v890 = vadd.f32 %v888, %v889
    %v891 = vmul.f32 %v890, %v876
    %v892 = vadd.f32 %v891, 1e-05
    %v893 = vrsqrt.pop %v892
    %v894 = vmul.f32 %v878, %v893
    %v895 = vmul.f32 %v879, %v893
    %v896 = vmax.f32 %v894, 0.0
    %v897 = vmax.f32 %v895, 0.0
    %898 = vst.msk [vmem:[%s9] sm:$0xff] %vm322, %v896
    %899 = vst.msk [vmem:[%s9 + $0x8] sm:$0xff] %vm322, %v897
  $region45: #{gat_forward.6} parent=0 // pred_fallthru
    _
  // Predicated region
  $region46: #{gat_forward.6} parent=0 // pred_check
    _
  $region47: #{gat_forward.6} parent=0 // pred_check_branch
    %901 = sbr.rel (0) target = $region49
  $region48: #{gat_forward.6} parent=0 // pred_region
    _
  $region49: #{gat_forward.6} parent=0 // pred_fallthru
    _
  // Predicated region
  $region50: #{gat_forward.6} parent=0 // pred_check
    _
  $region51: #{gat_forward.6} parent=0 // pred_check_branch
    %903 = sbr.rel (0) target = $region53
  $region52: #{gat_forward.6} parent=0 // pred_region
    _
  $region53: #{gat_forward.6} parent=0 // pred_fallthru
    _

// kernel: gat_forward.7
$region0: #{gat_forward.7}
  #allocation0 [shape = 'u32[]', space=smem, size = 0x4, offset = 0x4, fixed_abs, tag = 'smem constant byte address 0x4 - core index']
  #allocation1 [shape = 'u32[144,128]{1,0:T(1,128)}', space=vmem, size = 0x12000, scoped, tag = 'internal scratch']
  #allocation2 [shape = 'f32[1,16,16]{2,1,0:T(8,128)}', space=vmem, size = 0x2000, scoped, tag = 'scratch operand']
  #allocation3 [shape = 'f32[1,16,8]{2,1,0:T(8,128)}', space=vmem, size = 0x2000, scoped, tag = 'scratch operand']
  #allocation4 [shape = 'f32[1,16,8]{2,1,0:T(8,128)}', space=vmem, size = 0x2000, scoped, tag = 'scratch operand']
  %s0 = inlined_call_operand.vmem [shape: f32[1,16,16], index: 0, kind: input, shape index: {}]
  %s1 = inlined_call_operand.vmem [shape: f32[16,16], index: 1, kind: input, shape index: {}]
  %s2 = inlined_call_operand.vmem [shape: f32[1,16], index: 2, kind: input, shape index: {}]
  %s3 = inlined_call_operand.vmem [shape: f32[16,8], index: 3, kind: input, shape index: {}]
  %s4 = inlined_call_operand.vmem [shape: f32[16,8], index: 4, kind: input, shape index: {}]
  %s5 = inlined_call_operand.vmem [shape: f32[8,16], index: 5, kind: input, shape index: {}]
  %s6 = inlined_call_operand.vmem [shape: bf16[32,16], index: 6, kind: input, shape index: {}]
  %s7 = inlined_call_operand.vmem [shape: bf16[32,16], index: 7, kind: input, shape index: {}]
  %s8 = inlined_call_operand.vmem [shape: f32[32,1], index: 8, kind: input, shape index: {}]
  %s9 = inlined_call_operand.vmem [shape: f32[16,16], index: 9, kind: output, shape index: {}]
  %s10 = sld [smem:[#allocation0]]
  $region54: #{gat_forward.7} parent=0
    _
  %s12 = ssub.s32 1, %s10
  %s13 = scalar_select 0, %s12, %s10
  // Predicated region
  $region2: #{gat_forward.7} parent=0 // pred_check
    _
  $region3: #{gat_forward.7} parent=0 // pred_check_branch
    %15 = sbr.rel (0) target = $region5
  $region4: #{gat_forward.7} parent=0 // pred_region
    _
  $region5: #{gat_forward.7} parent=0 // pred_fallthru
    _
  // Predicated region
  $region6: #{gat_forward.7} parent=0 // pred_check
    _
  $region7: #{gat_forward.7} parent=0 // pred_check_branch
    %17 = sbr.rel (0) target = $region9
  $region8: #{gat_forward.7} parent=0 // pred_region
    _
  $region9: #{gat_forward.7} parent=0 // pred_fallthru
    _
  // Predicated region
  $region10: #{gat_forward.7} parent=0 // pred_check
    _
  $region11: #{gat_forward.7} parent=0 // pred_check_branch
    %19 = sbr.rel (0) target = $region13
  $region12: #{gat_forward.7} parent=0 // pred_region
    _
  $region13: #{gat_forward.7} parent=0 // pred_fallthru
    _
  // Predicated region
  $region14: #{gat_forward.7} parent=0 // pred_check
    _
  $region15: #{gat_forward.7} parent=0 // pred_check_branch
    %21 = sbr.rel (0) target = $region17
  $region16: #{gat_forward.7} parent=0 // pred_region
    _
  $region17: #{gat_forward.7} parent=0 // pred_fallthru
    _
  // Predicated region
  $region18: #{gat_forward.7} parent=0 // pred_check
    _
  $region19: #{gat_forward.7} parent=0 // pred_check_branch
    %23 = sbr.rel (0) target = $region21
  $region20: #{gat_forward.7} parent=0 // pred_region
    _
  $region21: #{gat_forward.7} parent=0 // pred_fallthru
    _
  // Predicated region
  $region22: #{gat_forward.7} parent=0 // pred_check
    _
  $region23: #{gat_forward.7} parent=0 // pred_check_branch
    %25 = sbr.rel (0) target = $region25
  $region24: #{gat_forward.7} parent=0 // pred_region
    _
  $region25: #{gat_forward.7} parent=0 // pred_fallthru
    _
  // Predicated region
  $region26: #{gat_forward.7} parent=0 // pred_check
    _
  $region27: #{gat_forward.7} parent=0 // pred_check_branch
    %27 = sbr.rel (0) target = $region29
  $region28: #{gat_forward.7} parent=0 // pred_region
    _
  $region29: #{gat_forward.7} parent=0 // pred_fallthru
    _
  // Predicated region
  $region30: #{gat_forward.7} parent=0 // pred_check
    _
  $region31: #{gat_forward.7} parent=0 // pred_check_branch
    %29 = sbr.rel (0) target = $region33
  $region32: #{gat_forward.7} parent=0 // pred_region
    _
  $region33: #{gat_forward.7} parent=0 // pred_fallthru
    _
  // Predicated region
  $region34: #{gat_forward.7} parent=0 // pred_check
    _
  $region35: #{gat_forward.7} parent=0 // pred_check_branch
    %31 = sbr.rel (0) target = $region37
  $region36: #{gat_forward.7} parent=0 // pred_region
    _
  $region37: #{gat_forward.7} parent=0 // pred_fallthru
    _
  %p32 = scmp.eq.s32.totalorder 0, 0
  // Predicated region
  $region38: #{gat_forward.7} parent=0 // pred_check
    %p33 = pneg %p32
  $region39: #{gat_forward.7} parent=0 // pred_check_branch
    %35 = sbr.rel (%p33) target = $region41
  $region40: #{gat_forward.7} parent=0 // pred_region
    %vm36 = vcmask 130048
    %37 = vst.msk [vmem:[%s9] sm:$0xff] %vm36, 0.0
    %38 = vst.msk [vmem:[%s9 + $0x8] sm:$0xff] %vm36, 0.0
    %v39 = vld [vmem:[%s1] sm:$0xff]
    %v40 = vld [vmem:[%s1 + $0x8] sm:$0xff]
    %v41 = vld [vmem:[%s2] sm:$0x1]
    %v42 = vld [vmem:[%s3] sm:$0xff]
    %v43 = vld [vmem:[%s3 + $0x8] sm:$0xff]
    %v44 = vld [vmem:[%s4] sm:$0xff]
    %v45 = vld [vmem:[%s4 + $0x8] sm:$0xff]
    %v46 = vld [vmem:[%s0] sm:$0xff]
    %v47 = vld [vmem:[%s0 + $0x8] sm:$0xff]
    %v49 = vlaneseq
    %v50 = vshrl.u32 %v49, 7
    %v51 = vsub.s32 0, %v50
    %v52 = vrot.slane %v41, %v51
    %v55 = vsel %vm36, %v46, 0
    %v58 = vsel %vm36, %v47, 0
    %60 = vmatprep.subr.mxu0 0.0
    %61 = vmatpush1.msra.mxu0 %v39
    %62 = vmatprep.subr.mxu0 0.0
    %63 = vmatpush1.msra.mxu0 %v40
    %64 = vmatprep.subr.mxu0 0.0
    %65 = vmatpush1.msra.mxu0 0.0
    %66 = vmatprep.subr.mxu0 0.0
    %67 = vmatpush1.msra.mxu0 0.0
    %68 = vmatprep.subr.mxu0 0.0
    %69 = vmatpush1.msra.mxu0 0.0
    %70 = vmatprep.subr.mxu0 0.0
    %71 = vmatpush1.msra.mxu0 0.0
    %72 = vmatprep.subr.mxu0 0.0
    %73 = vmatpush1.msra.mxu0 0.0
    %74 = vmatprep.subr.mxu0 0.0
    %75 = vmatpush1.msra.mxu0 0.0
    %76 = vmatprep.subr.mxu0 0.0
    %77 = vmatpush1.msra.mxu0 0.0
    %78 = vmatprep.subr.mxu0 0.0
    %79 = vmatpush1.msra.mxu0 0.0
    %80 = vmatprep.subr.mxu0 0.0
    %81 = vmatpush1.msra.mxu0 0.0
    %82 = vmatprep.subr.mxu0 0.0
    %83 = vmatpush1.msra.mxu0 0.0
    %84 = vmatprep.subr.mxu0 0.0
    %85 = vmatpush1.msra.mxu0 0.0
    %86 = vmatprep.subr.mxu0 0.0
    %87 = vmatpush1.msra.mxu0 0.0
    %88 = vmatprep.subr.mxu0 0.0
    %89 = vmatpush1.msra.mxu0 0.0
    %90 = vmatprep.subr.mxu0 0.0
    %91 = vmatpush1.msra.mxu0 0.0
    %92 = vmatprep.subr.mxu0 0.0
    %93 = vmatpush1.msra.mxu0 0.0
    %94 = vmatprep.subr.mxu0 0.0
    %95 = vmatpush1.msra.mxu0 0.0
    %96 = vmatprep.subr.mxu0 0.0
    %97 = vmatpush1.msra.mxu0 0.0
    %98 = vmatprep.subr.mxu0 0.0
    %99 = vmatpush1.msra.mxu0 0.0
    %100 = vmatprep.subr.mxu0 0.0
    %101 = vmatpush1.msra.mxu0 0.0
    %102 = vmatprep.subr.mxu0 0.0
    %103 = vmatpush1.msra.mxu0 0.0
    %104 = vmatprep.subr.mxu0 0.0
    %105 = vmatpush1.msra.mxu0 0.0
    %106 = vmatprep.subr.mxu0 0.0
    %107 = vmatpush1.msra.mxu0 0.0
    %108 = vmatprep.subr.mxu0 0.0
    %109 = vmatpush1.msra.mxu0 0.0
    %110 = vmatprep.subr.mxu0 0.0
    %111 = vmatpush1.msra.mxu0 0.0
    %112 = vmatprep.subr.mxu0 0.0
    %113 = vmatpush1.msra.mxu0 0.0
    %114 = vmatprep.subr.mxu0 0.0
    %115 = vmatpush1.msra.mxu0 0.0
    %116 = vmatprep.subr.mxu0 0.0
    %117 = vmatpush1.msra.mxu0 0.0
    %118 = vmatprep.subr.mxu0 0.0
    %119 = vmatpush1.msra.mxu0 0.0
    %120 = vmatprep.subr.mxu0 0.0
    %121 = vmatpush1.msra.mxu0 0.0
    %122 = vmatprep.subr.mxu0 0.0
    %123 = vmatpush1.msra.mxu0 0.0
    %124 = vmatprep.mubr.f32.mxu0 0.0
    %125 = vmatmul.mubr.f32.gmra.mrb[0].mxu0 %v55
    %v126 = vpop.f32.mrb[0].mxu0
    %v127 = vadd.f32 %v52, %v126
    %v128 = vpop.f32.mrb[0].mxu0
    %129 = vmatprep.mubr.f32.mxu0 0.0
    %130 = vmatmul.mubr.f32.gmra.mrb[0].mxu0 %v58
    %v131 = vpop.f32.mrb[0].mxu0
    %v132 = vadd.f32 %v52, %v131
    %v133 = vpop.f32.mrb[0].mxu0
    %134 = vdwg.mxu0
    %135 = vst.msk [vmem:[#allocation2] sm:$0xff] %vm36, %v127
    %136 = vst.msk [vmem:[#allocation2 + $0x8] sm:$0xff] %vm36, %v132
    %v138 = vsel %vm36, %v127, 0
    %v141 = vsel %vm36, %v132, 0
    %143 = vmatprep.subr.mxu0 0.0
    %144 = vmatpush1.msra.mxu0 %v42
    %145 = vmatprep.subr.mxu0 0.0
    %146 = vmatpush1.msra.mxu0 %v43
    %147 = vmatprep.subr.mxu0 0.0
    %148 = vmatpush1.msra.mxu0 0.0
    %149 = vmatprep.subr.mxu0 0.0
    %150 = vmatpush1.msra.mxu0 0.0
    %151 = vmatprep.subr.mxu0 0.0
    %152 = vmatpush1.msra.mxu0 0.0
    %153 = vmatprep.subr.mxu0 0.0
    %154 = vmatpush1.msra.mxu0 0.0
    %155 = vmatprep.subr.mxu0 0.0
    %156 = vmatpush1.msra.mxu0 0.0
    %157 = vmatprep.subr.mxu0 0.0
    %158 = vmatpush1.msra.mxu0 0.0
    %159 = vmatprep.subr.mxu0 0.0
    %160 = vmatpush1.msra.mxu0 0.0
    %161 = vmatprep.subr.mxu0 0.0
    %162 = vmatpush1.msra.mxu0 0.0
    %163 = vmatprep.subr.mxu0 0.0
    %164 = vmatpush1.msra.mxu0 0.0
    %165 = vmatprep.subr.mxu0 0.0
    %166 = vmatpush1.msra.mxu0 0.0
    %167 = vmatprep.subr.mxu0 0.0
    %168 = vmatpush1.msra.mxu0 0.0
    %169 = vmatprep.subr.mxu0 0.0
    %170 = vmatpush1.msra.mxu0 0.0
    %171 = vmatprep.subr.mxu0 0.0
    %172 = vmatpush1.msra.mxu0 0.0
    %173 = vmatprep.subr.mxu0 0.0
    %174 = vmatpush1.msra.mxu0 0.0
    %175 = vmatprep.subr.mxu0 0.0
    %176 = vmatpush1.msra.mxu0 0.0
    %177 = vmatprep.subr.mxu0 0.0
    %178 = vmatpush1.msra.mxu0 0.0
    %179 = vmatprep.subr.mxu0 0.0
    %180 = vmatpush1.msra.mxu0 0.0
    %181 = vmatprep.subr.mxu0 0.0
    %182 = vmatpush1.msra.mxu0 0.0
    %183 = vmatprep.subr.mxu0 0.0
    %184 = vmatpush1.msra.mxu0 0.0
    %185 = vmatprep.subr.mxu0 0.0
    %186 = vmatpush1.msra.mxu0 0.0
    %187 = vmatprep.subr.mxu0 0.0
    %188 = vmatpush1.msra.mxu0 0.0
    %189 = vmatprep.subr.mxu0 0.0
    %190 = vmatpush1.msra.mxu0 0.0
    %191 = vmatprep.subr.mxu0 0.0
    %192 = vmatpush1.msra.mxu0 0.0
    %193 = vmatprep.subr.mxu0 0.0
    %194 = vmatpush1.msra.mxu0 0.0
    %195 = vmatprep.subr.mxu0 0.0
    %196 = vmatpush1.msra.mxu0 0.0
    %197 = vmatprep.subr.mxu0 0.0
    %198 = vmatpush1.msra.mxu0 0.0
    %199 = vmatprep.subr.mxu0 0.0
    %200 = vmatpush1.msra.mxu0 0.0
    %201 = vmatprep.subr.mxu0 0.0
    %202 = vmatpush1.msra.mxu0 0.0
    %203 = vmatprep.subr.mxu0 0.0
    %204 = vmatpush1.msra.mxu0 0.0
    %205 = vmatprep.subr.mxu0 0.0
    %206 = vmatpush1.msra.mxu0 0.0
    %207 = vmatprep.mubr.f32.mxu0 0.0
    %208 = vmatmul.mubr.f32.gmra.mrb[0].mxu0 %v138
    %v209 = vpop.f32.mrb[0].mxu0
    %v210 = vadd.f32 0.0, %v209
    %v211 = vpop.f32.mrb[0].mxu0
    %212 = vmatprep.mubr.f32.mxu0 0.0
    %213 = vmatmul.mubr.f32.gmra.mrb[0].mxu0 %v141
    %v214 = vpop.f32.mrb[0].mxu0
    %v215 = vadd.f32 0.0, %v214
    %v216 = vpop.f32.mrb[0].mxu0
    %217 = vdwg.mxu0
    %vm218 = vcmask 64512
    %219 = vst.msk [vmem:[#allocation3] sm:$0xff] %vm218, %v210
    %220 = vst.msk [vmem:[#allocation3 + $0x8] sm:$0xff] %vm218, %v215
    %221 = vmatprep.subr.mxu0 0.0
    %222 = vmatpush1.msra.mxu0 %v44
    %223 = vmatprep.subr.mxu0 0.0
    %224 = vmatpush1.msra.mxu0 %v45
    %225 = vmatprep.subr.mxu0 0.0
    %226 = vmatpush1.msra.mxu0 0.0
    %227 = vmatprep.subr.mxu0 0.0
    %228 = vmatpush1.msra.mxu0 0.0
    %229 = vmatprep.subr.mxu0 0.0
    %230 = vmatpush1.msra.mxu0 0.0
    %231 = vmatprep.subr.mxu0 0.0
    %232 = vmatpush1.msra.mxu0 0.0
    %233 = vmatprep.subr.mxu0 0.0
    %234 = vmatpush1.msra.mxu0 0.0
    %235 = vmatprep.subr.mxu0 0.0
    %236 = vmatpush1.msra.mxu0 0.0
    %237 = vmatprep.subr.mxu0 0.0
    %238 = vmatpush1.msra.mxu0 0.0
    %239 = vmatprep.subr.mxu0 0.0
    %240 = vmatpush1.msra.mxu0 0.0
    %241 = vmatprep.subr.mxu0 0.0
    %242 = vmatpush1.msra.mxu0 0.0
    %243 = vmatprep.subr.mxu0 0.0
    %244 = vmatpush1.msra.mxu0 0.0
    %245 = vmatprep.subr.mxu0 0.0
    %246 = vmatpush1.msra.mxu0 0.0
    %247 = vmatprep.subr.mxu0 0.0
    %248 = vmatpush1.msra.mxu0 0.0
    %249 = vmatprep.subr.mxu0 0.0
    %250 = vmatpush1.msra.mxu0 0.0
    %251 = vmatprep.subr.mxu0 0.0
    %252 = vmatpush1.msra.mxu0 0.0
    %253 = vmatprep.subr.mxu0 0.0
    %254 = vmatpush1.msra.mxu0 0.0
    %255 = vmatprep.subr.mxu0 0.0
    %256 = vmatpush1.msra.mxu0 0.0
    %257 = vmatprep.subr.mxu0 0.0
    %258 = vmatpush1.msra.mxu0 0.0
    %259 = vmatprep.subr.mxu0 0.0
    %260 = vmatpush1.msra.mxu0 0.0
    %261 = vmatprep.subr.mxu0 0.0
    %262 = vmatpush1.msra.mxu0 0.0
    %263 = vmatprep.subr.mxu0 0.0
    %264 = vmatpush1.msra.mxu0 0.0
    %265 = vmatprep.subr.mxu0 0.0
    %266 = vmatpush1.msra.mxu0 0.0
    %267 = vmatprep.subr.mxu0 0.0
    %268 = vmatpush1.msra.mxu0 0.0
    %269 = vmatprep.subr.mxu0 0.0
    %270 = vmatpush1.msra.mxu0 0.0
    %271 = vmatprep.subr.mxu0 0.0
    %272 = vmatpush1.msra.mxu0 0.0
    %273 = vmatprep.subr.mxu0 0.0
    %274 = vmatpush1.msra.mxu0 0.0
    %275 = vmatprep.subr.mxu0 0.0
    %276 = vmatpush1.msra.mxu0 0.0
    %277 = vmatprep.subr.mxu0 0.0
    %278 = vmatpush1.msra.mxu0 0.0
    %279 = vmatprep.subr.mxu0 0.0
    %280 = vmatpush1.msra.mxu0 0.0
    %281 = vmatprep.subr.mxu0 0.0
    %282 = vmatpush1.msra.mxu0 0.0
    %283 = vmatprep.subr.mxu0 0.0
    %284 = vmatpush1.msra.mxu0 0.0
    %285 = vmatprep.mubr.f32.mxu0 0.0
    %286 = vmatmul.mubr.f32.gmra.mrb[0].mxu0 %v138
    %v287 = vpop.f32.mrb[0].mxu0
    %v288 = vadd.f32 0.0, %v287
    %v289 = vpop.f32.mrb[0].mxu0
    %290 = vmatprep.mubr.f32.mxu0 0.0
    %291 = vmatmul.mubr.f32.gmra.mrb[0].mxu0 %v141
    %v292 = vpop.f32.mrb[0].mxu0
    %v293 = vadd.f32 0.0, %v292
    %v294 = vpop.f32.mrb[0].mxu0
    %295 = vdwg.mxu0
    %296 = vst.msk [vmem:[#allocation4] sm:$0xff] %vm218, %v288
    %297 = vst.msk [vmem:[#allocation4 + $0x8] sm:$0xff] %vm218, %v293
  $region41: #{gat_forward.7} parent=0 // pred_fallthru
    _
  %v298 = vld [vmem:[%s6] sm:$0xf]
  %v299 = vld [vmem:[%s6 + $0x4] sm:$0xf]
  %v300 = vld [vmem:[%s6 + $0x8] sm:$0xf]
  %v301 = vld [vmem:[%s6 + $0xc] sm:$0xf]
  %v302 = vunpack.c.l.bf16 %v298
  %v303 = vunpack.c.l.bf16 %v299
  %v304 = vunpack.c.l.bf16 %v300
  %v305 = vunpack.c.l.bf16 %v301
  %v306 = vld [vmem:[%s7] sm:$0xf]
  %v307 = vld [vmem:[%s7 + $0x4] sm:$0xf]
  %v308 = vld [vmem:[%s7 + $0x8] sm:$0xf]
  %v309 = vld [vmem:[%s7 + $0xc] sm:$0xf]
  %v310 = vunpack.c.l.bf16 %v306
  %v311 = vunpack.c.l.bf16 %v307
  %v312 = vunpack.c.l.bf16 %v308
  %v313 = vunpack.c.l.bf16 %v309
  %v314 = vld [vmem:[%s8] sm:$0xff]
  %v315 = vld [vmem:[%s8 + $0x8] sm:$0xff]
  %v316 = vld [vmem:[%s8 + $0x10] sm:$0xff]
  %v317 = vld [vmem:[%s8 + $0x18] sm:$0xff]
  %v318 = vld [vmem:[%s5] sm:$0xff]
  %v319 = vld [vmem:[#allocation3] sm:$0xff]
  %v320 = vld [vmem:[#allocation3 + $0x8] sm:$0xff]
  %v321 = vld [vmem:[#allocation4] sm:$0xff]
  %v322 = vld [vmem:[#allocation4 + $0x8] sm:$0xff]
  %vm323 = vcmask 130048
  %v325 = vsel %vm323, %v302, 0
  %v328 = vsel %vm323, %v303, 0
  %v331 = vsel %vm323, %v304, 0
  %v334 = vsel %vm323, %v305, 0
  %336 = vmatprep.subr.mxu0 0.0
  %337 = vmatpush1.msra.mxu0 %v321
  %338 = vmatprep.subr.mxu0 0.0
  %339 = vmatpush1.msra.mxu0 %v322
  %340 = vmatprep.subr.mxu0 0.0
  %341 = vmatpush1.msra.mxu0 0.0
  %342 = vmatprep.subr.mxu0 0.0
  %343 = vmatpush1.msra.mxu0 0.0
  %344 = vmatprep.subr.mxu0 0.0
  %345 = vmatpush1.msra.mxu0 0.0
  %346 = vmatprep.subr.mxu0 0.0
  %347 = vmatpush1.msra.mxu0 0.0
  %348 = vmatprep.subr.mxu0 0.0
  %349 = vmatpush1.msra.mxu0 0.0
  %350 = vmatprep.subr.mxu0 0.0
  %351 = vmatpush1.msra.mxu0 0.0
  %352 = vmatprep.subr.mxu0 0.0
  %353 = vmatpush1.msra.mxu0 0.0
  %354 = vmatprep.subr.mxu0 0.0
  %355 = vmatpush1.msra.mxu0 0.0
  %356 = vmatprep.subr.mxu0 0.0
  %357 = vmatpush1.msra.mxu0 0.0
  %358 = vmatprep.subr.mxu0 0.0
  %359 = vmatpush1.msra.mxu0 0.0
  %360 = vmatprep.subr.mxu0 0.0
  %361 = vmatpush1.msra.mxu0 0.0
  %362 = vmatprep.subr.mxu0 0.0
  %363 = vmatpush1.msra.mxu0 0.0
  %364 = vmatprep.subr.mxu0 0.0
  %365 = vmatpush1.msra.mxu0 0.0
  %366 = vmatprep.subr.mxu0 0.0
  %367 = vmatpush1.msra.mxu0 0.0
  %368 = vmatprep.subr.mxu0 0.0
  %369 = vmatpush1.msra.mxu0 0.0
  %370 = vmatprep.subr.mxu0 0.0
  %371 = vmatpush1.msra.mxu0 0.0
  %372 = vmatprep.subr.mxu0 0.0
  %373 = vmatpush1.msra.mxu0 0.0
  %374 = vmatprep.subr.mxu0 0.0
  %375 = vmatpush1.msra.mxu0 0.0
  %376 = vmatprep.subr.mxu0 0.0
  %377 = vmatpush1.msra.mxu0 0.0
  %378 = vmatprep.subr.mxu0 0.0
  %379 = vmatpush1.msra.mxu0 0.0
  %380 = vmatprep.subr.mxu0 0.0
  %381 = vmatpush1.msra.mxu0 0.0
  %382 = vmatprep.subr.mxu0 0.0
  %383 = vmatpush1.msra.mxu0 0.0
  %384 = vmatprep.subr.mxu0 0.0
  %385 = vmatpush1.msra.mxu0 0.0
  %386 = vmatprep.subr.mxu0 0.0
  %387 = vmatpush1.msra.mxu0 0.0
  %388 = vmatprep.subr.mxu0 0.0
  %389 = vmatpush1.msra.mxu0 0.0
  %390 = vmatprep.subr.mxu0 0.0
  %391 = vmatpush1.msra.mxu0 0.0
  %392 = vmatprep.subr.mxu0 0.0
  %393 = vmatpush1.msra.mxu0 0.0
  %394 = vmatprep.subr.mxu0 0.0
  %395 = vmatpush1.msra.mxu0 0.0
  %396 = vmatprep.subr.mxu0 0.0
  %397 = vmatpush1.msra.mxu0 0.0
  %398 = vmatprep.subr.mxu0 0.0
  %399 = vmatpush1.msra.mxu0 0.0
  %400 = vmatprep.mubr.f32.mxu0 0.0
  %401 = vmatmul.mubr.f32.gmra.mrb[0].mxu0 %v325
  %v402 = vpop.f32.mrb[0].mxu0
  %v403 = vadd.f32 0.0, %v402
  %v404 = vpop.f32.mrb[0].mxu0
  %405 = vmatprep.mubr.f32.mxu0 0.0
  %406 = vmatmul.mubr.f32.gmra.mrb[0].mxu0 %v328
  %v407 = vpop.f32.mrb[0].mxu0
  %v408 = vadd.f32 0.0, %v407
  %v409 = vpop.f32.mrb[0].mxu0
  %410 = vmatprep.mubr.f32.mxu0 0.0
  %411 = vmatmul.mubr.f32.gmra.mrb[0].mxu0 %v331
  %v412 = vpop.f32.mrb[0].mxu0
  %v413 = vadd.f32 0.0, %v412
  %v414 = vpop.f32.mrb[0].mxu0
  %415 = vmatprep.mubr.f32.mxu0 0.0
  %416 = vmatmul.mubr.f32.gmra.mrb[0].mxu0 %v334
  %v417 = vpop.f32.mrb[0].mxu0
  %v418 = vadd.f32 0.0, %v417
  %v419 = vpop.f32.mrb[0].mxu0
  %420 = vdwg.mxu0
  %v422 = vsel %vm323, %v310, 0
  %v425 = vsel %vm323, %v311, 0
  %v428 = vsel %vm323, %v312, 0
  %v431 = vsel %vm323, %v313, 0
  %433 = vmatprep.subr.mxu0 0.0
  %434 = vmatpush1.msra.mxu0 %v319
  %435 = vmatprep.subr.mxu0 0.0
  %436 = vmatpush1.msra.mxu0 %v320
  %437 = vmatprep.subr.mxu0 0.0
  %438 = vmatpush1.msra.mxu0 0.0
  %439 = vmatprep.subr.mxu0 0.0
  %440 = vmatpush1.msra.mxu0 0.0
  %441 = vmatprep.subr.mxu0 0.0
  %442 = vmatpush1.msra.mxu0 0.0
  %443 = vmatprep.subr.mxu0 0.0
  %444 = vmatpush1.msra.mxu0 0.0
  %445 = vmatprep.subr.mxu0 0.0
  %446 = vmatpush1.msra.mxu0 0.0
  %447 = vmatprep.subr.mxu0 0.0
  %448 = vmatpush1.msra.mxu0 0.0
  %449 = vmatprep.subr.mxu0 0.0
  %450 = vmatpush1.msra.mxu0 0.0
  %451 = vmatprep.subr.mxu0 0.0
  %452 = vmatpush1.msra.mxu0 0.0
  %453 = vmatprep.subr.mxu0 0.0
  %454 = vmatpush1.msra.mxu0 0.0
  %455 = vmatprep.subr.mxu0 0.0
  %456 = vmatpush1.msra.mxu0 0.0
  %457 = vmatprep.subr.mxu0 0.0
  %458 = vmatpush1.msra.mxu0 0.0
  %459 = vmatprep.subr.mxu0 0.0
  %460 = vmatpush1.msra.mxu0 0.0
  %461 = vmatprep.subr.mxu0 0.0
  %462 = vmatpush1.msra.mxu0 0.0
  %463 = vmatprep.subr.mxu0 0.0
  %464 = vmatpush1.msra.mxu0 0.0
  %465 = vmatprep.subr.mxu0 0.0
  %466 = vmatpush1.msra.mxu0 0.0
  %467 = vmatprep.subr.mxu0 0.0
  %468 = vmatpush1.msra.mxu0 0.0
  %469 = vmatprep.subr.mxu0 0.0
  %470 = vmatpush1.msra.mxu0 0.0
  %471 = vmatprep.subr.mxu0 0.0
  %472 = vmatpush1.msra.mxu0 0.0
  %473 = vmatprep.subr.mxu0 0.0
  %474 = vmatpush1.msra.mxu0 0.0
  %475 = vmatprep.subr.mxu0 0.0
  %476 = vmatpush1.msra.mxu0 0.0
  %477 = vmatprep.subr.mxu0 0.0
  %478 = vmatpush1.msra.mxu0 0.0
  %479 = vmatprep.subr.mxu0 0.0
  %480 = vmatpush1.msra.mxu0 0.0
  %481 = vmatprep.subr.mxu0 0.0
  %482 = vmatpush1.msra.mxu0 0.0
  %483 = vmatprep.subr.mxu0 0.0
  %484 = vmatpush1.msra.mxu0 0.0
  %485 = vmatprep.subr.mxu0 0.0
  %486 = vmatpush1.msra.mxu0 0.0
  %487 = vmatprep.subr.mxu0 0.0
  %488 = vmatpush1.msra.mxu0 0.0
  %489 = vmatprep.subr.mxu0 0.0
  %490 = vmatpush1.msra.mxu0 0.0
  %491 = vmatprep.subr.mxu0 0.0
  %492 = vmatpush1.msra.mxu0 0.0
  %493 = vmatprep.subr.mxu0 0.0
  %494 = vmatpush1.msra.mxu0 0.0
  %495 = vmatprep.subr.mxu0 0.0
  %496 = vmatpush1.msra.mxu0 0.0
  %497 = vmatprep.mubr.f32.mxu0 0.0
  %498 = vmatmul.mubr.f32.gmra.mrb[0].mxu0 %v422
  %v499 = vpop.f32.mrb[0].mxu0
  %v500 = vadd.f32 %v403, %v499
  %v501 = vpop.f32.mrb[0].mxu0
  %502 = vmatprep.mubr.f32.mxu0 0.0
  %503 = vmatmul.mubr.f32.gmra.mrb[0].mxu0 %v425
  %v504 = vpop.f32.mrb[0].mxu0
  %v505 = vadd.f32 %v408, %v504
  %v506 = vpop.f32.mrb[0].mxu0
  %507 = vmatprep.mubr.f32.mxu0 0.0
  %508 = vmatmul.mubr.f32.gmra.mrb[0].mxu0 %v428
  %v509 = vpop.f32.mrb[0].mxu0
  %v510 = vadd.f32 %v413, %v509
  %v511 = vpop.f32.mrb[0].mxu0
  %512 = vmatprep.mubr.f32.mxu0 0.0
  %513 = vmatmul.mubr.f32.gmra.mrb[0].mxu0 %v431
  %v514 = vpop.f32.mrb[0].mxu0
  %v515 = vadd.f32 %v418, %v514
  %v516 = vpop.f32.mrb[0].mxu0
  %517 = vdwg.mxu0
  %vm518 = vcmp.gt.f32.partialorder %v500, 0.0
  %vm519 = vcmp.gt.f32.partialorder %v505, 0.0
  %vm520 = vcmp.gt.f32.partialorder %v510, 0.0
  %vm521 = vcmp.gt.f32.partialorder %v515, 0.0
  %v522 = vmul.f32 %v500, 0.01
  %v523 = vmul.f32 %v505, 0.01
  %v524 = vmul.f32 %v510, 0.01
  %v525 = vmul.f32 %v515, 0.01
  %v526 = vsel %vm518, %v500, %v522
  %v527 = vsel %vm519, %v505, %v523
  %v528 = vsel %vm520, %v510, %v524
  %v529 = vsel %vm521, %v515, %v525
  %531 = vset.pattern.permute.xlu0 0
  %532 = vperm.xlu0 %531, %v314
  %v533 = vpop.permute.xlu0 %532
  %536 = vset.pattern.permute.xlu0 0
  %537 = vperm.xlu0 %536, %v315
  %v538 = vpop.permute.xlu0 %537
  %541 = vset.pattern.permute.xlu0 0
  %542 = vperm.xlu0 %541, %v316
  %v543 = vpop.permute.xlu0 %542
  %546 = vset.pattern.permute.xlu0 0
  %547 = vperm.xlu0 %546, %v317
  %v548 = vpop.permute.xlu0 %547
  %v550 = vmul.f32 %v526, %v533
  %v551 = vmul.f32 %v527, %v538
  %v552 = vmul.f32 %v528, %v543
  %v553 = vmul.f32 %v529, %v548
  %v554 = vld [vmem:[#allocation2] sm:$0xff]
  %v555 = vld [vmem:[#allocation2 + $0x8] sm:$0xff]
  %556 = vmatprep.subr.mxu0 0.0
  %557 = vmatpush1.msra.mxu0 %v554
  %558 = vmatprep.subr.mxu0 0.0
  %559 = vmatpush1.msra.mxu0 %v555
  %560 = vmatprep.subr.mxu0 0.0
  %561 = vmatpush1.msra.mxu0 0.0
  %562 = vmatprep.subr.mxu0 0.0
  %563 = vmatpush1.msra.mxu0 0.0
  %564 = vmatprep.subr.mxu0 0.0
  %565 = vmatpush1.msra.mxu0 0.0
  %566 = vmatprep.subr.mxu0 0.0
  %567 = vmatpush1.msra.mxu0 0.0
  %568 = vmatprep.subr.mxu0 0.0
  %569 = vmatpush1.msra.mxu0 0.0
  %570 = vmatprep.subr.mxu0 0.0
  %571 = vmatpush1.msra.mxu0 0.0
  %572 = vmatprep.subr.mxu0 0.0
  %573 = vmatpush1.msra.mxu0 0.0
  %574 = vmatprep.subr.mxu0 0.0
  %575 = vmatpush1.msra.mxu0 0.0
  %576 = vmatprep.subr.mxu0 0.0
  %577 = vmatpush1.msra.mxu0 0.0
  %578 = vmatprep.subr.mxu0 0.0
  %579 = vmatpush1.msra.mxu0 0.0
  %580 = vmatprep.subr.mxu0 0.0
  %581 = vmatpush1.msra.mxu0 0.0
  %582 = vmatprep.subr.mxu0 0.0
  %583 = vmatpush1.msra.mxu0 0.0
  %584 = vmatprep.subr.mxu0 0.0
  %585 = vmatpush1.msra.mxu0 0.0
  %586 = vmatprep.subr.mxu0 0.0
  %587 = vmatpush1.msra.mxu0 0.0
  %588 = vmatprep.subr.mxu0 0.0
  %589 = vmatpush1.msra.mxu0 0.0
  %590 = vmatprep.subr.mxu0 0.0
  %591 = vmatpush1.msra.mxu0 0.0
  %592 = vmatprep.subr.mxu0 0.0
  %593 = vmatpush1.msra.mxu0 0.0
  %594 = vmatprep.subr.mxu0 0.0
  %595 = vmatpush1.msra.mxu0 0.0
  %596 = vmatprep.subr.mxu0 0.0
  %597 = vmatpush1.msra.mxu0 0.0
  %598 = vmatprep.subr.mxu0 0.0
  %599 = vmatpush1.msra.mxu0 0.0
  %600 = vmatprep.subr.mxu0 0.0
  %601 = vmatpush1.msra.mxu0 0.0
  %602 = vmatprep.subr.mxu0 0.0
  %603 = vmatpush1.msra.mxu0 0.0
  %604 = vmatprep.subr.mxu0 0.0
  %605 = vmatpush1.msra.mxu0 0.0
  %606 = vmatprep.subr.mxu0 0.0
  %607 = vmatpush1.msra.mxu0 0.0
  %608 = vmatprep.subr.mxu0 0.0
  %609 = vmatpush1.msra.mxu0 0.0
  %610 = vmatprep.subr.mxu0 0.0
  %611 = vmatpush1.msra.mxu0 0.0
  %612 = vmatprep.subr.mxu0 0.0
  %613 = vmatpush1.msra.mxu0 0.0
  %614 = vmatprep.subr.mxu0 0.0
  %615 = vmatpush1.msra.mxu0 0.0
  %616 = vmatprep.subr.mxu0 0.0
  %617 = vmatpush1.msra.mxu0 0.0
  %618 = vmatprep.subr.mxu0 0.0
  %619 = vmatpush1.msra.mxu0 0.0
  %620 = vmatprep.mubr.f32.mxu0 0.0
  %621 = vmatmul.mubr.f32.gmra.mrb[0].mxu0 %v325
  %v622 = vpop.f32.mrb[0].mxu0
  %v623 = vadd.f32 0.0, %v622
  %v624 = vpop.f32.mrb[0].mxu0
  %625 = vmatprep.mubr.f32.mxu0 0.0
  %626 = vmatmul.mubr.f32.gmra.mrb[0].mxu0 %v328
  %v627 = vpop.f32.mrb[0].mxu0
  %v628 = vadd.f32 0.0, %v627
  %v629 = vpop.f32.mrb[0].mxu0
  %630 = vmatprep.mubr.f32.mxu0 0.0
  %631 = vmatmul.mubr.f32.gmra.mrb[0].mxu0 %v331
  %v632 = vpop.f32.mrb[0].mxu0
  %v633 = vadd.f32 0.0, %v632
  %v634 = vpop.f32.mrb[0].mxu0
  %635 = vmatprep.mubr.f32.mxu0 0.0
  %636 = vmatmul.mubr.f32.gmra.mrb[0].mxu0 %v334
  %v637 = vpop.f32.mrb[0].mxu0
  %v638 = vadd.f32 0.0, %v637
  %v639 = vpop.f32.mrb[0].mxu0
  %640 = vdwg.mxu0
  %vm641 = vcmask 64512
  %v643 = vsel %vm641, %v550, 0
  %v646 = vsel %vm641, %v551, 0
  %v649 = vsel %vm641, %v552, 0
  %v652 = vsel %vm641, %v553, 0
  %654 = vmatprep.subr.mxu0 0.0
  %655 = vmatpush1.msra.mxu0 %v318
  %656 = vmatprep.subr.mxu0 0.0
  %657 = vmatpush1.msra.mxu0 0.0
  %658 = vmatprep.subr.mxu0 0.0
  %659 = vmatpush1.msra.mxu0 0.0
  %660 = vmatprep.subr.mxu0 0.0
  %661 = vmatpush1.msra.mxu0 0.0
  %662 = vmatprep.subr.mxu0 0.0
  %663 = vmatpush1.msra.mxu0 0.0
  %664 = vmatprep.subr.mxu0 0.0
  %665 = vmatpush1.msra.mxu0 0.0
  %666 = vmatprep.subr.mxu0 0.0
  %667 = vmatpush1.msra.mxu0 0.0
  %668 = vmatprep.subr.mxu0 0.0
  %669 = vmatpush1.msra.mxu0 0.0
  %670 = vmatprep.subr.mxu0 0.0
  %671 = vmatpush1.msra.mxu0 0.0
  %672 = vmatprep.subr.mxu0 0.0
  %673 = vmatpush1.msra.mxu0 0.0
  %674 = vmatprep.subr.mxu0 0.0
  %675 = vmatpush1.msra.mxu0 0.0
  %676 = vmatprep.subr.mxu0 0.0
  %677 = vmatpush1.msra.mxu0 0.0
  %678 = vmatprep.subr.mxu0 0.0
  %679 = vmatpush1.msra.mxu0 0.0
  %680 = vmatprep.subr.mxu0 0.0
  %681 = vmatpush1.msra.mxu0 0.0
  %682 = vmatprep.subr.mxu0 0.0
  %683 = vmatpush1.msra.mxu0 0.0
  %684 = vmatprep.subr.mxu0 0.0
  %685 = vmatpush1.msra.mxu0 0.0
  %686 = vmatprep.subr.mxu0 0.0
  %687 = vmatpush1.msra.mxu0 0.0
  %688 = vmatprep.subr.mxu0 0.0
  %689 = vmatpush1.msra.mxu0 0.0
  %690 = vmatprep.subr.mxu0 0.0
  %691 = vmatpush1.msra.mxu0 0.0
  %692 = vmatprep.subr.mxu0 0.0
  %693 = vmatpush1.msra.mxu0 0.0
  %694 = vmatprep.subr.mxu0 0.0
  %695 = vmatpush1.msra.mxu0 0.0
  %696 = vmatprep.subr.mxu0 0.0
  %697 = vmatpush1.msra.mxu0 0.0
  %698 = vmatprep.subr.mxu0 0.0
  %699 = vmatpush1.msra.mxu0 0.0
  %700 = vmatprep.subr.mxu0 0.0
  %701 = vmatpush1.msra.mxu0 0.0
  %702 = vmatprep.subr.mxu0 0.0
  %703 = vmatpush1.msra.mxu0 0.0
  %704 = vmatprep.subr.mxu0 0.0
  %705 = vmatpush1.msra.mxu0 0.0
  %706 = vmatprep.subr.mxu0 0.0
  %707 = vmatpush1.msra.mxu0 0.0
  %708 = vmatprep.subr.mxu0 0.0
  %709 = vmatpush1.msra.mxu0 0.0
  %710 = vmatprep.subr.mxu0 0.0
  %711 = vmatpush1.msra.mxu0 0.0
  %712 = vmatprep.subr.mxu0 0.0
  %713 = vmatpush1.msra.mxu0 0.0
  %714 = vmatprep.subr.mxu0 0.0
  %715 = vmatpush1.msra.mxu0 0.0
  %716 = vmatprep.subr.mxu0 0.0
  %717 = vmatpush1.msra.mxu0 0.0
  %718 = vmatprep.mubr.f32.mxu0 0.0
  %719 = vmatmul.mubr.f32.gmra.mrb[0].mxu0 %v643
  %v720 = vpop.f32.mrb[0].mxu0
  %v721 = vadd.f32 0.0, %v720
  %v722 = vpop.f32.mrb[0].mxu0
  %723 = vmatprep.mubr.f32.mxu0 0.0
  %724 = vmatmul.mubr.f32.gmra.mrb[0].mxu0 %v646
  %v725 = vpop.f32.mrb[0].mxu0
  %v726 = vadd.f32 0.0, %v725
  %v727 = vpop.f32.mrb[0].mxu0
  %728 = vmatprep.mubr.f32.mxu0 0.0
  %729 = vmatmul.mubr.f32.gmra.mrb[0].mxu0 %v649
  %v730 = vpop.f32.mrb[0].mxu0
  %v731 = vadd.f32 0.0, %v730
  %v732 = vpop.f32.mrb[0].mxu0
  %733 = vmatprep.mubr.f32.mxu0 0.0
  %734 = vmatmul.mubr.f32.gmra.mrb[0].mxu0 %v652
  %v735 = vpop.f32.mrb[0].mxu0
  %v736 = vadd.f32 0.0, %v735
  %v737 = vpop.f32.mrb[0].mxu0
  %738 = vdwg.mxu0
  %v739 = vmul.f32 %v721, %v623
  %v740 = vmul.f32 %v726, %v628
  %v741 = vmul.f32 %v731, %v633
  %v742 = vmul.f32 %v736, %v638
  %v743 = vld [vmem:[%s9] sm:$0xff]
  %v744 = vld [vmem:[%s9 + $0x8] sm:$0xff]
  %745 = vxpose.xlu0.b32.start [1/16] %v310, 128
  %746 = vxpose.xlu0.b32.cont [2/16] %v311, 128
  %747 = vxpose.xlu0.b32.cont [3/16] %v312, 128
  %748 = vxpose.xlu0.b32.cont [4/16] %v313, 128
  %749 = vxpose.xlu0.b32.cont [5/16] 0.0, 128
  %750 = vxpose.xlu0.b32.cont [6/16] 0.0, 128
  %751 = vxpose.xlu0.b32.cont [7/16] 0.0, 128
  %752 = vxpose.xlu0.b32.cont [8/16] 0.0, 128
  %753 = vxpose.xlu0.b32.cont [9/16] 0.0, 128
  %754 = vxpose.xlu0.b32.cont [10/16] 0.0, 128
  %755 = vxpose.xlu0.b32.cont [11/16] 0.0, 128
  %756 = vxpose.xlu0.b32.cont [12/16] 0.0, 128
  %757 = vxpose.xlu0.b32.cont [13/16] 0.0, 128
  %758 = vxpose.xlu0.b32.cont [14/16] 0.0, 128
  %759 = vxpose.xlu0.b32.cont [15/16] 0.0, 128
  %760 = vxpose.xlu0.b32.end [16/16] 0.0, 128
  %v761 = vpop.trf.xlu0
  %v762 = vpop.trf.xlu0
  %v763 = vpop.trf.xlu0
  %v764 = vpop.trf.xlu0
  %v765 = vpop.trf.xlu0
  %v766 = vpop.trf.xlu0
  %v767 = vpop.trf.xlu0
  %v768 = vpop.trf.xlu0
  %v769 = vpop.trf.xlu0
  %v770 = vpop.trf.xlu0
  %v771 = vpop.trf.xlu0
  %v772 = vpop.trf.xlu0
  %v773 = vpop.trf.xlu0
  %v774 = vpop.trf.xlu0
  %v775 = vpop.trf.xlu0
  %v776 = vpop.trf.xlu0
  %vm777 = vcmask 261120
  %v779 = vsel %vm777, %v761, 0
  %v782 = vsel %vm777, %v762, 0
  %784 = vmatprep.subr.mxu0 0.0
  %785 = vmatpush1.msra.mxu0 %v739
  %786 = vmatprep.subr.mxu0 0.0
  %787 = vmatpush1.msra.mxu0 %v740
  %788 = vmatprep.subr.mxu0 0.0
  %789 = vmatpush1.msra.mxu0 %v741
  %790 = vmatprep.subr.mxu0 0.0
  %791 = vmatpush1.msra.mxu0 %v742
  %792 = vmatprep.subr.mxu0 0.0
  %793 = vmatpush1.msra.mxu0 0.0
  %794 = vmatprep.subr.mxu0 0.0
  %795 = vmatpush1.msra.mxu0 0.0
  %796 = vmatprep.subr.mxu0 0.0
  %797 = vmatpush1.msra.mxu0 0.0
  %798 = vmatprep.subr.mxu0 0.0
  %799 = vmatpush1.msra.mxu0 0.0
  %800 = vmatprep.subr.mxu0 0.0
  %801 = vmatpush1.msra.mxu0 0.0
  %802 = vmatprep.subr.mxu0 0.0
  %803 = vmatpush1.msra.mxu0 0.0
  %804 = vmatprep.subr.mxu0 0.0
  %805 = vmatpush1.msra.mxu0 0.0
  %806 = vmatprep.subr.mxu0 0.0
  %807 = vmatpush1.msra.mxu0 0.0
  %808 = vmatprep.subr.mxu0 0.0
  %809 = vmatpush1.msra.mxu0 0.0
  %810 = vmatprep.subr.mxu0 0.0
  %811 = vmatpush1.msra.mxu0 0.0
  %812 = vmatprep.subr.mxu0 0.0
  %813 = vmatpush1.msra.mxu0 0.0
  %814 = vmatprep.subr.mxu0 0.0
  %815 = vmatpush1.msra.mxu0 0.0
  %816 = vmatprep.subr.mxu0 0.0
  %817 = vmatpush1.msra.mxu0 0.0
  %818 = vmatprep.subr.mxu0 0.0
  %819 = vmatpush1.msra.mxu0 0.0
  %820 = vmatprep.subr.mxu0 0.0
  %821 = vmatpush1.msra.mxu0 0.0
  %822 = vmatprep.subr.mxu0 0.0
  %823 = vmatpush1.msra.mxu0 0.0
  %824 = vmatprep.subr.mxu0 0.0
  %825 = vmatpush1.msra.mxu0 0.0
  %826 = vmatprep.subr.mxu0 0.0
  %827 = vmatpush1.msra.mxu0 0.0
  %828 = vmatprep.subr.mxu0 0.0
  %829 = vmatpush1.msra.mxu0 0.0
  %830 = vmatprep.subr.mxu0 0.0
  %831 = vmatpush1.msra.mxu0 0.0
  %832 = vmatprep.subr.mxu0 0.0
  %833 = vmatpush1.msra.mxu0 0.0
  %834 = vmatprep.subr.mxu0 0.0
  %835 = vmatpush1.msra.mxu0 0.0
  %836 = vmatprep.subr.mxu0 0.0
  %837 = vmatpush1.msra.mxu0 0.0
  %838 = vmatprep.subr.mxu0 0.0
  %839 = vmatpush1.msra.mxu0 0.0
  %840 = vmatprep.subr.mxu0 0.0
  %841 = vmatpush1.msra.mxu0 0.0
  %842 = vmatprep.subr.mxu0 0.0
  %843 = vmatpush1.msra.mxu0 0.0
  %844 = vmatprep.subr.mxu0 0.0
  %845 = vmatpush1.msra.mxu0 0.0
  %846 = vmatprep.subr.mxu0 0.0
  %847 = vmatpush1.msra.mxu0 0.0
  %848 = vmatprep.mubr.f32.mxu0 0.0
  %849 = vmatmul.mubr.f32.gmra.mrb[0].mxu0 %v779
  %v850 = vpop.f32.mrb[0].mxu0
  %v851 = vadd.f32 0.0, %v850
  %v852 = vpop.f32.mrb[0].mxu0
  %853 = vmatprep.mubr.f32.mxu0 0.0
  %854 = vmatmul.mubr.f32.gmra.mrb[0].mxu0 %v782
  %v855 = vpop.f32.mrb[0].mxu0
  %v856 = vadd.f32 0.0, %v855
  %v857 = vpop.f32.mrb[0].mxu0
  %858 = vdwg.mxu0
  %v859 = vadd.f32 %v743, %v851
  %v860 = vadd.f32 %v744, %v856
  %861 = vst.msk [vmem:[%s9] sm:$0xff] %vm323, %v859
  %862 = vst.msk [vmem:[%s9 + $0x8] sm:$0xff] %vm323, %v860
  // Predicated region
  $region42: #{gat_forward.7} parent=0 // pred_check
    %p863 = pneg %p32
  $region43: #{gat_forward.7} parent=0 // pred_check_branch
    %865 = sbr.rel (%p863) target = $region45
  $region44: #{gat_forward.7} parent=0 // pred_region
    %v866 = vld [vmem:[%s9] sm:$0xff]
    %v867 = vld [vmem:[%s9 + $0x8] sm:$0xff]
    %v868 = vsel %vm323, %v866, 0.0
    %v869 = vsel %vm323, %v867, 0.0
    %v870 = vadd.f32 %v868, %v869
    %v871 = vrot.slane %v870, 4
    %v872 = vadd.f32 %v870, %v871
    %v873 = vrot.slane %v872, 2
    %v874 = vadd.f32 %v872, %v873
    %v875 = vrot.slane %v874, 1
    %v876 = vadd.f32 %v874, %v875
    %v877 = vrcp.pop 16.0
    %v878 = vmul.f32 %v876, %v877
    %v879 = vsub.f32 %v866, %v878
    %v880 = vsub.f32 %v867, %v878
    %v881 = vmul.f32 %v879, %v879
    %v882 = vmul.f32 %v880, %v880
    %v883 = vsel %vm323, %v881, 0.0
    %v884 = vsel %vm323, %v882, 0.0
    %v885 = vadd.f32 %v883, %v884
    %v886 = vrot.slane %v885, 4
    %v887 = vadd.f32 %v885, %v886
    %v888 = vrot.slane %v887, 2
    %v889 = vadd.f32 %v887, %v888
    %v890 = vrot.slane %v889, 1
    %v891 = vadd.f32 %v889, %v890
    %v892 = vmul.f32 %v891, %v877
    %v893 = vadd.f32 %v892, 1e-05
    %v894 = vrsqrt.pop %v893
    %v895 = vmul.f32 %v879, %v894
    %v896 = vmul.f32 %v880, %v894
    %v897 = vmax.f32 %v895, 0.0
    %v898 = vmax.f32 %v896, 0.0
    %899 = vst.msk [vmem:[%s9] sm:$0xff] %vm323, %v897
    %900 = vst.msk [vmem:[%s9 + $0x8] sm:$0xff] %vm323, %v898
  $region45: #{gat_forward.7} parent=0 // pred_fallthru
    _
  // Predicated region
  $region46: #{gat_forward.7} parent=0 // pred_check
    _
  $region47: #{gat_forward.7} parent=0 // pred_check_branch
    %902 = sbr.rel (0) target = $region49
  $region48: #{gat_forward.7} parent=0 // pred_region
    _
  $region49: #{gat_forward.7} parent=0 // pred_fallthru
    _
  // Predicated region
  $region50: #{gat_forward.7} parent=0 // pred_check
    _
  $region51: #{gat_forward.7} parent=0 // pred_check_branch
    %904 = sbr.rel (0) target = $region53
  $region52: #{gat_forward.7} parent=0 // pred_region
    _
  $region53: #{gat_forward.7} parent=0 // pred_fallthru
    _

// kernel: gat_forward.8
$region0: #{gat_forward.8}
  #allocation0 [shape = 'u32[]', space=smem, size = 0x4, offset = 0x4, fixed_abs, tag = 'smem constant byte address 0x4 - core index']
  #allocation1 [shape = 'u32[144,128]{1,0:T(1,128)}', space=vmem, size = 0x12000, scoped, tag = 'internal scratch']
  #allocation2 [shape = 'f32[2,16,16]{2,1,0:T(8,128)}', space=vmem, size = 0x4000, scoped, tag = 'scratch operand']
  #allocation3 [shape = 'f32[2,16,8]{2,1,0:T(8,128)}', space=vmem, size = 0x4000, scoped, tag = 'scratch operand']
  #allocation4 [shape = 'f32[2,16,8]{2,1,0:T(8,128)}', space=vmem, size = 0x4000, scoped, tag = 'scratch operand']
  %s0 = inlined_call_operand.vmem [shape: f32[2,16,16], index: 0, kind: input, shape index: {}]
  %s1 = inlined_call_operand.vmem [shape: f32[16,16], index: 1, kind: input, shape index: {}]
  %s2 = inlined_call_operand.vmem [shape: f32[1,16], index: 2, kind: input, shape index: {}]
  %s3 = inlined_call_operand.vmem [shape: f32[16,8], index: 3, kind: input, shape index: {}]
  %s4 = inlined_call_operand.vmem [shape: f32[16,8], index: 4, kind: input, shape index: {}]
  %s5 = inlined_call_operand.vmem [shape: f32[8,16], index: 5, kind: input, shape index: {}]
  %s6 = inlined_call_operand.vmem [shape: bf16[32,16], index: 6, kind: input, shape index: {}]
  %s7 = inlined_call_operand.vmem [shape: bf16[32,16], index: 7, kind: input, shape index: {}]
  %s8 = inlined_call_operand.vmem [shape: f32[32,1], index: 8, kind: input, shape index: {}]
  %s9 = inlined_call_operand.vmem [shape: f32[16,16], index: 9, kind: output, shape index: {}]
  %s10 = sld [smem:[#allocation0]]
  $region54: #{gat_forward.8} parent=0
    _
  %s12 = ssub.s32 1, %s10
  %s13 = scalar_select 0, %s12, %s10
  // Predicated region
  $region2: #{gat_forward.8} parent=0 // pred_check
    _
  $region3: #{gat_forward.8} parent=0 // pred_check_branch
    %15 = sbr.rel (0) target = $region5
  $region4: #{gat_forward.8} parent=0 // pred_region
    _
  $region5: #{gat_forward.8} parent=0 // pred_fallthru
    _
  // Predicated region
  $region6: #{gat_forward.8} parent=0 // pred_check
    _
  $region7: #{gat_forward.8} parent=0 // pred_check_branch
    %17 = sbr.rel (0) target = $region9
  $region8: #{gat_forward.8} parent=0 // pred_region
    _
  $region9: #{gat_forward.8} parent=0 // pred_fallthru
    _
  // Predicated region
  $region10: #{gat_forward.8} parent=0 // pred_check
    _
  $region11: #{gat_forward.8} parent=0 // pred_check_branch
    %19 = sbr.rel (0) target = $region13
  $region12: #{gat_forward.8} parent=0 // pred_region
    _
  $region13: #{gat_forward.8} parent=0 // pred_fallthru
    _
  // Predicated region
  $region14: #{gat_forward.8} parent=0 // pred_check
    _
  $region15: #{gat_forward.8} parent=0 // pred_check_branch
    %21 = sbr.rel (0) target = $region17
  $region16: #{gat_forward.8} parent=0 // pred_region
    _
  $region17: #{gat_forward.8} parent=0 // pred_fallthru
    _
  // Predicated region
  $region18: #{gat_forward.8} parent=0 // pred_check
    _
  $region19: #{gat_forward.8} parent=0 // pred_check_branch
    %23 = sbr.rel (0) target = $region21
  $region20: #{gat_forward.8} parent=0 // pred_region
    _
  $region21: #{gat_forward.8} parent=0 // pred_fallthru
    _
  // Predicated region
  $region22: #{gat_forward.8} parent=0 // pred_check
    _
  $region23: #{gat_forward.8} parent=0 // pred_check_branch
    %25 = sbr.rel (0) target = $region25
  $region24: #{gat_forward.8} parent=0 // pred_region
    _
  $region25: #{gat_forward.8} parent=0 // pred_fallthru
    _
  // Predicated region
  $region26: #{gat_forward.8} parent=0 // pred_check
    _
  $region27: #{gat_forward.8} parent=0 // pred_check_branch
    %27 = sbr.rel (0) target = $region29
  $region28: #{gat_forward.8} parent=0 // pred_region
    _
  $region29: #{gat_forward.8} parent=0 // pred_fallthru
    _
  // Predicated region
  $region30: #{gat_forward.8} parent=0 // pred_check
    _
  $region31: #{gat_forward.8} parent=0 // pred_check_branch
    %29 = sbr.rel (0) target = $region33
  $region32: #{gat_forward.8} parent=0 // pred_region
    _
  $region33: #{gat_forward.8} parent=0 // pred_fallthru
    _
  // Predicated region
  $region34: #{gat_forward.8} parent=0 // pred_check
    _
  $region35: #{gat_forward.8} parent=0 // pred_check_branch
    %31 = sbr.rel (0) target = $region37
  $region36: #{gat_forward.8} parent=0 // pred_region
    _
  $region37: #{gat_forward.8} parent=0 // pred_fallthru
    _
  %p32 = scmp.eq.s32.totalorder 0, 0
  // Predicated region
  $region38: #{gat_forward.8} parent=0 // pred_check
    %p33 = pneg %p32
  $region39: #{gat_forward.8} parent=0 // pred_check_branch
    %35 = sbr.rel (%p33) target = $region41
  $region40: #{gat_forward.8} parent=0 // pred_region
    %vm36 = vcmask 130048
    %37 = vst.msk [vmem:[%s9] sm:$0xff] %vm36, 0.0
    %38 = vst.msk [vmem:[%s9 + $0x8] sm:$0xff] %vm36, 0.0
    %v39 = vld [vmem:[%s1] sm:$0xff]
    %v40 = vld [vmem:[%s1 + $0x8] sm:$0xff]
    %v41 = vld [vmem:[%s2] sm:$0x1]
    %v42 = vld [vmem:[%s3] sm:$0xff]
    %v43 = vld [vmem:[%s3 + $0x8] sm:$0xff]
    %v44 = vld [vmem:[%s4] sm:$0xff]
    %v45 = vld [vmem:[%s4 + $0x8] sm:$0xff]
    %v46 = vld [vmem:[%s0] sm:$0xff]
    %v47 = vld [vmem:[%s0 + $0x8] sm:$0xff]
    %v49 = vlaneseq
    %v50 = vshrl.u32 %v49, 7
    %v51 = vsub.s32 0, %v50
    %v52 = vrot.slane %v41, %v51
    %v55 = vsel %vm36, %v46, 0
    %v58 = vsel %vm36, %v47, 0
    %60 = vmatprep.subr.mxu0 0.0
    %61 = vmatpush1.msra.mxu0 %v39
    %62 = vmatprep.subr.mxu0 0.0
    %63 = vmatpush1.msra.mxu0 %v40
    %64 = vmatprep.subr.mxu0 0.0
    %65 = vmatpush1.msra.mxu0 0.0
    %66 = vmatprep.subr.mxu0 0.0
    %67 = vmatpush1.msra.mxu0 0.0
    %68 = vmatprep.subr.mxu0 0.0
    %69 = vmatpush1.msra.mxu0 0.0
    %70 = vmatprep.subr.mxu0 0.0
    %71 = vmatpush1.msra.mxu0 0.0
    %72 = vmatprep.subr.mxu0 0.0
    %73 = vmatpush1.msra.mxu0 0.0
    %74 = vmatprep.subr.mxu0 0.0
    %75 = vmatpush1.msra.mxu0 0.0
    %76 = vmatprep.subr.mxu0 0.0
    %77 = vmatpush1.msra.mxu0 0.0
    %78 = vmatprep.subr.mxu0 0.0
    %79 = vmatpush1.msra.mxu0 0.0
    %80 = vmatprep.subr.mxu0 0.0
    %81 = vmatpush1.msra.mxu0 0.0
    %82 = vmatprep.subr.mxu0 0.0
    %83 = vmatpush1.msra.mxu0 0.0
    %84 = vmatprep.subr.mxu0 0.0
    %85 = vmatpush1.msra.mxu0 0.0
    %86 = vmatprep.subr.mxu0 0.0
    %87 = vmatpush1.msra.mxu0 0.0
    %88 = vmatprep.subr.mxu0 0.0
    %89 = vmatpush1.msra.mxu0 0.0
    %90 = vmatprep.subr.mxu0 0.0
    %91 = vmatpush1.msra.mxu0 0.0
    %92 = vmatprep.subr.mxu0 0.0
    %93 = vmatpush1.msra.mxu0 0.0
    %94 = vmatprep.subr.mxu0 0.0
    %95 = vmatpush1.msra.mxu0 0.0
    %96 = vmatprep.subr.mxu0 0.0
    %97 = vmatpush1.msra.mxu0 0.0
    %98 = vmatprep.subr.mxu0 0.0
    %99 = vmatpush1.msra.mxu0 0.0
    %100 = vmatprep.subr.mxu0 0.0
    %101 = vmatpush1.msra.mxu0 0.0
    %102 = vmatprep.subr.mxu0 0.0
    %103 = vmatpush1.msra.mxu0 0.0
    %104 = vmatprep.subr.mxu0 0.0
    %105 = vmatpush1.msra.mxu0 0.0
    %106 = vmatprep.subr.mxu0 0.0
    %107 = vmatpush1.msra.mxu0 0.0
    %108 = vmatprep.subr.mxu0 0.0
    %109 = vmatpush1.msra.mxu0 0.0
    %110 = vmatprep.subr.mxu0 0.0
    %111 = vmatpush1.msra.mxu0 0.0
    %112 = vmatprep.subr.mxu0 0.0
    %113 = vmatpush1.msra.mxu0 0.0
    %114 = vmatprep.subr.mxu0 0.0
    %115 = vmatpush1.msra.mxu0 0.0
    %116 = vmatprep.subr.mxu0 0.0
    %117 = vmatpush1.msra.mxu0 0.0
    %118 = vmatprep.subr.mxu0 0.0
    %119 = vmatpush1.msra.mxu0 0.0
    %120 = vmatprep.subr.mxu0 0.0
    %121 = vmatpush1.msra.mxu0 0.0
    %122 = vmatprep.subr.mxu0 0.0
    %123 = vmatpush1.msra.mxu0 0.0
    %124 = vmatprep.mubr.f32.mxu0 0.0
    %125 = vmatmul.mubr.f32.gmra.mrb[0].mxu0 %v55
    %v126 = vpop.f32.mrb[0].mxu0
    %v127 = vadd.f32 %v52, %v126
    %v128 = vpop.f32.mrb[0].mxu0
    %129 = vmatprep.mubr.f32.mxu0 0.0
    %130 = vmatmul.mubr.f32.gmra.mrb[0].mxu0 %v58
    %v131 = vpop.f32.mrb[0].mxu0
    %v132 = vadd.f32 %v52, %v131
    %v133 = vpop.f32.mrb[0].mxu0
    %134 = vdwg.mxu0
    %135 = vst.msk [vmem:[#allocation2] sm:$0xff] %vm36, %v127
    %136 = vst.msk [vmem:[#allocation2 + $0x8] sm:$0xff] %vm36, %v132
    %v138 = vsel %vm36, %v127, 0
    %v141 = vsel %vm36, %v132, 0
    %143 = vmatprep.subr.mxu0 0.0
    %144 = vmatpush1.msra.mxu0 %v42
    %145 = vmatprep.subr.mxu0 0.0
    %146 = vmatpush1.msra.mxu0 %v43
    %147 = vmatprep.subr.mxu0 0.0
    %148 = vmatpush1.msra.mxu0 0.0
    %149 = vmatprep.subr.mxu0 0.0
    %150 = vmatpush1.msra.mxu0 0.0
    %151 = vmatprep.subr.mxu0 0.0
    %152 = vmatpush1.msra.mxu0 0.0
    %153 = vmatprep.subr.mxu0 0.0
    %154 = vmatpush1.msra.mxu0 0.0
    %155 = vmatprep.subr.mxu0 0.0
    %156 = vmatpush1.msra.mxu0 0.0
    %157 = vmatprep.subr.mxu0 0.0
    %158 = vmatpush1.msra.mxu0 0.0
    %159 = vmatprep.subr.mxu0 0.0
    %160 = vmatpush1.msra.mxu0 0.0
    %161 = vmatprep.subr.mxu0 0.0
    %162 = vmatpush1.msra.mxu0 0.0
    %163 = vmatprep.subr.mxu0 0.0
    %164 = vmatpush1.msra.mxu0 0.0
    %165 = vmatprep.subr.mxu0 0.0
    %166 = vmatpush1.msra.mxu0 0.0
    %167 = vmatprep.subr.mxu0 0.0
    %168 = vmatpush1.msra.mxu0 0.0
    %169 = vmatprep.subr.mxu0 0.0
    %170 = vmatpush1.msra.mxu0 0.0
    %171 = vmatprep.subr.mxu0 0.0
    %172 = vmatpush1.msra.mxu0 0.0
    %173 = vmatprep.subr.mxu0 0.0
    %174 = vmatpush1.msra.mxu0 0.0
    %175 = vmatprep.subr.mxu0 0.0
    %176 = vmatpush1.msra.mxu0 0.0
    %177 = vmatprep.subr.mxu0 0.0
    %178 = vmatpush1.msra.mxu0 0.0
    %179 = vmatprep.subr.mxu0 0.0
    %180 = vmatpush1.msra.mxu0 0.0
    %181 = vmatprep.subr.mxu0 0.0
    %182 = vmatpush1.msra.mxu0 0.0
    %183 = vmatprep.subr.mxu0 0.0
    %184 = vmatpush1.msra.mxu0 0.0
    %185 = vmatprep.subr.mxu0 0.0
    %186 = vmatpush1.msra.mxu0 0.0
    %187 = vmatprep.subr.mxu0 0.0
    %188 = vmatpush1.msra.mxu0 0.0
    %189 = vmatprep.subr.mxu0 0.0
    %190 = vmatpush1.msra.mxu0 0.0
    %191 = vmatprep.subr.mxu0 0.0
    %192 = vmatpush1.msra.mxu0 0.0
    %193 = vmatprep.subr.mxu0 0.0
    %194 = vmatpush1.msra.mxu0 0.0
    %195 = vmatprep.subr.mxu0 0.0
    %196 = vmatpush1.msra.mxu0 0.0
    %197 = vmatprep.subr.mxu0 0.0
    %198 = vmatpush1.msra.mxu0 0.0
    %199 = vmatprep.subr.mxu0 0.0
    %200 = vmatpush1.msra.mxu0 0.0
    %201 = vmatprep.subr.mxu0 0.0
    %202 = vmatpush1.msra.mxu0 0.0
    %203 = vmatprep.subr.mxu0 0.0
    %204 = vmatpush1.msra.mxu0 0.0
    %205 = vmatprep.subr.mxu0 0.0
    %206 = vmatpush1.msra.mxu0 0.0
    %207 = vmatprep.mubr.f32.mxu0 0.0
    %208 = vmatmul.mubr.f32.gmra.mrb[0].mxu0 %v138
    %v209 = vpop.f32.mrb[0].mxu0
    %v210 = vadd.f32 0.0, %v209
    %v211 = vpop.f32.mrb[0].mxu0
    %212 = vmatprep.mubr.f32.mxu0 0.0
    %213 = vmatmul.mubr.f32.gmra.mrb[0].mxu0 %v141
    %v214 = vpop.f32.mrb[0].mxu0
    %v215 = vadd.f32 0.0, %v214
    %v216 = vpop.f32.mrb[0].mxu0
    %217 = vdwg.mxu0
    %vm218 = vcmask 64512
    %219 = vst.msk [vmem:[#allocation3] sm:$0xff] %vm218, %v210
    %220 = vst.msk [vmem:[#allocation3 + $0x8] sm:$0xff] %vm218, %v215
    %221 = vmatprep.subr.mxu0 0.0
    %222 = vmatpush1.msra.mxu0 %v44
    %223 = vmatprep.subr.mxu0 0.0
    %224 = vmatpush1.msra.mxu0 %v45
    %225 = vmatprep.subr.mxu0 0.0
    %226 = vmatpush1.msra.mxu0 0.0
    %227 = vmatprep.subr.mxu0 0.0
    %228 = vmatpush1.msra.mxu0 0.0
    %229 = vmatprep.subr.mxu0 0.0
    %230 = vmatpush1.msra.mxu0 0.0
    %231 = vmatprep.subr.mxu0 0.0
    %232 = vmatpush1.msra.mxu0 0.0
    %233 = vmatprep.subr.mxu0 0.0
    %234 = vmatpush1.msra.mxu0 0.0
    %235 = vmatprep.subr.mxu0 0.0
    %236 = vmatpush1.msra.mxu0 0.0
    %237 = vmatprep.subr.mxu0 0.0
    %238 = vmatpush1.msra.mxu0 0.0
    %239 = vmatprep.subr.mxu0 0.0
    %240 = vmatpush1.msra.mxu0 0.0
    %241 = vmatprep.subr.mxu0 0.0
    %242 = vmatpush1.msra.mxu0 0.0
    %243 = vmatprep.subr.mxu0 0.0
    %244 = vmatpush1.msra.mxu0 0.0
    %245 = vmatprep.subr.mxu0 0.0
    %246 = vmatpush1.msra.mxu0 0.0
    %247 = vmatprep.subr.mxu0 0.0
    %248 = vmatpush1.msra.mxu0 0.0
    %249 = vmatprep.subr.mxu0 0.0
    %250 = vmatpush1.msra.mxu0 0.0
    %251 = vmatprep.subr.mxu0 0.0
    %252 = vmatpush1.msra.mxu0 0.0
    %253 = vmatprep.subr.mxu0 0.0
    %254 = vmatpush1.msra.mxu0 0.0
    %255 = vmatprep.subr.mxu0 0.0
    %256 = vmatpush1.msra.mxu0 0.0
    %257 = vmatprep.subr.mxu0 0.0
    %258 = vmatpush1.msra.mxu0 0.0
    %259 = vmatprep.subr.mxu0 0.0
    %260 = vmatpush1.msra.mxu0 0.0
    %261 = vmatprep.subr.mxu0 0.0
    %262 = vmatpush1.msra.mxu0 0.0
    %263 = vmatprep.subr.mxu0 0.0
    %264 = vmatpush1.msra.mxu0 0.0
    %265 = vmatprep.subr.mxu0 0.0
    %266 = vmatpush1.msra.mxu0 0.0
    %267 = vmatprep.subr.mxu0 0.0
    %268 = vmatpush1.msra.mxu0 0.0
    %269 = vmatprep.subr.mxu0 0.0
    %270 = vmatpush1.msra.mxu0 0.0
    %271 = vmatprep.subr.mxu0 0.0
    %272 = vmatpush1.msra.mxu0 0.0
    %273 = vmatprep.subr.mxu0 0.0
    %274 = vmatpush1.msra.mxu0 0.0
    %275 = vmatprep.subr.mxu0 0.0
    %276 = vmatpush1.msra.mxu0 0.0
    %277 = vmatprep.subr.mxu0 0.0
    %278 = vmatpush1.msra.mxu0 0.0
    %279 = vmatprep.subr.mxu0 0.0
    %280 = vmatpush1.msra.mxu0 0.0
    %281 = vmatprep.subr.mxu0 0.0
    %282 = vmatpush1.msra.mxu0 0.0
    %283 = vmatprep.subr.mxu0 0.0
    %284 = vmatpush1.msra.mxu0 0.0
    %285 = vmatprep.mubr.f32.mxu0 0.0
    %286 = vmatmul.mubr.f32.gmra.mrb[0].mxu0 %v138
    %v287 = vpop.f32.mrb[0].mxu0
    %v288 = vadd.f32 0.0, %v287
    %v289 = vpop.f32.mrb[0].mxu0
    %290 = vmatprep.mubr.f32.mxu0 0.0
    %291 = vmatmul.mubr.f32.gmra.mrb[0].mxu0 %v141
    %v292 = vpop.f32.mrb[0].mxu0
    %v293 = vadd.f32 0.0, %v292
    %v294 = vpop.f32.mrb[0].mxu0
    %295 = vdwg.mxu0
    %296 = vst.msk [vmem:[#allocation4] sm:$0xff] %vm218, %v288
    %297 = vst.msk [vmem:[#allocation4 + $0x8] sm:$0xff] %vm218, %v293
    %s298 = scalar_lea.vmem %s0, 16
    %v299 = vld [vmem:[%s298] sm:$0xff]
    %v300 = vld [vmem:[%s298 + $0x8] sm:$0xff]
    %v302 = vsel %vm36, %v299, 0
    %v305 = vsel %vm36, %v300, 0
    %307 = vmatprep.subr.mxu0 0.0
    %308 = vmatpush1.msra.mxu0 %v39
    %309 = vmatprep.subr.mxu0 0.0
    %310 = vmatpush1.msra.mxu0 %v40
    %311 = vmatprep.subr.mxu0 0.0
    %312 = vmatpush1.msra.mxu0 0.0
    %313 = vmatprep.subr.mxu0 0.0
    %314 = vmatpush1.msra.mxu0 0.0
    %315 = vmatprep.subr.mxu0 0.0
    %316 = vmatpush1.msra.mxu0 0.0
    %317 = vmatprep.subr.mxu0 0.0
    %318 = vmatpush1.msra.mxu0 0.0
    %319 = vmatprep.subr.mxu0 0.0
    %320 = vmatpush1.msra.mxu0 0.0
    %321 = vmatprep.subr.mxu0 0.0
    %322 = vmatpush1.msra.mxu0 0.0
    %323 = vmatprep.subr.mxu0 0.0
    %324 = vmatpush1.msra.mxu0 0.0
    %325 = vmatprep.subr.mxu0 0.0
    %326 = vmatpush1.msra.mxu0 0.0
    %327 = vmatprep.subr.mxu0 0.0
    %328 = vmatpush1.msra.mxu0 0.0
    %329 = vmatprep.subr.mxu0 0.0
    %330 = vmatpush1.msra.mxu0 0.0
    %331 = vmatprep.subr.mxu0 0.0
    %332 = vmatpush1.msra.mxu0 0.0
    %333 = vmatprep.subr.mxu0 0.0
    %334 = vmatpush1.msra.mxu0 0.0
    %335 = vmatprep.subr.mxu0 0.0
    %336 = vmatpush1.msra.mxu0 0.0
    %337 = vmatprep.subr.mxu0 0.0
    %338 = vmatpush1.msra.mxu0 0.0
    %339 = vmatprep.subr.mxu0 0.0
    %340 = vmatpush1.msra.mxu0 0.0
    %341 = vmatprep.subr.mxu0 0.0
    %342 = vmatpush1.msra.mxu0 0.0
    %343 = vmatprep.subr.mxu0 0.0
    %344 = vmatpush1.msra.mxu0 0.0
    %345 = vmatprep.subr.mxu0 0.0
    %346 = vmatpush1.msra.mxu0 0.0
    %347 = vmatprep.subr.mxu0 0.0
    %348 = vmatpush1.msra.mxu0 0.0
    %349 = vmatprep.subr.mxu0 0.0
    %350 = vmatpush1.msra.mxu0 0.0
    %351 = vmatprep.subr.mxu0 0.0
    %352 = vmatpush1.msra.mxu0 0.0
    %353 = vmatprep.subr.mxu0 0.0
    %354 = vmatpush1.msra.mxu0 0.0
    %355 = vmatprep.subr.mxu0 0.0
    %356 = vmatpush1.msra.mxu0 0.0
    %357 = vmatprep.subr.mxu0 0.0
    %358 = vmatpush1.msra.mxu0 0.0
    %359 = vmatprep.subr.mxu0 0.0
    %360 = vmatpush1.msra.mxu0 0.0
    %361 = vmatprep.subr.mxu0 0.0
    %362 = vmatpush1.msra.mxu0 0.0
    %363 = vmatprep.subr.mxu0 0.0
    %364 = vmatpush1.msra.mxu0 0.0
    %365 = vmatprep.subr.mxu0 0.0
    %366 = vmatpush1.msra.mxu0 0.0
    %367 = vmatprep.subr.mxu0 0.0
    %368 = vmatpush1.msra.mxu0 0.0
    %369 = vmatprep.subr.mxu0 0.0
    %370 = vmatpush1.msra.mxu0 0.0
    %371 = vmatprep.mubr.f32.mxu0 0.0
    %372 = vmatmul.mubr.f32.gmra.mrb[0].mxu0 %v302
    %v373 = vpop.f32.mrb[0].mxu0
    %v374 = vadd.f32 %v52, %v373
    %v375 = vpop.f32.mrb[0].mxu0
    %376 = vmatprep.mubr.f32.mxu0 0.0
    %377 = vmatmul.mubr.f32.gmra.mrb[0].mxu0 %v305
    %v378 = vpop.f32.mrb[0].mxu0
    %v379 = vadd.f32 %v52, %v378
    %v380 = vpop.f32.mrb[0].mxu0
    %381 = vdwg.mxu0
    %s382 = scalar_lea.vmem [#allocation2], 16
    %383 = vst.msk [vmem:[%s382] sm:$0xff] %vm36, %v374
    %384 = vst.msk [vmem:[%s382 + $0x8] sm:$0xff] %vm36, %v379
    %v386 = vsel %vm36, %v374, 0
    %v389 = vsel %vm36, %v379, 0
    %391 = vmatprep.subr.mxu0 0.0
    %392 = vmatpush1.msra.mxu0 %v42
    %393 = vmatprep.subr.mxu0 0.0
    %394 = vmatpush1.msra.mxu0 %v43
    %395 = vmatprep.subr.mxu0 0.0
    %396 = vmatpush1.msra.mxu0 0.0
    %397 = vmatprep.subr.mxu0 0.0
    %398 = vmatpush1.msra.mxu0 0.0
    %399 = vmatprep.subr.mxu0 0.0
    %400 = vmatpush1.msra.mxu0 0.0
    %401 = vmatprep.subr.mxu0 0.0
    %402 = vmatpush1.msra.mxu0 0.0
    %403 = vmatprep.subr.mxu0 0.0
    %404 = vmatpush1.msra.mxu0 0.0
    %405 = vmatprep.subr.mxu0 0.0
    %406 = vmatpush1.msra.mxu0 0.0
    %407 = vmatprep.subr.mxu0 0.0
    %408 = vmatpush1.msra.mxu0 0.0
    %409 = vmatprep.subr.mxu0 0.0
    %410 = vmatpush1.msra.mxu0 0.0
    %411 = vmatprep.subr.mxu0 0.0
    %412 = vmatpush1.msra.mxu0 0.0
    %413 = vmatprep.subr.mxu0 0.0
    %414 = vmatpush1.msra.mxu0 0.0
    %415 = vmatprep.subr.mxu0 0.0
    %416 = vmatpush1.msra.mxu0 0.0
    %417 = vmatprep.subr.mxu0 0.0
    %418 = vmatpush1.msra.mxu0 0.0
    %419 = vmatprep.subr.mxu0 0.0
    %420 = vmatpush1.msra.mxu0 0.0
    %421 = vmatprep.subr.mxu0 0.0
    %422 = vmatpush1.msra.mxu0 0.0
    %423 = vmatprep.subr.mxu0 0.0
    %424 = vmatpush1.msra.mxu0 0.0
    %425 = vmatprep.subr.mxu0 0.0
    %426 = vmatpush1.msra.mxu0 0.0
    %427 = vmatprep.subr.mxu0 0.0
    %428 = vmatpush1.msra.mxu0 0.0
    %429 = vmatprep.subr.mxu0 0.0
    %430 = vmatpush1.msra.mxu0 0.0
    %431 = vmatprep.subr.mxu0 0.0
    %432 = vmatpush1.msra.mxu0 0.0
    %433 = vmatprep.subr.mxu0 0.0
    %434 = vmatpush1.msra.mxu0 0.0
    %435 = vmatprep.subr.mxu0 0.0
    %436 = vmatpush1.msra.mxu0 0.0
    %437 = vmatprep.subr.mxu0 0.0
    %438 = vmatpush1.msra.mxu0 0.0
    %439 = vmatprep.subr.mxu0 0.0
    %440 = vmatpush1.msra.mxu0 0.0
    %441 = vmatprep.subr.mxu0 0.0
    %442 = vmatpush1.msra.mxu0 0.0
    %443 = vmatprep.subr.mxu0 0.0
    %444 = vmatpush1.msra.mxu0 0.0
    %445 = vmatprep.subr.mxu0 0.0
    %446 = vmatpush1.msra.mxu0 0.0
    %447 = vmatprep.subr.mxu0 0.0
    %448 = vmatpush1.msra.mxu0 0.0
    %449 = vmatprep.subr.mxu0 0.0
    %450 = vmatpush1.msra.mxu0 0.0
    %451 = vmatprep.subr.mxu0 0.0
    %452 = vmatpush1.msra.mxu0 0.0
    %453 = vmatprep.subr.mxu0 0.0
    %454 = vmatpush1.msra.mxu0 0.0
    %455 = vmatprep.mubr.f32.mxu0 0.0
    %456 = vmatmul.mubr.f32.gmra.mrb[0].mxu0 %v386
    %v457 = vpop.f32.mrb[0].mxu0
    %v458 = vadd.f32 0.0, %v457
    %v459 = vpop.f32.mrb[0].mxu0
    %460 = vmatprep.mubr.f32.mxu0 0.0
    %461 = vmatmul.mubr.f32.gmra.mrb[0].mxu0 %v389
    %v462 = vpop.f32.mrb[0].mxu0
    %v463 = vadd.f32 0.0, %v462
    %v464 = vpop.f32.mrb[0].mxu0
    %465 = vdwg.mxu0
    %s466 = scalar_lea.vmem [#allocation3], 16
    %467 = vst.msk [vmem:[%s466] sm:$0xff] %vm218, %v458
    %468 = vst.msk [vmem:[%s466 + $0x8] sm:$0xff] %vm218, %v463
    %469 = vmatprep.subr.mxu0 0.0
    %470 = vmatpush1.msra.mxu0 %v44
    %471 = vmatprep.subr.mxu0 0.0
    %472 = vmatpush1.msra.mxu0 %v45
    %473 = vmatprep.subr.mxu0 0.0
    %474 = vmatpush1.msra.mxu0 0.0
    %475 = vmatprep.subr.mxu0 0.0
    %476 = vmatpush1.msra.mxu0 0.0
    %477 = vmatprep.subr.mxu0 0.0
    %478 = vmatpush1.msra.mxu0 0.0
    %479 = vmatprep.subr.mxu0 0.0
    %480 = vmatpush1.msra.mxu0 0.0
    %481 = vmatprep.subr.mxu0 0.0
    %482 = vmatpush1.msra.mxu0 0.0
    %483 = vmatprep.subr.mxu0 0.0
    %484 = vmatpush1.msra.mxu0 0.0
    %485 = vmatprep.subr.mxu0 0.0
    %486 = vmatpush1.msra.mxu0 0.0
    %487 = vmatprep.subr.mxu0 0.0
    %488 = vmatpush1.msra.mxu0 0.0
    %489 = vmatprep.subr.mxu0 0.0
    %490 = vmatpush1.msra.mxu0 0.0
    %491 = vmatprep.subr.mxu0 0.0
    %492 = vmatpush1.msra.mxu0 0.0
    %493 = vmatprep.subr.mxu0 0.0
    %494 = vmatpush1.msra.mxu0 0.0
    %495 = vmatprep.subr.mxu0 0.0
    %496 = vmatpush1.msra.mxu0 0.0
    %497 = vmatprep.subr.mxu0 0.0
    %498 = vmatpush1.msra.mxu0 0.0
    %499 = vmatprep.subr.mxu0 0.0
    %500 = vmatpush1.msra.mxu0 0.0
    %501 = vmatprep.subr.mxu0 0.0
    %502 = vmatpush1.msra.mxu0 0.0
    %503 = vmatprep.subr.mxu0 0.0
    %504 = vmatpush1.msra.mxu0 0.0
    %505 = vmatprep.subr.mxu0 0.0
    %506 = vmatpush1.msra.mxu0 0.0
    %507 = vmatprep.subr.mxu0 0.0
    %508 = vmatpush1.msra.mxu0 0.0
    %509 = vmatprep.subr.mxu0 0.0
    %510 = vmatpush1.msra.mxu0 0.0
    %511 = vmatprep.subr.mxu0 0.0
    %512 = vmatpush1.msra.mxu0 0.0
    %513 = vmatprep.subr.mxu0 0.0
    %514 = vmatpush1.msra.mxu0 0.0
    %515 = vmatprep.subr.mxu0 0.0
    %516 = vmatpush1.msra.mxu0 0.0
    %517 = vmatprep.subr.mxu0 0.0
    %518 = vmatpush1.msra.mxu0 0.0
    %519 = vmatprep.subr.mxu0 0.0
    %520 = vmatpush1.msra.mxu0 0.0
    %521 = vmatprep.subr.mxu0 0.0
    %522 = vmatpush1.msra.mxu0 0.0
    %523 = vmatprep.subr.mxu0 0.0
    %524 = vmatpush1.msra.mxu0 0.0
    %525 = vmatprep.subr.mxu0 0.0
    %526 = vmatpush1.msra.mxu0 0.0
    %527 = vmatprep.subr.mxu0 0.0
    %528 = vmatpush1.msra.mxu0 0.0
    %529 = vmatprep.subr.mxu0 0.0
    %530 = vmatpush1.msra.mxu0 0.0
    %531 = vmatprep.subr.mxu0 0.0
    %532 = vmatpush1.msra.mxu0 0.0
    %533 = vmatprep.mubr.f32.mxu0 0.0
    %534 = vmatmul.mubr.f32.gmra.mrb[0].mxu0 %v386
    %v535 = vpop.f32.mrb[0].mxu0
    %v536 = vadd.f32 0.0, %v535
    %v537 = vpop.f32.mrb[0].mxu0
    %538 = vmatprep.mubr.f32.mxu0 0.0
    %539 = vmatmul.mubr.f32.gmra.mrb[0].mxu0 %v389
    %v540 = vpop.f32.mrb[0].mxu0
    %v541 = vadd.f32 0.0, %v540
    %v542 = vpop.f32.mrb[0].mxu0
    %543 = vdwg.mxu0
    %s544 = scalar_lea.vmem [#allocation4], 16
    %545 = vst.msk [vmem:[%s544] sm:$0xff] %vm218, %v536
    %546 = vst.msk [vmem:[%s544 + $0x8] sm:$0xff] %vm218, %v541
  $region41: #{gat_forward.8} parent=0 // pred_fallthru
    _
  %v547 = vld [vmem:[%s6] sm:$0xf]
  %v548 = vld [vmem:[%s6 + $0x4] sm:$0xf]
  %v549 = vld [vmem:[%s6 + $0x8] sm:$0xf]
  %v550 = vld [vmem:[%s6 + $0xc] sm:$0xf]
  %v551 = vunpack.c.l.bf16 %v547
  %v552 = vunpack.c.l.bf16 %v548
  %v553 = vunpack.c.l.bf16 %v549
  %v554 = vunpack.c.l.bf16 %v550
  %v555 = vld [vmem:[%s7] sm:$0xf]
  %v556 = vld [vmem:[%s7 + $0x4] sm:$0xf]
  %v557 = vld [vmem:[%s7 + $0x8] sm:$0xf]
  %v558 = vld [vmem:[%s7 + $0xc] sm:$0xf]
  %v559 = vunpack.c.l.bf16 %v555
  %v560 = vunpack.c.l.bf16 %v556
  %v561 = vunpack.c.l.bf16 %v557
  %v562 = vunpack.c.l.bf16 %v558
  %v563 = vld [vmem:[%s8] sm:$0xff]
  %v564 = vld [vmem:[%s8 + $0x8] sm:$0xff]
  %v565 = vld [vmem:[%s8 + $0x10] sm:$0xff]
  %v566 = vld [vmem:[%s8 + $0x18] sm:$0xff]
  %v567 = vld [vmem:[%s5] sm:$0xff]
  %v568 = vld [vmem:[#allocation3] sm:$0xff]
  %v569 = vld [vmem:[#allocation3 + $0x8] sm:$0xff]
  %v570 = vld [vmem:[#allocation4] sm:$0xff]
  %v571 = vld [vmem:[#allocation4 + $0x8] sm:$0xff]
  %vm572 = vcmask 130048
  %v574 = vsel %vm572, %v551, 0
  %v577 = vsel %vm572, %v552, 0
  %v580 = vsel %vm572, %v553, 0
  %v583 = vsel %vm572, %v554, 0
  %585 = vmatprep.subr.mxu0 0.0
  %586 = vmatpush1.msra.mxu0 %v570
  %587 = vmatprep.subr.mxu0 0.0
  %588 = vmatpush1.msra.mxu0 %v571
  %589 = vmatprep.subr.mxu0 0.0
  %590 = vmatpush1.msra.mxu0 0.0
  %591 = vmatprep.subr.mxu0 0.0
  %592 = vmatpush1.msra.mxu0 0.0
  %593 = vmatprep.subr.mxu0 0.0
  %594 = vmatpush1.msra.mxu0 0.0
  %595 = vmatprep.subr.mxu0 0.0
  %596 = vmatpush1.msra.mxu0 0.0
  %597 = vmatprep.subr.mxu0 0.0
  %598 = vmatpush1.msra.mxu0 0.0
  %599 = vmatprep.subr.mxu0 0.0
  %600 = vmatpush1.msra.mxu0 0.0
  %601 = vmatprep.subr.mxu0 0.0
  %602 = vmatpush1.msra.mxu0 0.0
  %603 = vmatprep.subr.mxu0 0.0
  %604 = vmatpush1.msra.mxu0 0.0
  %605 = vmatprep.subr.mxu0 0.0
  %606 = vmatpush1.msra.mxu0 0.0
  %607 = vmatprep.subr.mxu0 0.0
  %608 = vmatpush1.msra.mxu0 0.0
  %609 = vmatprep.subr.mxu0 0.0
  %610 = vmatpush1.msra.mxu0 0.0
  %611 = vmatprep.subr.mxu0 0.0
  %612 = vmatpush1.msra.mxu0 0.0
  %613 = vmatprep.subr.mxu0 0.0
  %614 = vmatpush1.msra.mxu0 0.0
  %615 = vmatprep.subr.mxu0 0.0
  %616 = vmatpush1.msra.mxu0 0.0
  %617 = vmatprep.subr.mxu0 0.0
  %618 = vmatpush1.msra.mxu0 0.0
  %619 = vmatprep.subr.mxu0 0.0
  %620 = vmatpush1.msra.mxu0 0.0
  %621 = vmatprep.subr.mxu0 0.0
  %622 = vmatpush1.msra.mxu0 0.0
  %623 = vmatprep.subr.mxu0 0.0
  %624 = vmatpush1.msra.mxu0 0.0
  %625 = vmatprep.subr.mxu0 0.0
  %626 = vmatpush1.msra.mxu0 0.0
  %627 = vmatprep.subr.mxu0 0.0
  %628 = vmatpush1.msra.mxu0 0.0
  %629 = vmatprep.subr.mxu0 0.0
  %630 = vmatpush1.msra.mxu0 0.0
  %631 = vmatprep.subr.mxu0 0.0
  %632 = vmatpush1.msra.mxu0 0.0
  %633 = vmatprep.subr.mxu0 0.0
  %634 = vmatpush1.msra.mxu0 0.0
  %635 = vmatprep.subr.mxu0 0.0
  %636 = vmatpush1.msra.mxu0 0.0
  %637 = vmatprep.subr.mxu0 0.0
  %638 = vmatpush1.msra.mxu0 0.0
  %639 = vmatprep.subr.mxu0 0.0
  %640 = vmatpush1.msra.mxu0 0.0
  %641 = vmatprep.subr.mxu0 0.0
  %642 = vmatpush1.msra.mxu0 0.0
  %643 = vmatprep.subr.mxu0 0.0
  %644 = vmatpush1.msra.mxu0 0.0
  %645 = vmatprep.subr.mxu0 0.0
  %646 = vmatpush1.msra.mxu0 0.0
  %647 = vmatprep.subr.mxu0 0.0
  %648 = vmatpush1.msra.mxu0 0.0
  %649 = vmatprep.mubr.f32.mxu0 0.0
  %650 = vmatmul.mubr.f32.gmra.mrb[0].mxu0 %v574
  %v651 = vpop.f32.mrb[0].mxu0
  %v652 = vadd.f32 0.0, %v651
  %v653 = vpop.f32.mrb[0].mxu0
  %654 = vmatprep.mubr.f32.mxu0 0.0
  %655 = vmatmul.mubr.f32.gmra.mrb[0].mxu0 %v577
  %v656 = vpop.f32.mrb[0].mxu0
  %v657 = vadd.f32 0.0, %v656
  %v658 = vpop.f32.mrb[0].mxu0
  %659 = vmatprep.mubr.f32.mxu0 0.0
  %660 = vmatmul.mubr.f32.gmra.mrb[0].mxu0 %v580
  %v661 = vpop.f32.mrb[0].mxu0
  %v662 = vadd.f32 0.0, %v661
  %v663 = vpop.f32.mrb[0].mxu0
  %664 = vmatprep.mubr.f32.mxu0 0.0
  %665 = vmatmul.mubr.f32.gmra.mrb[0].mxu0 %v583
  %v666 = vpop.f32.mrb[0].mxu0
  %v667 = vadd.f32 0.0, %v666
  %v668 = vpop.f32.mrb[0].mxu0
  %669 = vdwg.mxu0
  %v671 = vsel %vm572, %v559, 0
  %v674 = vsel %vm572, %v560, 0
  %v677 = vsel %vm572, %v561, 0
  %v680 = vsel %vm572, %v562, 0
  %682 = vmatprep.subr.mxu0 0.0
  %683 = vmatpush1.msra.mxu0 %v568
  %684 = vmatprep.subr.mxu0 0.0
  %685 = vmatpush1.msra.mxu0 %v569
  %686 = vmatprep.subr.mxu0 0.0
  %687 = vmatpush1.msra.mxu0 0.0
  %688 = vmatprep.subr.mxu0 0.0
  %689 = vmatpush1.msra.mxu0 0.0
  %690 = vmatprep.subr.mxu0 0.0
  %691 = vmatpush1.msra.mxu0 0.0
  %692 = vmatprep.subr.mxu0 0.0
  %693 = vmatpush1.msra.mxu0 0.0
  %694 = vmatprep.subr.mxu0 0.0
  %695 = vmatpush1.msra.mxu0 0.0
  %696 = vmatprep.subr.mxu0 0.0
  %697 = vmatpush1.msra.mxu0 0.0
  %698 = vmatprep.subr.mxu0 0.0
  %699 = vmatpush1.msra.mxu0 0.0
  %700 = vmatprep.subr.mxu0 0.0
  %701 = vmatpush1.msra.mxu0 0.0
  %702 = vmatprep.subr.mxu0 0.0
  %703 = vmatpush1.msra.mxu0 0.0
  %704 = vmatprep.subr.mxu0 0.0
  %705 = vmatpush1.msra.mxu0 0.0
  %706 = vmatprep.subr.mxu0 0.0
  %707 = vmatpush1.msra.mxu0 0.0
  %708 = vmatprep.subr.mxu0 0.0
  %709 = vmatpush1.msra.mxu0 0.0
  %710 = vmatprep.subr.mxu0 0.0
  %711 = vmatpush1.msra.mxu0 0.0
  %712 = vmatprep.subr.mxu0 0.0
  %713 = vmatpush1.msra.mxu0 0.0
  %714 = vmatprep.subr.mxu0 0.0
  %715 = vmatpush1.msra.mxu0 0.0
  %716 = vmatprep.subr.mxu0 0.0
  %717 = vmatpush1.msra.mxu0 0.0
  %718 = vmatprep.subr.mxu0 0.0
  %719 = vmatpush1.msra.mxu0 0.0
  %720 = vmatprep.subr.mxu0 0.0
  %721 = vmatpush1.msra.mxu0 0.0
  %722 = vmatprep.subr.mxu0 0.0
  %723 = vmatpush1.msra.mxu0 0.0
  %724 = vmatprep.subr.mxu0 0.0
  %725 = vmatpush1.msra.mxu0 0.0
  %726 = vmatprep.subr.mxu0 0.0
  %727 = vmatpush1.msra.mxu0 0.0
  %728 = vmatprep.subr.mxu0 0.0
  %729 = vmatpush1.msra.mxu0 0.0
  %730 = vmatprep.subr.mxu0 0.0
  %731 = vmatpush1.msra.mxu0 0.0
  %732 = vmatprep.subr.mxu0 0.0
  %733 = vmatpush1.msra.mxu0 0.0
  %734 = vmatprep.subr.mxu0 0.0
  %735 = vmatpush1.msra.mxu0 0.0
  %736 = vmatprep.subr.mxu0 0.0
  %737 = vmatpush1.msra.mxu0 0.0
  %738 = vmatprep.subr.mxu0 0.0
  %739 = vmatpush1.msra.mxu0 0.0
  %740 = vmatprep.subr.mxu0 0.0
  %741 = vmatpush1.msra.mxu0 0.0
  %742 = vmatprep.subr.mxu0 0.0
  %743 = vmatpush1.msra.mxu0 0.0
  %744 = vmatprep.subr.mxu0 0.0
  %745 = vmatpush1.msra.mxu0 0.0
  %746 = vmatprep.mubr.f32.mxu0 0.0
  %747 = vmatmul.mubr.f32.gmra.mrb[0].mxu0 %v671
  %v748 = vpop.f32.mrb[0].mxu0
  %v749 = vadd.f32 %v652, %v748
  %v750 = vpop.f32.mrb[0].mxu0
  %751 = vmatprep.mubr.f32.mxu0 0.0
  %752 = vmatmul.mubr.f32.gmra.mrb[0].mxu0 %v674
  %v753 = vpop.f32.mrb[0].mxu0
  %v754 = vadd.f32 %v657, %v753
  %v755 = vpop.f32.mrb[0].mxu0
  %756 = vmatprep.mubr.f32.mxu0 0.0
  %757 = vmatmul.mubr.f32.gmra.mrb[0].mxu0 %v677
  %v758 = vpop.f32.mrb[0].mxu0
  %v759 = vadd.f32 %v662, %v758
  %v760 = vpop.f32.mrb[0].mxu0
  %761 = vmatprep.mubr.f32.mxu0 0.0
  %762 = vmatmul.mubr.f32.gmra.mrb[0].mxu0 %v680
  %v763 = vpop.f32.mrb[0].mxu0
  %v764 = vadd.f32 %v667, %v763
  %v765 = vpop.f32.mrb[0].mxu0
  %766 = vdwg.mxu0
  %vm767 = vcmp.gt.f32.partialorder %v749, 0.0
  %vm768 = vcmp.gt.f32.partialorder %v754, 0.0
  %vm769 = vcmp.gt.f32.partialorder %v759, 0.0
  %vm770 = vcmp.gt.f32.partialorder %v764, 0.0
  %v771 = vmul.f32 %v749, 0.01
  %v772 = vmul.f32 %v754, 0.01
  %v773 = vmul.f32 %v759, 0.01
  %v774 = vmul.f32 %v764, 0.01
  %v775 = vsel %vm767, %v749, %v771
  %v776 = vsel %vm768, %v754, %v772
  %v777 = vsel %vm769, %v759, %v773
  %v778 = vsel %vm770, %v764, %v774
  %780 = vset.pattern.permute.xlu0 0
  %781 = vperm.xlu0 %780, %v563
  %v782 = vpop.permute.xlu0 %781
  %785 = vset.pattern.permute.xlu0 0
  %786 = vperm.xlu0 %785, %v564
  %v787 = vpop.permute.xlu0 %786
  %790 = vset.pattern.permute.xlu0 0
  %791 = vperm.xlu0 %790, %v565
  %v792 = vpop.permute.xlu0 %791
  %795 = vset.pattern.permute.xlu0 0
  %796 = vperm.xlu0 %795, %v566
  %v797 = vpop.permute.xlu0 %796
  %v799 = vmul.f32 %v775, %v782
  %v800 = vmul.f32 %v776, %v787
  %v801 = vmul.f32 %v777, %v792
  %v802 = vmul.f32 %v778, %v797
  %v803 = vld [vmem:[#allocation2] sm:$0xff]
  %v804 = vld [vmem:[#allocation2 + $0x8] sm:$0xff]
  %805 = vmatprep.subr.mxu0 0.0
  %806 = vmatpush1.msra.mxu0 %v803
  %807 = vmatprep.subr.mxu0 0.0
  %808 = vmatpush1.msra.mxu0 %v804
  %809 = vmatprep.subr.mxu0 0.0
  %810 = vmatpush1.msra.mxu0 0.0
  %811 = vmatprep.subr.mxu0 0.0
  %812 = vmatpush1.msra.mxu0 0.0
  %813 = vmatprep.subr.mxu0 0.0
  %814 = vmatpush1.msra.mxu0 0.0
  %815 = vmatprep.subr.mxu0 0.0
  %816 = vmatpush1.msra.mxu0 0.0
  %817 = vmatprep.subr.mxu0 0.0
  %818 = vmatpush1.msra.mxu0 0.0
  %819 = vmatprep.subr.mxu0 0.0
  %820 = vmatpush1.msra.mxu0 0.0
  %821 = vmatprep.subr.mxu0 0.0
  %822 = vmatpush1.msra.mxu0 0.0
  %823 = vmatprep.subr.mxu0 0.0
  %824 = vmatpush1.msra.mxu0 0.0
  %825 = vmatprep.subr.mxu0 0.0
  %826 = vmatpush1.msra.mxu0 0.0
  %827 = vmatprep.subr.mxu0 0.0
  %828 = vmatpush1.msra.mxu0 0.0
  %829 = vmatprep.subr.mxu0 0.0
  %830 = vmatpush1.msra.mxu0 0.0
  %831 = vmatprep.subr.mxu0 0.0
  %832 = vmatpush1.msra.mxu0 0.0
  %833 = vmatprep.subr.mxu0 0.0
  %834 = vmatpush1.msra.mxu0 0.0
  %835 = vmatprep.subr.mxu0 0.0
  %836 = vmatpush1.msra.mxu0 0.0
  %837 = vmatprep.subr.mxu0 0.0
  %838 = vmatpush1.msra.mxu0 0.0
  %839 = vmatprep.subr.mxu0 0.0
  %840 = vmatpush1.msra.mxu0 0.0
  %841 = vmatprep.subr.mxu0 0.0
  %842 = vmatpush1.msra.mxu0 0.0
  %843 = vmatprep.subr.mxu0 0.0
  %844 = vmatpush1.msra.mxu0 0.0
  %845 = vmatprep.subr.mxu0 0.0
  %846 = vmatpush1.msra.mxu0 0.0
  %847 = vmatprep.subr.mxu0 0.0
  %848 = vmatpush1.msra.mxu0 0.0
  %849 = vmatprep.subr.mxu0 0.0
  %850 = vmatpush1.msra.mxu0 0.0
  %851 = vmatprep.subr.mxu0 0.0
  %852 = vmatpush1.msra.mxu0 0.0
  %853 = vmatprep.subr.mxu0 0.0
  %854 = vmatpush1.msra.mxu0 0.0
  %855 = vmatprep.subr.mxu0 0.0
  %856 = vmatpush1.msra.mxu0 0.0
  %857 = vmatprep.subr.mxu0 0.0
  %858 = vmatpush1.msra.mxu0 0.0
  %859 = vmatprep.subr.mxu0 0.0
  %860 = vmatpush1.msra.mxu0 0.0
  %861 = vmatprep.subr.mxu0 0.0
  %862 = vmatpush1.msra.mxu0 0.0
  %863 = vmatprep.subr.mxu0 0.0
  %864 = vmatpush1.msra.mxu0 0.0
  %865 = vmatprep.subr.mxu0 0.0
  %866 = vmatpush1.msra.mxu0 0.0
  %867 = vmatprep.subr.mxu0 0.0
  %868 = vmatpush1.msra.mxu0 0.0
  %869 = vmatprep.mubr.f32.mxu0 0.0
  %870 = vmatmul.mubr.f32.gmra.mrb[0].mxu0 %v574
  %v871 = vpop.f32.mrb[0].mxu0
  %v872 = vadd.f32 0.0, %v871
  %v873 = vpop.f32.mrb[0].mxu0
  %874 = vmatprep.mubr.f32.mxu0 0.0
  %875 = vmatmul.mubr.f32.gmra.mrb[0].mxu0 %v577
  %v876 = vpop.f32.mrb[0].mxu0
  %v877 = vadd.f32 0.0, %v876
  %v878 = vpop.f32.mrb[0].mxu0
  %879 = vmatprep.mubr.f32.mxu0 0.0
  %880 = vmatmul.mubr.f32.gmra.mrb[0].mxu0 %v580
  %v881 = vpop.f32.mrb[0].mxu0
  %v882 = vadd.f32 0.0, %v881
  %v883 = vpop.f32.mrb[0].mxu0
  %884 = vmatprep.mubr.f32.mxu0 0.0
  %885 = vmatmul.mubr.f32.gmra.mrb[0].mxu0 %v583
  %v886 = vpop.f32.mrb[0].mxu0
  %v887 = vadd.f32 0.0, %v886
  %v888 = vpop.f32.mrb[0].mxu0
  %889 = vdwg.mxu0
  %vm890 = vcmask 64512
  %v892 = vsel %vm890, %v799, 0
  %v895 = vsel %vm890, %v800, 0
  %v898 = vsel %vm890, %v801, 0
  %v901 = vsel %vm890, %v802, 0
  %903 = vmatprep.subr.mxu0 0.0
  %904 = vmatpush1.msra.mxu0 %v567
  %905 = vmatprep.subr.mxu0 0.0
  %906 = vmatpush1.msra.mxu0 0.0
  %907 = vmatprep.subr.mxu0 0.0
  %908 = vmatpush1.msra.mxu0 0.0
  %909 = vmatprep.subr.mxu0 0.0
  %910 = vmatpush1.msra.mxu0 0.0
  %911 = vmatprep.subr.mxu0 0.0
  %912 = vmatpush1.msra.mxu0 0.0
  %913 = vmatprep.subr.mxu0 0.0
  %914 = vmatpush1.msra.mxu0 0.0
  %915 = vmatprep.subr.mxu0 0.0
  %916 = vmatpush1.msra.mxu0 0.0
  %917 = vmatprep.subr.mxu0 0.0
  %918 = vmatpush1.msra.mxu0 0.0
  %919 = vmatprep.subr.mxu0 0.0
  %920 = vmatpush1.msra.mxu0 0.0
  %921 = vmatprep.subr.mxu0 0.0
  %922 = vmatpush1.msra.mxu0 0.0
  %923 = vmatprep.subr.mxu0 0.0
  %924 = vmatpush1.msra.mxu0 0.0
  %925 = vmatprep.subr.mxu0 0.0
  %926 = vmatpush1.msra.mxu0 0.0
  %927 = vmatprep.subr.mxu0 0.0
  %928 = vmatpush1.msra.mxu0 0.0
  %929 = vmatprep.subr.mxu0 0.0
  %930 = vmatpush1.msra.mxu0 0.0
  %931 = vmatprep.subr.mxu0 0.0
  %932 = vmatpush1.msra.mxu0 0.0
  %933 = vmatprep.subr.mxu0 0.0
  %934 = vmatpush1.msra.mxu0 0.0
  %935 = vmatprep.subr.mxu0 0.0
  %936 = vmatpush1.msra.mxu0 0.0
  %937 = vmatprep.subr.mxu0 0.0
  %938 = vmatpush1.msra.mxu0 0.0
  %939 = vmatprep.subr.mxu0 0.0
  %940 = vmatpush1.msra.mxu0 0.0
  %941 = vmatprep.subr.mxu0 0.0
  %942 = vmatpush1.msra.mxu0 0.0
  %943 = vmatprep.subr.mxu0 0.0
  %944 = vmatpush1.msra.mxu0 0.0
  %945 = vmatprep.subr.mxu0 0.0
  %946 = vmatpush1.msra.mxu0 0.0
  %947 = vmatprep.subr.mxu0 0.0
  %948 = vmatpush1.msra.mxu0 0.0
  %949 = vmatprep.subr.mxu0 0.0
  %950 = vmatpush1.msra.mxu0 0.0
  %951 = vmatprep.subr.mxu0 0.0
  %952 = vmatpush1.msra.mxu0 0.0
  %953 = vmatprep.subr.mxu0 0.0
  %954 = vmatpush1.msra.mxu0 0.0
  %955 = vmatprep.subr.mxu0 0.0
  %956 = vmatpush1.msra.mxu0 0.0
  %957 = vmatprep.subr.mxu0 0.0
  %958 = vmatpush1.msra.mxu0 0.0
  %959 = vmatprep.subr.mxu0 0.0
  %960 = vmatpush1.msra.mxu0 0.0
  %961 = vmatprep.subr.mxu0 0.0
  %962 = vmatpush1.msra.mxu0 0.0
  %963 = vmatprep.subr.mxu0 0.0
  %964 = vmatpush1.msra.mxu0 0.0
  %965 = vmatprep.subr.mxu0 0.0
  %966 = vmatpush1.msra.mxu0 0.0
  %967 = vmatprep.mubr.f32.mxu0 0.0
  %968 = vmatmul.mubr.f32.gmra.mrb[0].mxu0 %v892
  %v969 = vpop.f32.mrb[0].mxu0
  %v970 = vadd.f32 0.0, %v969
  %v971 = vpop.f32.mrb[0].mxu0
  %972 = vmatprep.mubr.f32.mxu0 0.0
  %973 = vmatmul.mubr.f32.gmra.mrb[0].mxu0 %v895
  %v974 = vpop.f32.mrb[0].mxu0
  %v975 = vadd.f32 0.0, %v974
  %v976 = vpop.f32.mrb[0].mxu0
  %977 = vmatprep.mubr.f32.mxu0 0.0
  %978 = vmatmul.mubr.f32.gmra.mrb[0].mxu0 %v898
  %v979 = vpop.f32.mrb[0].mxu0
  %v980 = vadd.f32 0.0, %v979
  %v981 = vpop.f32.mrb[0].mxu0
  %982 = vmatprep.mubr.f32.mxu0 0.0
  %983 = vmatmul.mubr.f32.gmra.mrb[0].mxu0 %v901
  %v984 = vpop.f32.mrb[0].mxu0
  %v985 = vadd.f32 0.0, %v984
  %v986 = vpop.f32.mrb[0].mxu0
  %987 = vdwg.mxu0
  %v988 = vmul.f32 %v970, %v872
  %v989 = vmul.f32 %v975, %v877
  %v990 = vmul.f32 %v980, %v882
  %v991 = vmul.f32 %v985, %v887
  %s992 = scalar_lea.vmem [#allocation3], 16
  %v993 = vld [vmem:[%s992] sm:$0xff]
  %v994 = vld [vmem:[%s992 + $0x8] sm:$0xff]
  %s995 = scalar_lea.vmem [#allocation4], 16
  %v996 = vld [vmem:[%s995] sm:$0xff]
  %v997 = vld [vmem:[%s995 + $0x8] sm:$0xff]
  %998 = vmatprep.subr.mxu0 0.0
  %999 = vmatpush1.msra.mxu0 %v996
  %1000 = vmatprep.subr.mxu0 0.0
  %1001 = vmatpush1.msra.mxu0 %v997
  %1002 = vmatprep.subr.mxu0 0.0
  %1003 = vmatpush1.msra.mxu0 0.0
  %1004 = vmatprep.subr.mxu0 0.0
  %1005 = vmatpush1.msra.mxu0 0.0
  %1006 = vmatprep.subr.mxu0 0.0
  %1007 = vmatpush1.msra.mxu0 0.0
  %1008 = vmatprep.subr.mxu0 0.0
  %1009 = vmatpush1.msra.mxu0 0.0
  %1010 = vmatprep.subr.mxu0 0.0
  %1011 = vmatpush1.msra.mxu0 0.0
  %1012 = vmatprep.subr.mxu0 0.0
  %1013 = vmatpush1.msra.mxu0 0.0
  %1014 = vmatprep.subr.mxu0 0.0
  %1015 = vmatpush1.msra.mxu0 0.0
  %1016 = vmatprep.subr.mxu0 0.0
  %1017 = vmatpush1.msra.mxu0 0.0
  %1018 = vmatprep.subr.mxu0 0.0
  %1019 = vmatpush1.msra.mxu0 0.0
  %1020 = vmatprep.subr.mxu0 0.0
  %1021 = vmatpush1.msra.mxu0 0.0
  %1022 = vmatprep.subr.mxu0 0.0
  %1023 = vmatpush1.msra.mxu0 0.0
  %1024 = vmatprep.subr.mxu0 0.0
  %1025 = vmatpush1.msra.mxu0 0.0
  %1026 = vmatprep.subr.mxu0 0.0
  %1027 = vmatpush1.msra.mxu0 0.0
  %1028 = vmatprep.subr.mxu0 0.0
  %1029 = vmatpush1.msra.mxu0 0.0
  %1030 = vmatprep.subr.mxu0 0.0
  %1031 = vmatpush1.msra.mxu0 0.0
  %1032 = vmatprep.subr.mxu0 0.0
  %1033 = vmatpush1.msra.mxu0 0.0
  %1034 = vmatprep.subr.mxu0 0.0
  %1035 = vmatpush1.msra.mxu0 0.0
  %1036 = vmatprep.subr.mxu0 0.0
  %1037 = vmatpush1.msra.mxu0 0.0
  %1038 = vmatprep.subr.mxu0 0.0
  %1039 = vmatpush1.msra.mxu0 0.0
  %1040 = vmatprep.subr.mxu0 0.0
  %1041 = vmatpush1.msra.mxu0 0.0
  %1042 = vmatprep.subr.mxu0 0.0
  %1043 = vmatpush1.msra.mxu0 0.0
  %1044 = vmatprep.subr.mxu0 0.0
  %1045 = vmatpush1.msra.mxu0 0.0
  %1046 = vmatprep.subr.mxu0 0.0
  %1047 = vmatpush1.msra.mxu0 0.0
  %1048 = vmatprep.subr.mxu0 0.0
  %1049 = vmatpush1.msra.mxu0 0.0
  %1050 = vmatprep.subr.mxu0 0.0
  %1051 = vmatpush1.msra.mxu0 0.0
  %1052 = vmatprep.subr.mxu0 0.0
  %1053 = vmatpush1.msra.mxu0 0.0
  %1054 = vmatprep.subr.mxu0 0.0
  %1055 = vmatpush1.msra.mxu0 0.0
  %1056 = vmatprep.subr.mxu0 0.0
  %1057 = vmatpush1.msra.mxu0 0.0
  %1058 = vmatprep.subr.mxu0 0.0
  %1059 = vmatpush1.msra.mxu0 0.0
  %1060 = vmatprep.subr.mxu0 0.0
  %1061 = vmatpush1.msra.mxu0 0.0
  %1062 = vmatprep.mubr.f32.mxu0 0.0
  %1063 = vmatmul.mubr.f32.gmra.mrb[0].mxu0 %v574
  %v1064 = vpop.f32.mrb[0].mxu0
  %v1065 = vadd.f32 0.0, %v1064
  %v1066 = vpop.f32.mrb[0].mxu0
  %1067 = vmatprep.mubr.f32.mxu0 0.0
  %1068 = vmatmul.mubr.f32.gmra.mrb[0].mxu0 %v577
  %v1069 = vpop.f32.mrb[0].mxu0
  %v1070 = vadd.f32 0.0, %v1069
  %v1071 = vpop.f32.mrb[0].mxu0
  %1072 = vmatprep.mubr.f32.mxu0 0.0
  %1073 = vmatmul.mubr.f32.gmra.mrb[0].mxu0 %v580
  %v1074 = vpop.f32.mrb[0].mxu0
  %v1075 = vadd.f32 0.0, %v1074
  %v1076 = vpop.f32.mrb[0].mxu0
  %1077 = vmatprep.mubr.f32.mxu0 0.0
  %1078 = vmatmul.mubr.f32.gmra.mrb[0].mxu0 %v583
  %v1079 = vpop.f32.mrb[0].mxu0
  %v1080 = vadd.f32 0.0, %v1079
  %v1081 = vpop.f32.mrb[0].mxu0
  %1082 = vdwg.mxu0
  %1083 = vmatprep.subr.mxu0 0.0
  %1084 = vmatpush1.msra.mxu0 %v993
  %1085 = vmatprep.subr.mxu0 0.0
  %1086 = vmatpush1.msra.mxu0 %v994
  %1087 = vmatprep.subr.mxu0 0.0
  %1088 = vmatpush1.msra.mxu0 0.0
  %1089 = vmatprep.subr.mxu0 0.0
  %1090 = vmatpush1.msra.mxu0 0.0
  %1091 = vmatprep.subr.mxu0 0.0
  %1092 = vmatpush1.msra.mxu0 0.0
  %1093 = vmatprep.subr.mxu0 0.0
  %1094 = vmatpush1.msra.mxu0 0.0
  %1095 = vmatprep.subr.mxu0 0.0
  %1096 = vmatpush1.msra.mxu0 0.0
  %1097 = vmatprep.subr.mxu0 0.0
  %1098 = vmatpush1.msra.mxu0 0.0
  %1099 = vmatprep.subr.mxu0 0.0
  %1100 = vmatpush1.msra.mxu0 0.0
  %1101 = vmatprep.subr.mxu0 0.0
  %1102 = vmatpush1.msra.mxu0 0.0
  %1103 = vmatprep.subr.mxu0 0.0
  %1104 = vmatpush1.msra.mxu0 0.0
  %1105 = vmatprep.subr.mxu0 0.0
  %1106 = vmatpush1.msra.mxu0 0.0
  %1107 = vmatprep.subr.mxu0 0.0
  %1108 = vmatpush1.msra.mxu0 0.0
  %1109 = vmatprep.subr.mxu0 0.0
  %1110 = vmatpush1.msra.mxu0 0.0
  %1111 = vmatprep.subr.mxu0 0.0
  %1112 = vmatpush1.msra.mxu0 0.0
  %1113 = vmatprep.subr.mxu0 0.0
  %1114 = vmatpush1.msra.mxu0 0.0
  %1115 = vmatprep.subr.mxu0 0.0
  %1116 = vmatpush1.msra.mxu0 0.0
  %1117 = vmatprep.subr.mxu0 0.0
  %1118 = vmatpush1.msra.mxu0 0.0
  %1119 = vmatprep.subr.mxu0 0.0
  %1120 = vmatpush1.msra.mxu0 0.0
  %1121 = vmatprep.subr.mxu0 0.0
  %1122 = vmatpush1.msra.mxu0 0.0
  %1123 = vmatprep.subr.mxu0 0.0
  %1124 = vmatpush1.msra.mxu0 0.0
  %1125 = vmatprep.subr.mxu0 0.0
  %1126 = vmatpush1.msra.mxu0 0.0
  %1127 = vmatprep.subr.mxu0 0.0
  %1128 = vmatpush1.msra.mxu0 0.0
  %1129 = vmatprep.subr.mxu0 0.0
  %1130 = vmatpush1.msra.mxu0 0.0
  %1131 = vmatprep.subr.mxu0 0.0
  %1132 = vmatpush1.msra.mxu0 0.0
  %1133 = vmatprep.subr.mxu0 0.0
  %1134 = vmatpush1.msra.mxu0 0.0
  %1135 = vmatprep.subr.mxu0 0.0
  %1136 = vmatpush1.msra.mxu0 0.0
  %1137 = vmatprep.subr.mxu0 0.0
  %1138 = vmatpush1.msra.mxu0 0.0
  %1139 = vmatprep.subr.mxu0 0.0
  %1140 = vmatpush1.msra.mxu0 0.0
  %1141 = vmatprep.subr.mxu0 0.0
  %1142 = vmatpush1.msra.mxu0 0.0
  %1143 = vmatprep.subr.mxu0 0.0
  %1144 = vmatpush1.msra.mxu0 0.0
  %1145 = vmatprep.subr.mxu0 0.0
  %1146 = vmatpush1.msra.mxu0 0.0
  %1147 = vmatprep.mubr.f32.mxu0 0.0
  %1148 = vmatmul.mubr.f32.gmra.mrb[0].mxu0 %v671
  %v1149 = vpop.f32.mrb[0].mxu0
  %v1150 = vadd.f32 %v1065, %v1149
  %v1151 = vpop.f32.mrb[0].mxu0
  %1152 = vmatprep.mubr.f32.mxu0 0.0
  %1153 = vmatmul.mubr.f32.gmra.mrb[0].mxu0 %v674
  %v1154 = vpop.f32.mrb[0].mxu0
  %v1155 = vadd.f32 %v1070, %v1154
  %v1156 = vpop.f32.mrb[0].mxu0
  %1157 = vmatprep.mubr.f32.mxu0 0.0
  %1158 = vmatmul.mubr.f32.gmra.mrb[0].mxu0 %v677
  %v1159 = vpop.f32.mrb[0].mxu0
  %v1160 = vadd.f32 %v1075, %v1159
  %v1161 = vpop.f32.mrb[0].mxu0
  %1162 = vmatprep.mubr.f32.mxu0 0.0
  %1163 = vmatmul.mubr.f32.gmra.mrb[0].mxu0 %v680
  %v1164 = vpop.f32.mrb[0].mxu0
  %v1165 = vadd.f32 %v1080, %v1164
  %v1166 = vpop.f32.mrb[0].mxu0
  %1167 = vdwg.mxu0
  %vm1168 = vcmp.gt.f32.partialorder %v1150, 0.0
  %vm1169 = vcmp.gt.f32.partialorder %v1155, 0.0
  %vm1170 = vcmp.gt.f32.partialorder %v1160, 0.0
  %vm1171 = vcmp.gt.f32.partialorder %v1165, 0.0
  %v1172 = vmul.f32 %v1150, 0.01
  %v1173 = vmul.f32 %v1155, 0.01
  %v1174 = vmul.f32 %v1160, 0.01
  %v1175 = vmul.f32 %v1165, 0.01
  %v1176 = vsel %vm1168, %v1150, %v1172
  %v1177 = vsel %vm1169, %v1155, %v1173
  %v1178 = vsel %vm1170, %v1160, %v1174
  %v1179 = vsel %vm1171, %v1165, %v1175
  %v1180 = vmul.f32 %v1176, %v782
  %v1181 = vmul.f32 %v1177, %v787
  %v1182 = vmul.f32 %v1178, %v792
  %v1183 = vmul.f32 %v1179, %v797
  %s1184 = scalar_lea.vmem [#allocation2], 16
  %v1185 = vld [vmem:[%s1184] sm:$0xff]
  %v1186 = vld [vmem:[%s1184 + $0x8] sm:$0xff]
  %1187 = vmatprep.subr.mxu0 0.0
  %1188 = vmatpush1.msra.mxu0 %v1185
  %1189 = vmatprep.subr.mxu0 0.0
  %1190 = vmatpush1.msra.mxu0 %v1186
  %1191 = vmatprep.subr.mxu0 0.0
  %1192 = vmatpush1.msra.mxu0 0.0
  %1193 = vmatprep.subr.mxu0 0.0
  %1194 = vmatpush1.msra.mxu0 0.0
  %1195 = vmatprep.subr.mxu0 0.0
  %1196 = vmatpush1.msra.mxu0 0.0
  %1197 = vmatprep.subr.mxu0 0.0
  %1198 = vmatpush1.msra.mxu0 0.0
  %1199 = vmatprep.subr.mxu0 0.0
  %1200 = vmatpush1.msra.mxu0 0.0
  %1201 = vmatprep.subr.mxu0 0.0
  %1202 = vmatpush1.msra.mxu0 0.0
  %1203 = vmatprep.subr.mxu0 0.0
  %1204 = vmatpush1.msra.mxu0 0.0
  %1205 = vmatprep.subr.mxu0 0.0
  %1206 = vmatpush1.msra.mxu0 0.0
  %1207 = vmatprep.subr.mxu0 0.0
  %1208 = vmatpush1.msra.mxu0 0.0
  %1209 = vmatprep.subr.mxu0 0.0
  %1210 = vmatpush1.msra.mxu0 0.0
  %1211 = vmatprep.subr.mxu0 0.0
  %1212 = vmatpush1.msra.mxu0 0.0
  %1213 = vmatprep.subr.mxu0 0.0
  %1214 = vmatpush1.msra.mxu0 0.0
  %1215 = vmatprep.subr.mxu0 0.0
  %1216 = vmatpush1.msra.mxu0 0.0
  %1217 = vmatprep.subr.mxu0 0.0
  %1218 = vmatpush1.msra.mxu0 0.0
  %1219 = vmatprep.subr.mxu0 0.0
  %1220 = vmatpush1.msra.mxu0 0.0
  %1221 = vmatprep.subr.mxu0 0.0
  %1222 = vmatpush1.msra.mxu0 0.0
  %1223 = vmatprep.subr.mxu0 0.0
  %1224 = vmatpush1.msra.mxu0 0.0
  %1225 = vmatprep.subr.mxu0 0.0
  %1226 = vmatpush1.msra.mxu0 0.0
  %1227 = vmatprep.subr.mxu0 0.0
  %1228 = vmatpush1.msra.mxu0 0.0
  %1229 = vmatprep.subr.mxu0 0.0
  %1230 = vmatpush1.msra.mxu0 0.0
  %1231 = vmatprep.subr.mxu0 0.0
  %1232 = vmatpush1.msra.mxu0 0.0
  %1233 = vmatprep.subr.mxu0 0.0
  %1234 = vmatpush1.msra.mxu0 0.0
  %1235 = vmatprep.subr.mxu0 0.0
  %1236 = vmatpush1.msra.mxu0 0.0
  %1237 = vmatprep.subr.mxu0 0.0
  %1238 = vmatpush1.msra.mxu0 0.0
  %1239 = vmatprep.subr.mxu0 0.0
  %1240 = vmatpush1.msra.mxu0 0.0
  %1241 = vmatprep.subr.mxu0 0.0
  %1242 = vmatpush1.msra.mxu0 0.0
  %1243 = vmatprep.subr.mxu0 0.0
  %1244 = vmatpush1.msra.mxu0 0.0
  %1245 = vmatprep.subr.mxu0 0.0
  %1246 = vmatpush1.msra.mxu0 0.0
  %1247 = vmatprep.subr.mxu0 0.0
  %1248 = vmatpush1.msra.mxu0 0.0
  %1249 = vmatprep.subr.mxu0 0.0
  %1250 = vmatpush1.msra.mxu0 0.0
  %1251 = vmatprep.mubr.f32.mxu0 0.0
  %1252 = vmatmul.mubr.f32.gmra.mrb[0].mxu0 %v574
  %v1253 = vpop.f32.mrb[0].mxu0
  %v1254 = vadd.f32 0.0, %v1253
  %v1255 = vpop.f32.mrb[0].mxu0
  %1256 = vmatprep.mubr.f32.mxu0 0.0
  %1257 = vmatmul.mubr.f32.gmra.mrb[0].mxu0 %v577
  %v1258 = vpop.f32.mrb[0].mxu0
  %v1259 = vadd.f32 0.0, %v1258
  %v1260 = vpop.f32.mrb[0].mxu0
  %1261 = vmatprep.mubr.f32.mxu0 0.0
  %1262 = vmatmul.mubr.f32.gmra.mrb[0].mxu0 %v580
  %v1263 = vpop.f32.mrb[0].mxu0
  %v1264 = vadd.f32 0.0, %v1263
  %v1265 = vpop.f32.mrb[0].mxu0
  %1266 = vmatprep.mubr.f32.mxu0 0.0
  %1267 = vmatmul.mubr.f32.gmra.mrb[0].mxu0 %v583
  %v1268 = vpop.f32.mrb[0].mxu0
  %v1269 = vadd.f32 0.0, %v1268
  %v1270 = vpop.f32.mrb[0].mxu0
  %1271 = vdwg.mxu0
  %v1273 = vsel %vm890, %v1180, 0
  %v1276 = vsel %vm890, %v1181, 0
  %v1279 = vsel %vm890, %v1182, 0
  %v1282 = vsel %vm890, %v1183, 0
  %1284 = vmatprep.subr.mxu0 0.0
  %1285 = vmatpush1.msra.mxu0 %v567
  %1286 = vmatprep.subr.mxu0 0.0
  %1287 = vmatpush1.msra.mxu0 0.0
  %1288 = vmatprep.subr.mxu0 0.0
  %1289 = vmatpush1.msra.mxu0 0.0
  %1290 = vmatprep.subr.mxu0 0.0
  %1291 = vmatpush1.msra.mxu0 0.0
  %1292 = vmatprep.subr.mxu0 0.0
  %1293 = vmatpush1.msra.mxu0 0.0
  %1294 = vmatprep.subr.mxu0 0.0
  %1295 = vmatpush1.msra.mxu0 0.0
  %1296 = vmatprep.subr.mxu0 0.0
  %1297 = vmatpush1.msra.mxu0 0.0
  %1298 = vmatprep.subr.mxu0 0.0
  %1299 = vmatpush1.msra.mxu0 0.0
  %1300 = vmatprep.subr.mxu0 0.0
  %1301 = vmatpush1.msra.mxu0 0.0
  %1302 = vmatprep.subr.mxu0 0.0
  %1303 = vmatpush1.msra.mxu0 0.0
  %1304 = vmatprep.subr.mxu0 0.0
  %1305 = vmatpush1.msra.mxu0 0.0
  %1306 = vmatprep.subr.mxu0 0.0
  %1307 = vmatpush1.msra.mxu0 0.0
  %1308 = vmatprep.subr.mxu0 0.0
  %1309 = vmatpush1.msra.mxu0 0.0
  %1310 = vmatprep.subr.mxu0 0.0
  %1311 = vmatpush1.msra.mxu0 0.0
  %1312 = vmatprep.subr.mxu0 0.0
  %1313 = vmatpush1.msra.mxu0 0.0
  %1314 = vmatprep.subr.mxu0 0.0
  %1315 = vmatpush1.msra.mxu0 0.0
  %1316 = vmatprep.subr.mxu0 0.0
  %1317 = vmatpush1.msra.mxu0 0.0
  %1318 = vmatprep.subr.mxu0 0.0
  %1319 = vmatpush1.msra.mxu0 0.0
  %1320 = vmatprep.subr.mxu0 0.0
  %1321 = vmatpush1.msra.mxu0 0.0
  %1322 = vmatprep.subr.mxu0 0.0
  %1323 = vmatpush1.msra.mxu0 0.0
  %1324 = vmatprep.subr.mxu0 0.0
  %1325 = vmatpush1.msra.mxu0 0.0
  %1326 = vmatprep.subr.mxu0 0.0
  %1327 = vmatpush1.msra.mxu0 0.0
  %1328 = vmatprep.subr.mxu0 0.0
  %1329 = vmatpush1.msra.mxu0 0.0
  %1330 = vmatprep.subr.mxu0 0.0
  %1331 = vmatpush1.msra.mxu0 0.0
  %1332 = vmatprep.subr.mxu0 0.0
  %1333 = vmatpush1.msra.mxu0 0.0
  %1334 = vmatprep.subr.mxu0 0.0
  %1335 = vmatpush1.msra.mxu0 0.0
  %1336 = vmatprep.subr.mxu0 0.0
  %1337 = vmatpush1.msra.mxu0 0.0
  %1338 = vmatprep.subr.mxu0 0.0
  %1339 = vmatpush1.msra.mxu0 0.0
  %1340 = vmatprep.subr.mxu0 0.0
  %1341 = vmatpush1.msra.mxu0 0.0
  %1342 = vmatprep.subr.mxu0 0.0
  %1343 = vmatpush1.msra.mxu0 0.0
  %1344 = vmatprep.subr.mxu0 0.0
  %1345 = vmatpush1.msra.mxu0 0.0
  %1346 = vmatprep.subr.mxu0 0.0
  %1347 = vmatpush1.msra.mxu0 0.0
  %1348 = vmatprep.mubr.f32.mxu0 0.0
  %1349 = vmatmul.mubr.f32.gmra.mrb[0].mxu0 %v1273
  %v1350 = vpop.f32.mrb[0].mxu0
  %v1351 = vadd.f32 0.0, %v1350
  %v1352 = vpop.f32.mrb[0].mxu0
  %1353 = vmatprep.mubr.f32.mxu0 0.0
  %1354 = vmatmul.mubr.f32.gmra.mrb[0].mxu0 %v1276
  %v1355 = vpop.f32.mrb[0].mxu0
  %v1356 = vadd.f32 0.0, %v1355
  %v1357 = vpop.f32.mrb[0].mxu0
  %1358 = vmatprep.mubr.f32.mxu0 0.0
  %1359 = vmatmul.mubr.f32.gmra.mrb[0].mxu0 %v1279
  %v1360 = vpop.f32.mrb[0].mxu0
  %v1361 = vadd.f32 0.0, %v1360
  %v1362 = vpop.f32.mrb[0].mxu0
  %1363 = vmatprep.mubr.f32.mxu0 0.0
  %1364 = vmatmul.mubr.f32.gmra.mrb[0].mxu0 %v1282
  %v1365 = vpop.f32.mrb[0].mxu0
  %v1366 = vadd.f32 0.0, %v1365
  %v1367 = vpop.f32.mrb[0].mxu0
  %1368 = vdwg.mxu0
  %v1369 = vmul.f32 %v1351, %v1254
  %v1370 = vmul.f32 %v1356, %v1259
  %v1371 = vmul.f32 %v1361, %v1264
  %v1372 = vmul.f32 %v1366, %v1269
  %v1373 = vadd.f32 %v988, %v1369
  %v1374 = vadd.f32 %v989, %v1370
  %v1375 = vadd.f32 %v990, %v1371
  %v1376 = vadd.f32 %v991, %v1372
  %v1377 = vld [vmem:[%s9] sm:$0xff]
  %v1378 = vld [vmem:[%s9 + $0x8] sm:$0xff]
  %1379 = vxpose.xlu0.b32.start [1/16] %v559, 128
  %1380 = vxpose.xlu0.b32.cont [2/16] %v560, 128
  %1381 = vxpose.xlu0.b32.cont [3/16] %v561, 128
  %1382 = vxpose.xlu0.b32.cont [4/16] %v562, 128
  %1383 = vxpose.xlu0.b32.cont [5/16] 0.0, 128
  %1384 = vxpose.xlu0.b32.cont [6/16] 0.0, 128
  %1385 = vxpose.xlu0.b32.cont [7/16] 0.0, 128
  %1386 = vxpose.xlu0.b32.cont [8/16] 0.0, 128
  %1387 = vxpose.xlu0.b32.cont [9/16] 0.0, 128
  %1388 = vxpose.xlu0.b32.cont [10/16] 0.0, 128
  %1389 = vxpose.xlu0.b32.cont [11/16] 0.0, 128
  %1390 = vxpose.xlu0.b32.cont [12/16] 0.0, 128
  %1391 = vxpose.xlu0.b32.cont [13/16] 0.0, 128
  %1392 = vxpose.xlu0.b32.cont [14/16] 0.0, 128
  %1393 = vxpose.xlu0.b32.cont [15/16] 0.0, 128
  %1394 = vxpose.xlu0.b32.end [16/16] 0.0, 128
  %v1395 = vpop.trf.xlu0
  %v1396 = vpop.trf.xlu0
  %v1397 = vpop.trf.xlu0
  %v1398 = vpop.trf.xlu0
  %v1399 = vpop.trf.xlu0
  %v1400 = vpop.trf.xlu0
  %v1401 = vpop.trf.xlu0
  %v1402 = vpop.trf.xlu0
  %v1403 = vpop.trf.xlu0
  %v1404 = vpop.trf.xlu0
  %v1405 = vpop.trf.xlu0
  %v1406 = vpop.trf.xlu0
  %v1407 = vpop.trf.xlu0
  %v1408 = vpop.trf.xlu0
  %v1409 = vpop.trf.xlu0
  %v1410 = vpop.trf.xlu0
  %vm1411 = vcmask 261120
  %v1413 = vsel %vm1411, %v1395, 0
  %v1416 = vsel %vm1411, %v1396, 0
  %1418 = vmatprep.subr.mxu0 0.0
  %1419 = vmatpush1.msra.mxu0 %v1373
  %1420 = vmatprep.subr.mxu0 0.0
  %1421 = vmatpush1.msra.mxu0 %v1374
  %1422 = vmatprep.subr.mxu0 0.0
  %1423 = vmatpush1.msra.mxu0 %v1375
  %1424 = vmatprep.subr.mxu0 0.0
  %1425 = vmatpush1.msra.mxu0 %v1376
  %1426 = vmatprep.subr.mxu0 0.0
  %1427 = vmatpush1.msra.mxu0 0.0
  %1428 = vmatprep.subr.mxu0 0.0
  %1429 = vmatpush1.msra.mxu0 0.0
  %1430 = vmatprep.subr.mxu0 0.0
  %1431 = vmatpush1.msra.mxu0 0.0
  %1432 = vmatprep.subr.mxu0 0.0
  %1433 = vmatpush1.msra.mxu0 0.0
  %1434 = vmatprep.subr.mxu0 0.0
  %1435 = vmatpush1.msra.mxu0 0.0
  %1436 = vmatprep.subr.mxu0 0.0
  %1437 = vmatpush1.msra.mxu0 0.0
  %1438 = vmatprep.subr.mxu0 0.0
  %1439 = vmatpush1.msra.mxu0 0.0
  %1440 = vmatprep.subr.mxu0 0.0
  %1441 = vmatpush1.msra.mxu0 0.0
  %1442 = vmatprep.subr.mxu0 0.0
  %1443 = vmatpush1.msra.mxu0 0.0
  %1444 = vmatprep.subr.mxu0 0.0
  %1445 = vmatpush1.msra.mxu0 0.0
  %1446 = vmatprep.subr.mxu0 0.0
  %1447 = vmatpush1.msra.mxu0 0.0
  %1448 = vmatprep.subr.mxu0 0.0
  %1449 = vmatpush1.msra.mxu0 0.0
  %1450 = vmatprep.subr.mxu0 0.0
  %1451 = vmatpush1.msra.mxu0 0.0
  %1452 = vmatprep.subr.mxu0 0.0
  %1453 = vmatpush1.msra.mxu0 0.0
  %1454 = vmatprep.subr.mxu0 0.0
  %1455 = vmatpush1.msra.mxu0 0.0
  %1456 = vmatprep.subr.mxu0 0.0
  %1457 = vmatpush1.msra.mxu0 0.0
  %1458 = vmatprep.subr.mxu0 0.0
  %1459 = vmatpush1.msra.mxu0 0.0
  %1460 = vmatprep.subr.mxu0 0.0
  %1461 = vmatpush1.msra.mxu0 0.0
  %1462 = vmatprep.subr.mxu0 0.0
  %1463 = vmatpush1.msra.mxu0 0.0
  %1464 = vmatprep.subr.mxu0 0.0
  %1465 = vmatpush1.msra.mxu0 0.0
  %1466 = vmatprep.subr.mxu0 0.0
  %1467 = vmatpush1.msra.mxu0 0.0
  %1468 = vmatprep.subr.mxu0 0.0
  %1469 = vmatpush1.msra.mxu0 0.0
  %1470 = vmatprep.subr.mxu0 0.0
  %1471 = vmatpush1.msra.mxu0 0.0
  %1472 = vmatprep.subr.mxu0 0.0
  %1473 = vmatpush1.msra.mxu0 0.0
  %1474 = vmatprep.subr.mxu0 0.0
  %1475 = vmatpush1.msra.mxu0 0.0
  %1476 = vmatprep.subr.mxu0 0.0
  %1477 = vmatpush1.msra.mxu0 0.0
  %1478 = vmatprep.subr.mxu0 0.0
  %1479 = vmatpush1.msra.mxu0 0.0
  %1480 = vmatprep.subr.mxu0 0.0
  %1481 = vmatpush1.msra.mxu0 0.0
  %1482 = vmatprep.mubr.f32.mxu0 0.0
  %1483 = vmatmul.mubr.f32.gmra.mrb[0].mxu0 %v1413
  %v1484 = vpop.f32.mrb[0].mxu0
  %v1485 = vadd.f32 0.0, %v1484
  %v1486 = vpop.f32.mrb[0].mxu0
  %1487 = vmatprep.mubr.f32.mxu0 0.0
  %1488 = vmatmul.mubr.f32.gmra.mrb[0].mxu0 %v1416
  %v1489 = vpop.f32.mrb[0].mxu0
  %v1490 = vadd.f32 0.0, %v1489
  %v1491 = vpop.f32.mrb[0].mxu0
  %1492 = vdwg.mxu0
  %v1493 = vadd.f32 %v1377, %v1485
  %v1494 = vadd.f32 %v1378, %v1490
  %1495 = vst.msk [vmem:[%s9] sm:$0xff] %vm572, %v1493
  %1496 = vst.msk [vmem:[%s9 + $0x8] sm:$0xff] %vm572, %v1494
  // Predicated region
  $region42: #{gat_forward.8} parent=0 // pred_check
    %p1497 = pneg %p32
  $region43: #{gat_forward.8} parent=0 // pred_check_branch
    %1499 = sbr.rel (%p1497) target = $region45
  $region44: #{gat_forward.8} parent=0 // pred_region
    %v1500 = vld [vmem:[%s9] sm:$0xff]
    %v1501 = vld [vmem:[%s9 + $0x8] sm:$0xff]
    %v1502 = vsel %vm572, %v1500, 0.0
    %v1503 = vsel %vm572, %v1501, 0.0
    %v1504 = vadd.f32 %v1502, %v1503
    %v1505 = vrot.slane %v1504, 4
    %v1506 = vadd.f32 %v1504, %v1505
    %v1507 = vrot.slane %v1506, 2
    %v1508 = vadd.f32 %v1506, %v1507
    %v1509 = vrot.slane %v1508, 1
    %v1510 = vadd.f32 %v1508, %v1509
    %v1511 = vrcp.pop 16.0
    %v1512 = vmul.f32 %v1510, %v1511
    %v1513 = vsub.f32 %v1500, %v1512
    %v1514 = vsub.f32 %v1501, %v1512
    %v1515 = vmul.f32 %v1513, %v1513
    %v1516 = vmul.f32 %v1514, %v1514
    %v1517 = vsel %vm572, %v1515, 0.0
    %v1518 = vsel %vm572, %v1516, 0.0
    %v1519 = vadd.f32 %v1517, %v1518
    %v1520 = vrot.slane %v1519, 4
    %v1521 = vadd.f32 %v1519, %v1520
    %v1522 = vrot.slane %v1521, 2
    %v1523 = vadd.f32 %v1521, %v1522
    %v1524 = vrot.slane %v1523, 1
    %v1525 = vadd.f32 %v1523, %v1524
    %v1526 = vmul.f32 %v1525, %v1511
    %v1527 = vadd.f32 %v1526, 1e-05
    %v1528 = vrsqrt.pop %v1527
    %v1529 = vmul.f32 %v1513, %v1528
    %v1530 = vmul.f32 %v1514, %v1528
    %v1531 = vmax.f32 %v1529, 0.0
    %v1532 = vmax.f32 %v1530, 0.0
    %1533 = vst.msk [vmem:[%s9] sm:$0xff] %vm572, %v1531
    %1534 = vst.msk [vmem:[%s9 + $0x8] sm:$0xff] %vm572, %v1532
  $region45: #{gat_forward.8} parent=0 // pred_fallthru
    _
  // Predicated region
  $region46: #{gat_forward.8} parent=0 // pred_check
    _
  $region47: #{gat_forward.8} parent=0 // pred_check_branch
    %1536 = sbr.rel (0) target = $region49
  $region48: #{gat_forward.8} parent=0 // pred_region
    _
  $region49: #{gat_forward.8} parent=0 // pred_fallthru
    _
  // Predicated region
  $region50: #{gat_forward.8} parent=0 // pred_check
    _
  $region51: #{gat_forward.8} parent=0 // pred_check_branch
    %1538 = sbr.rel (0) target = $region53
  $region52: #{gat_forward.8} parent=0 // pred_region
    _
  $region53: #{gat_forward.8} parent=0 // pred_fallthru
    _

// kernel: gat_forward.11
$region0: #{gat_forward.11}
  #allocation0 [shape = 'u32[]', space=smem, size = 0x4, offset = 0x4, fixed_abs, tag = 'smem constant byte address 0x4 - core index']
  #allocation1 [shape = 'u32[144,128]{1,0:T(1,128)}', space=vmem, size = 0x12000, scoped, tag = 'internal scratch']
  #allocation2 [shape = 'f32[1,1]{1,0:T(1,128)S(1)}', space=vmem, size = 0x200, scoped, tag = 'scoped memory for gat_forward.11']
  %s0 = inlined_call_operand.vmem [shape: f32[2,8], index: 0, kind: input, shape index: {}]
  %s1 = inlined_call_operand.vmem [shape: f32[8,16], index: 1, kind: input, shape index: {}]
  %s2 = inlined_call_operand.vmem [shape: f32[1,16], index: 2, kind: input, shape index: {}]
  %s3 = inlined_call_operand.vmem [shape: f32[16,16], index: 3, kind: input, shape index: {}]
  %s4 = inlined_call_operand.vmem [shape: f32[1,16], index: 4, kind: input, shape index: {}]
  %s5 = inlined_call_operand.vmem [shape: f32[16,16], index: 5, kind: input, shape index: {}]
  %s6 = inlined_call_operand.vmem [shape: f32[1,16], index: 6, kind: input, shape index: {}]
  %s7 = inlined_call_operand.vmem [shape: f32[16,16], index: 7, kind: input, shape index: {}]
  %s8 = inlined_call_operand.vmem [shape: f32[1,16], index: 8, kind: input, shape index: {}]
  %s9 = inlined_call_operand.vmem [shape: f32[16,1], index: 9, kind: input, shape index: {}]
  %s10 = inlined_call_operand.<no memory space> [shape: f32[1,1], index: 10, kind: input, shape index: {}]
  %s11 = inlined_call_operand.vmem [shape: f32[2,1], index: 11, kind: output, shape index: {}]
  %s12 = sld [smem:[#allocation0]]
  $region54: #{gat_forward.11} parent=0
    _
  %s14 = ssub.s32 1, %s12
  %s15 = scalar_select 0, %s14, %s12
  %v16 = vstv %s10
  %17 = vst [vmem:[#allocation2] sm:$0x1] %v16
  // Predicated region
  $region2: #{gat_forward.11} parent=0 // pred_check
    _
  $region3: #{gat_forward.11} parent=0 // pred_check_branch
    %19 = sbr.rel (0) target = $region5
  $region4: #{gat_forward.11} parent=0 // pred_region
    _
  $region5: #{gat_forward.11} parent=0 // pred_fallthru
    _
  // Predicated region
  $region6: #{gat_forward.11} parent=0 // pred_check
    _
  $region7: #{gat_forward.11} parent=0 // pred_check_branch
    %21 = sbr.rel (0) target = $region9
  $region8: #{gat_forward.11} parent=0 // pred_region
    _
  $region9: #{gat_forward.11} parent=0 // pred_fallthru
    _
  // Predicated region
  $region10: #{gat_forward.11} parent=0 // pred_check
    _
  $region11: #{gat_forward.11} parent=0 // pred_check_branch
    %23 = sbr.rel (0) target = $region13
  $region12: #{gat_forward.11} parent=0 // pred_region
    _
  $region13: #{gat_forward.11} parent=0 // pred_fallthru
    _
  // Predicated region
  $region14: #{gat_forward.11} parent=0 // pred_check
    _
  $region15: #{gat_forward.11} parent=0 // pred_check_branch
    %25 = sbr.rel (0) target = $region17
  $region16: #{gat_forward.11} parent=0 // pred_region
    _
  $region17: #{gat_forward.11} parent=0 // pred_fallthru
    _
  // Predicated region
  $region18: #{gat_forward.11} parent=0 // pred_check
    _
  $region19: #{gat_forward.11} parent=0 // pred_check_branch
    %27 = sbr.rel (0) target = $region21
  $region20: #{gat_forward.11} parent=0 // pred_region
    _
  $region21: #{gat_forward.11} parent=0 // pred_fallthru
    _
  // Predicated region
  $region22: #{gat_forward.11} parent=0 // pred_check
    _
  $region23: #{gat_forward.11} parent=0 // pred_check_branch
    %29 = sbr.rel (0) target = $region25
  $region24: #{gat_forward.11} parent=0 // pred_region
    _
  $region25: #{gat_forward.11} parent=0 // pred_fallthru
    _
  // Predicated region
  $region26: #{gat_forward.11} parent=0 // pred_check
    _
  $region27: #{gat_forward.11} parent=0 // pred_check_branch
    %31 = sbr.rel (0) target = $region29
  $region28: #{gat_forward.11} parent=0 // pred_region
    _
  $region29: #{gat_forward.11} parent=0 // pred_fallthru
    _
  // Predicated region
  $region30: #{gat_forward.11} parent=0 // pred_check
    _
  $region31: #{gat_forward.11} parent=0 // pred_check_branch
    %33 = sbr.rel (0) target = $region33
  $region32: #{gat_forward.11} parent=0 // pred_region
    _
  $region33: #{gat_forward.11} parent=0 // pred_fallthru
    _
  // Predicated region
  $region34: #{gat_forward.11} parent=0 // pred_check
    _
  $region35: #{gat_forward.11} parent=0 // pred_check_branch
    %35 = sbr.rel (0) target = $region37
  $region36: #{gat_forward.11} parent=0 // pred_region
    _
  $region37: #{gat_forward.11} parent=0 // pred_fallthru
    _
  // Predicated region
  $region38: #{gat_forward.11} parent=0 // pred_check
    _
  $region39: #{gat_forward.11} parent=0 // pred_check_branch
    %37 = sbr.rel (0) target = $region41
  $region40: #{gat_forward.11} parent=0 // pred_region
    _
  $region41: #{gat_forward.11} parent=0 // pred_fallthru
    _
  // Predicated region
  $region42: #{gat_forward.11} parent=0 // pred_check
    _
  $region43: #{gat_forward.11} parent=0 // pred_check_branch
    %39 = sbr.rel (0) target = $region45
  $region44: #{gat_forward.11} parent=0 // pred_region
    _
  $region45: #{gat_forward.11} parent=0 // pred_fallthru
    _
  %v40 = vld [vmem:[%s0] sm:$0x3]
  %vm41 = vcmask 58368
  %v42 = vsel %vm41, %v40, 0.0
  %v43 = vrot.slane %v42, 4
  %v44 = vadd.f32 %v42, %v43
  %v45 = vrot.slane %v44, 2
  %v46 = vadd.f32 %v44, %v45
  %v47 = vrot.slane %v46, 1
  %v48 = vadd.f32 %v46, %v47
  %v49 = vrcp.pop 2.0
  %v50 = vmul.f32 %v48, %v49
  %v51 = vsub.f32 %v40, %v50
  %v52 = vmul.f32 %v51, %v51
  %v53 = vsel %vm41, %v52, 0.0
  %v54 = vrot.slane %v53, 4
  %v55 = vadd.f32 %v53, %v54
  %v56 = vrot.slane %v55, 2
  %v57 = vadd.f32 %v55, %v56
  %v58 = vrot.slane %v57, 1
  %v59 = vadd.f32 %v57, %v58
  %v60 = vmul.f32 %v59, %v49
  %v61 = vadd.f32 %v60, 1e-05
  %v62 = vrsqrt.pop %v61
  %v63 = vmul.f32 %v51, %v62
  %v64 = vmax.f32 %v63, 0.0
  %v65 = vld [vmem:[%s1] sm:$0xff]
  %v66 = vld [vmem:[%s2] sm:$0x1]
  %v68 = vlaneseq
  %v69 = vshrl.u32 %v68, 7
  %v70 = vsub.s32 0, %v69
  %v71 = vrot.slane %v66, %v70
  %vm73 = vcmask 64512
  %v75 = vsel %vm73, %v64, 0
  %77 = vmatprep.subr.mxu0 0.0
  %78 = vmatpush1.msra.mxu0 %v65
  %79 = vmatprep.subr.mxu0 0.0
  %80 = vmatpush1.msra.mxu0 0.0
  %81 = vmatprep.subr.mxu0 0.0
  %82 = vmatpush1.msra.mxu0 0.0
  %83 = vmatprep.subr.mxu0 0.0
  %84 = vmatpush1.msra.mxu0 0.0
  %85 = vmatprep.subr.mxu0 0.0
  %86 = vmatpush1.msra.mxu0 0.0
  %87 = vmatprep.subr.mxu0 0.0
  %88 = vmatpush1.msra.mxu0 0.0
  %89 = vmatprep.subr.mxu0 0.0
  %90 = vmatpush1.msra.mxu0 0.0
  %91 = vmatprep.subr.mxu0 0.0
  %92 = vmatpush1.msra.mxu0 0.0
  %93 = vmatprep.subr.mxu0 0.0
  %94 = vmatpush1.msra.mxu0 0.0
  %95 = vmatprep.subr.mxu0 0.0
  %96 = vmatpush1.msra.mxu0 0.0
  %97 = vmatprep.subr.mxu0 0.0
  %98 = vmatpush1.msra.mxu0 0.0
  %99 = vmatprep.subr.mxu0 0.0
  %100 = vmatpush1.msra.mxu0 0.0
  %101 = vmatprep.subr.mxu0 0.0
  %102 = vmatpush1.msra.mxu0 0.0
  %103 = vmatprep.subr.mxu0 0.0
  %104 = vmatpush1.msra.mxu0 0.0
  %105 = vmatprep.subr.mxu0 0.0
  %106 = vmatpush1.msra.mxu0 0.0
  %107 = vmatprep.subr.mxu0 0.0
  %108 = vmatpush1.msra.mxu0 0.0
  %109 = vmatprep.subr.mxu0 0.0
  %110 = vmatpush1.msra.mxu0 0.0
  %111 = vmatprep.subr.mxu0 0.0
  %112 = vmatpush1.msra.mxu0 0.0
  %113 = vmatprep.subr.mxu0 0.0
  %114 = vmatpush1.msra.mxu0 0.0
  %115 = vmatprep.subr.mxu0 0.0
  %116 = vmatpush1.msra.mxu0 0.0
  %117 = vmatprep.subr.mxu0 0.0
  %118 = vmatpush1.msra.mxu0 0.0
  %119 = vmatprep.subr.mxu0 0.0
  %120 = vmatpush1.msra.mxu0 0.0
  %121 = vmatprep.subr.mxu0 0.0
  %122 = vmatpush1.msra.mxu0 0.0
  %123 = vmatprep.subr.mxu0 0.0
  %124 = vmatpush1.msra.mxu0 0.0
  %125 = vmatprep.subr.mxu0 0.0
  %126 = vmatpush1.msra.mxu0 0.0
  %127 = vmatprep.subr.mxu0 0.0
  %128 = vmatpush1.msra.mxu0 0.0
  %129 = vmatprep.subr.mxu0 0.0
  %130 = vmatpush1.msra.mxu0 0.0
  %131 = vmatprep.subr.mxu0 0.0
  %132 = vmatpush1.msra.mxu0 0.0
  %133 = vmatprep.subr.mxu0 0.0
  %134 = vmatpush1.msra.mxu0 0.0
  %135 = vmatprep.subr.mxu0 0.0
  %136 = vmatpush1.msra.mxu0 0.0
  %137 = vmatprep.subr.mxu0 0.0
  %138 = vmatpush1.msra.mxu0 0.0
  %139 = vmatprep.subr.mxu0 0.0
  %140 = vmatpush1.msra.mxu0 0.0
  %141 = vmatprep.mubr.f32.mxu0 0.0
  %142 = vmatmul.mubr.f32.gmra.mrb[0].mxu0 %v75
  %v143 = vpop.f32.mrb[0].mxu0
  %v144 = vadd.f32 %v71, %v143
  %v145 = vpop.f32.mrb[0].mxu0
  %146 = vdwg.mxu0
  %vm147 = vcmask 123904
  %v148 = vsel %vm147, %v144, 0.0
  %v149 = vrot.slane %v148, 4
  %v150 = vadd.f32 %v148, %v149
  %v151 = vrot.slane %v150, 2
  %v152 = vadd.f32 %v150, %v151
  %v153 = vrot.slane %v152, 1
  %v154 = vadd.f32 %v152, %v153
  %v155 = vmul.f32 %v154, %v49
  %v156 = vsub.f32 %v144, %v155
  %v157 = vmul.f32 %v156, %v156
  %v158 = vsel %vm147, %v157, 0.0
  %v159 = vrot.slane %v158, 4
  %v160 = vadd.f32 %v158, %v159
  %v161 = vrot.slane %v160, 2
  %v162 = vadd.f32 %v160, %v161
  %v163 = vrot.slane %v162, 1
  %v164 = vadd.f32 %v162, %v163
  %v165 = vmul.f32 %v164, %v49
  %v166 = vadd.f32 %v165, 1e-05
  %v167 = vrsqrt.pop %v166
  %v168 = vmul.f32 %v156, %v167
  %v169 = vmax.f32 %v168, 0.0
  %v170 = vld [vmem:[%s3] sm:$0xff]
  %v171 = vld [vmem:[%s3 + $0x8] sm:$0xff]
  %v172 = vld [vmem:[%s4] sm:$0x1]
  %v174 = vlaneseq
  %v175 = vshrl.u32 %v174, 7
  %v176 = vsub.s32 0, %v175
  %v177 = vrot.slane %v172, %v176
  %vm179 = vcmask 130048
  %v181 = vsel %vm179, %v169, 0
  %183 = vmatprep.subr.mxu0 0.0
  %184 = vmatpush1.msra.mxu0 %v170
  %185 = vmatprep.subr.mxu0 0.0
  %186 = vmatpush1.msra.mxu0 %v171
  %187 = vmatprep.subr.mxu0 0.0
  %188 = vmatpush1.msra.mxu0 0.0
  %189 = vmatprep.subr.mxu0 0.0
  %190 = vmatpush1.msra.mxu0 0.0
  %191 = vmatprep.subr.mxu0 0.0
  %192 = vmatpush1.msra.mxu0 0.0
  %193 = vmatprep.subr.mxu0 0.0
  %194 = vmatpush1.msra.mxu0 0.0
  %195 = vmatprep.subr.mxu0 0.0
  %196 = vmatpush1.msra.mxu0 0.0
  %197 = vmatprep.subr.mxu0 0.0
  %198 = vmatpush1.msra.mxu0 0.0
  %199 = vmatprep.subr.mxu0 0.0
  %200 = vmatpush1.msra.mxu0 0.0
  %201 = vmatprep.subr.mxu0 0.0
  %202 = vmatpush1.msra.mxu0 0.0
  %203 = vmatprep.subr.mxu0 0.0
  %204 = vmatpush1.msra.mxu0 0.0
  %205 = vmatprep.subr.mxu0 0.0
  %206 = vmatpush1.msra.mxu0 0.0
  %207 = vmatprep.subr.mxu0 0.0
  %208 = vmatpush1.msra.mxu0 0.0
  %209 = vmatprep.subr.mxu0 0.0
  %210 = vmatpush1.msra.mxu0 0.0
  %211 = vmatprep.subr.mxu0 0.0
  %212 = vmatpush1.msra.mxu0 0.0
  %213 = vmatprep.subr.mxu0 0.0
  %214 = vmatpush1.msra.mxu0 0.0
  %215 = vmatprep.subr.mxu0 0.0
  %216 = vmatpush1.msra.mxu0 0.0
  %217 = vmatprep.subr.mxu0 0.0
  %218 = vmatpush1.msra.mxu0 0.0
  %219 = vmatprep.subr.mxu0 0.0
  %220 = vmatpush1.msra.mxu0 0.0
  %221 = vmatprep.subr.mxu0 0.0
  %222 = vmatpush1.msra.mxu0 0.0
  %223 = vmatprep.subr.mxu0 0.0
  %224 = vmatpush1.msra.mxu0 0.0
  %225 = vmatprep.subr.mxu0 0.0
  %226 = vmatpush1.msra.mxu0 0.0
  %227 = vmatprep.subr.mxu0 0.0
  %228 = vmatpush1.msra.mxu0 0.0
  %229 = vmatprep.subr.mxu0 0.0
  %230 = vmatpush1.msra.mxu0 0.0
  %231 = vmatprep.subr.mxu0 0.0
  %232 = vmatpush1.msra.mxu0 0.0
  %233 = vmatprep.subr.mxu0 0.0
  %234 = vmatpush1.msra.mxu0 0.0
  %235 = vmatprep.subr.mxu0 0.0
  %236 = vmatpush1.msra.mxu0 0.0
  %237 = vmatprep.subr.mxu0 0.0
  %238 = vmatpush1.msra.mxu0 0.0
  %239 = vmatprep.subr.mxu0 0.0
  %240 = vmatpush1.msra.mxu0 0.0
  %241 = vmatprep.subr.mxu0 0.0
  %242 = vmatpush1.msra.mxu0 0.0
  %243 = vmatprep.subr.mxu0 0.0
  %244 = vmatpush1.msra.mxu0 0.0
  %245 = vmatprep.subr.mxu0 0.0
  %246 = vmatpush1.msra.mxu0 0.0
  %247 = vmatprep.mubr.f32.mxu0 0.0
  %248 = vmatmul.mubr.f32.gmra.mrb[0].mxu0 %v181
  %v249 = vpop.f32.mrb[0].mxu0
  %v250 = vadd.f32 %v177, %v249
  %v251 = vpop.f32.mrb[0].mxu0
  %252 = vdwg.mxu0
  %v253 = vadd.f32 %v250, %v144
  %v254 = vsel %vm147, %v253, 0.0
  %v255 = vrot.slane %v254, 4
  %v256 = vadd.f32 %v254, %v255
  %v257 = vrot.slane %v256, 2
  %v258 = vadd.f32 %v256, %v257
  %v259 = vrot.slane %v258, 1
  %v260 = vadd.f32 %v258, %v259
  %v261 = vmul.f32 %v260, %v49
  %v262 = vsub.f32 %v253, %v261
  %v263 = vmul.f32 %v262, %v262
  %v264 = vsel %vm147, %v263, 0.0
  %v265 = vrot.slane %v264, 4
  %v266 = vadd.f32 %v264, %v265
  %v267 = vrot.slane %v266, 2
  %v268 = vadd.f32 %v266, %v267
  %v269 = vrot.slane %v268, 1
  %v270 = vadd.f32 %v268, %v269
  %v271 = vmul.f32 %v270, %v49
  %v272 = vadd.f32 %v271, 1e-05
  %v273 = vrsqrt.pop %v272
  %v274 = vmul.f32 %v262, %v273
  %v275 = vmax.f32 %v274, 0.0
  %v276 = vld [vmem:[%s5] sm:$0xff]
  %v277 = vld [vmem:[%s5 + $0x8] sm:$0xff]
  %v278 = vld [vmem:[%s6] sm:$0x1]
  %v280 = vlaneseq
  %v281 = vshrl.u32 %v280, 7
  %v282 = vsub.s32 0, %v281
  %v283 = vrot.slane %v278, %v282
  %v286 = vsel %vm179, %v275, 0
  %288 = vmatprep.subr.mxu0 0.0
  %289 = vmatpush1.msra.mxu0 %v276
  %290 = vmatprep.subr.mxu0 0.0
  %291 = vmatpush1.msra.mxu0 %v277
  %292 = vmatprep.subr.mxu0 0.0
  %293 = vmatpush1.msra.mxu0 0.0
  %294 = vmatprep.subr.mxu0 0.0
  %295 = vmatpush1.msra.mxu0 0.0
  %296 = vmatprep.subr.mxu0 0.0
  %297 = vmatpush1.msra.mxu0 0.0
  %298 = vmatprep.subr.mxu0 0.0
  %299 = vmatpush1.msra.mxu0 0.0
  %300 = vmatprep.subr.mxu0 0.0
  %301 = vmatpush1.msra.mxu0 0.0
  %302 = vmatprep.subr.mxu0 0.0
  %303 = vmatpush1.msra.mxu0 0.0
  %304 = vmatprep.subr.mxu0 0.0
  %305 = vmatpush1.msra.mxu0 0.0
  %306 = vmatprep.subr.mxu0 0.0
  %307 = vmatpush1.msra.mxu0 0.0
  %308 = vmatprep.subr.mxu0 0.0
  %309 = vmatpush1.msra.mxu0 0.0
  %310 = vmatprep.subr.mxu0 0.0
  %311 = vmatpush1.msra.mxu0 0.0
  %312 = vmatprep.subr.mxu0 0.0
  %313 = vmatpush1.msra.mxu0 0.0
  %314 = vmatprep.subr.mxu0 0.0
  %315 = vmatpush1.msra.mxu0 0.0
  %316 = vmatprep.subr.mxu0 0.0
  %317 = vmatpush1.msra.mxu0 0.0
  %318 = vmatprep.subr.mxu0 0.0
  %319 = vmatpush1.msra.mxu0 0.0
  %320 = vmatprep.subr.mxu0 0.0
  %321 = vmatpush1.msra.mxu0 0.0
  %322 = vmatprep.subr.mxu0 0.0
  %323 = vmatpush1.msra.mxu0 0.0
  %324 = vmatprep.subr.mxu0 0.0
  %325 = vmatpush1.msra.mxu0 0.0
  %326 = vmatprep.subr.mxu0 0.0
  %327 = vmatpush1.msra.mxu0 0.0
  %328 = vmatprep.subr.mxu0 0.0
  %329 = vmatpush1.msra.mxu0 0.0
  %330 = vmatprep.subr.mxu0 0.0
  %331 = vmatpush1.msra.mxu0 0.0
  %332 = vmatprep.subr.mxu0 0.0
  %333 = vmatpush1.msra.mxu0 0.0
  %334 = vmatprep.subr.mxu0 0.0
  %335 = vmatpush1.msra.mxu0 0.0
  %336 = vmatprep.subr.mxu0 0.0
  %337 = vmatpush1.msra.mxu0 0.0
  %338 = vmatprep.subr.mxu0 0.0
  %339 = vmatpush1.msra.mxu0 0.0
  %340 = vmatprep.subr.mxu0 0.0
  %341 = vmatpush1.msra.mxu0 0.0
  %342 = vmatprep.subr.mxu0 0.0
  %343 = vmatpush1.msra.mxu0 0.0
  %344 = vmatprep.subr.mxu0 0.0
  %345 = vmatpush1.msra.mxu0 0.0
  %346 = vmatprep.subr.mxu0 0.0
  %347 = vmatpush1.msra.mxu0 0.0
  %348 = vmatprep.subr.mxu0 0.0
  %349 = vmatpush1.msra.mxu0 0.0
  %350 = vmatprep.subr.mxu0 0.0
  %351 = vmatpush1.msra.mxu0 0.0
  %352 = vmatprep.mubr.f32.mxu0 0.0
  %353 = vmatmul.mubr.f32.gmra.mrb[0].mxu0 %v286
  %v354 = vpop.f32.mrb[0].mxu0
  %v355 = vadd.f32 %v283, %v354
  %v356 = vpop.f32.mrb[0].mxu0
  %357 = vdwg.mxu0
  %v358 = vadd.f32 %v355, %v253
  %v359 = vsel %vm147, %v358, 0.0
  %v360 = vrot.slane %v359, 4
  %v361 = vadd.f32 %v359, %v360
  %v362 = vrot.slane %v361, 2
  %v363 = vadd.f32 %v361, %v362
  %v364 = vrot.slane %v363, 1
  %v365 = vadd.f32 %v363, %v364
  %v366 = vmul.f32 %v365, %v49
  %v367 = vsub.f32 %v358, %v366
  %v368 = vmul.f32 %v367, %v367
  %v369 = vsel %vm147, %v368, 0.0
  %v370 = vrot.slane %v369, 4
  %v371 = vadd.f32 %v369, %v370
  %v372 = vrot.slane %v371, 2
  %v373 = vadd.f32 %v371, %v372
  %v374 = vrot.slane %v373, 1
  %v375 = vadd.f32 %v373, %v374
  %v376 = vmul.f32 %v375, %v49
  %v377 = vadd.f32 %v376, 1e-05
  %v378 = vrsqrt.pop %v377
  %v379 = vmul.f32 %v367, %v378
  %v380 = vmax.f32 %v379, 0.0
  %v381 = vld [vmem:[%s7] sm:$0xff]
  %v382 = vld [vmem:[%s7 + $0x8] sm:$0xff]
  %v383 = vld [vmem:[%s8] sm:$0x1]
  %v385 = vlaneseq
  %v386 = vshrl.u32 %v385, 7
  %v387 = vsub.s32 0, %v386
  %v388 = vrot.slane %v383, %v387
  %v391 = vsel %vm179, %v380, 0
  %393 = vmatprep.subr.mxu0 0.0
  %394 = vmatpush1.msra.mxu0 %v381
  %395 = vmatprep.subr.mxu0 0.0
  %396 = vmatpush1.msra.mxu0 %v382
  %397 = vmatprep.subr.mxu0 0.0
  %398 = vmatpush1.msra.mxu0 0.0
  %399 = vmatprep.subr.mxu0 0.0
  %400 = vmatpush1.msra.mxu0 0.0
  %401 = vmatprep.subr.mxu0 0.0
  %402 = vmatpush1.msra.mxu0 0.0
  %403 = vmatprep.subr.mxu0 0.0
  %404 = vmatpush1.msra.mxu0 0.0
  %405 = vmatprep.subr.mxu0 0.0
  %406 = vmatpush1.msra.mxu0 0.0
  %407 = vmatprep.subr.mxu0 0.0
  %408 = vmatpush1.msra.mxu0 0.0
  %409 = vmatprep.subr.mxu0 0.0
  %410 = vmatpush1.msra.mxu0 0.0
  %411 = vmatprep.subr.mxu0 0.0
  %412 = vmatpush1.msra.mxu0 0.0
  %413 = vmatprep.subr.mxu0 0.0
  %414 = vmatpush1.msra.mxu0 0.0
  %415 = vmatprep.subr.mxu0 0.0
  %416 = vmatpush1.msra.mxu0 0.0
  %417 = vmatprep.subr.mxu0 0.0
  %418 = vmatpush1.msra.mxu0 0.0
  %419 = vmatprep.subr.mxu0 0.0
  %420 = vmatpush1.msra.mxu0 0.0
  %421 = vmatprep.subr.mxu0 0.0
  %422 = vmatpush1.msra.mxu0 0.0
  %423 = vmatprep.subr.mxu0 0.0
  %424 = vmatpush1.msra.mxu0 0.0
  %425 = vmatprep.subr.mxu0 0.0
  %426 = vmatpush1.msra.mxu0 0.0
  %427 = vmatprep.subr.mxu0 0.0
  %428 = vmatpush1.msra.mxu0 0.0
  %429 = vmatprep.subr.mxu0 0.0
  %430 = vmatpush1.msra.mxu0 0.0
  %431 = vmatprep.subr.mxu0 0.0
  %432 = vmatpush1.msra.mxu0 0.0
  %433 = vmatprep.subr.mxu0 0.0
  %434 = vmatpush1.msra.mxu0 0.0
  %435 = vmatprep.subr.mxu0 0.0
  %436 = vmatpush1.msra.mxu0 0.0
  %437 = vmatprep.subr.mxu0 0.0
  %438 = vmatpush1.msra.mxu0 0.0
  %439 = vmatprep.subr.mxu0 0.0
  %440 = vmatpush1.msra.mxu0 0.0
  %441 = vmatprep.subr.mxu0 0.0
  %442 = vmatpush1.msra.mxu0 0.0
  %443 = vmatprep.subr.mxu0 0.0
  %444 = vmatpush1.msra.mxu0 0.0
  %445 = vmatprep.subr.mxu0 0.0
  %446 = vmatpush1.msra.mxu0 0.0
  %447 = vmatprep.subr.mxu0 0.0
  %448 = vmatpush1.msra.mxu0 0.0
  %449 = vmatprep.subr.mxu0 0.0
  %450 = vmatpush1.msra.mxu0 0.0
  %451 = vmatprep.subr.mxu0 0.0
  %452 = vmatpush1.msra.mxu0 0.0
  %453 = vmatprep.subr.mxu0 0.0
  %454 = vmatpush1.msra.mxu0 0.0
  %455 = vmatprep.subr.mxu0 0.0
  %456 = vmatpush1.msra.mxu0 0.0
  %457 = vmatprep.mubr.f32.mxu0 0.0
  %458 = vmatmul.mubr.f32.gmra.mrb[0].mxu0 %v391
  %v459 = vpop.f32.mrb[0].mxu0
  %v460 = vadd.f32 %v388, %v459
  %v461 = vpop.f32.mrb[0].mxu0
  %462 = vdwg.mxu0
  %v463 = vadd.f32 %v460, %v358
  %v464 = vld [vmem:[%s9] sm:$0xff]
  %v465 = vld [vmem:[%s9 + $0x8] sm:$0xff]
  %v466 = vld [vmem:[#allocation2] sm:$0x1]
  %v468 = vlaneseq
  %v469 = vshrl.u32 %v468, 7
  %v470 = vsub.s32 0, %v469
  %v471 = vrot.slane %v466, %v470
  %v474 = vsel %vm179, %v463, 0
  %476 = vmatprep.subr.mxu0 0.0
  %477 = vmatpush1.msra.mxu0 %v464
  %478 = vmatprep.subr.mxu0 0.0
  %479 = vmatpush1.msra.mxu0 %v465
  %480 = vmatprep.subr.mxu0 0.0
  %481 = vmatpush1.msra.mxu0 0.0
  %482 = vmatprep.subr.mxu0 0.0
  %483 = vmatpush1.msra.mxu0 0.0
  %484 = vmatprep.subr.mxu0 0.0
  %485 = vmatpush1.msra.mxu0 0.0
  %486 = vmatprep.subr.mxu0 0.0
  %487 = vmatpush1.msra.mxu0 0.0
  %488 = vmatprep.subr.mxu0 0.0
  %489 = vmatpush1.msra.mxu0 0.0
  %490 = vmatprep.subr.mxu0 0.0
  %491 = vmatpush1.msra.mxu0 0.0
  %492 = vmatprep.subr.mxu0 0.0
  %493 = vmatpush1.msra.mxu0 0.0
  %494 = vmatprep.subr.mxu0 0.0
  %495 = vmatpush1.msra.mxu0 0.0
  %496 = vmatprep.subr.mxu0 0.0
  %497 = vmatpush1.msra.mxu0 0.0
  %498 = vmatprep.subr.mxu0 0.0
  %499 = vmatpush1.msra.mxu0 0.0
  %500 = vmatprep.subr.mxu0 0.0
  %501 = vmatpush1.msra.mxu0 0.0
  %502 = vmatprep.subr.mxu0 0.0
  %503 = vmatpush1.msra.mxu0 0.0
  %504 = vmatprep.subr.mxu0 0.0
  %505 = vmatpush1.msra.mxu0 0.0
  %506 = vmatprep.subr.mxu0 0.0
  %507 = vmatpush1.msra.mxu0 0.0
  %508 = vmatprep.subr.mxu0 0.0
  %509 = vmatpush1.msra.mxu0 0.0
  %510 = vmatprep.subr.mxu0 0.0
  %511 = vmatpush1.msra.mxu0 0.0
  %512 = vmatprep.subr.mxu0 0.0
  %513 = vmatpush1.msra.mxu0 0.0
  %514 = vmatprep.subr.mxu0 0.0
  %515 = vmatpush1.msra.mxu0 0.0
  %516 = vmatprep.subr.mxu0 0.0
  %517 = vmatpush1.msra.mxu0 0.0
  %518 = vmatprep.subr.mxu0 0.0
  %519 = vmatpush1.msra.mxu0 0.0
  %520 = vmatprep.subr.mxu0 0.0
  %521 = vmatpush1.msra.mxu0 0.0
  %522 = vmatprep.subr.mxu0 0.0
  %523 = vmatpush1.msra.mxu0 0.0
  %524 = vmatprep.subr.mxu0 0.0
  %525 = vmatpush1.msra.mxu0 0.0
  %526 = vmatprep.subr.mxu0 0.0
  %527 = vmatpush1.msra.mxu0 0.0
  %528 = vmatprep.subr.mxu0 0.0
  %529 = vmatpush1.msra.mxu0 0.0
  %530 = vmatprep.subr.mxu0 0.0
  %531 = vmatpush1.msra.mxu0 0.0
  %532 = vmatprep.subr.mxu0 0.0
  %533 = vmatpush1.msra.mxu0 0.0
  %534 = vmatprep.subr.mxu0 0.0
  %535 = vmatpush1.msra.mxu0 0.0
  %536 = vmatprep.subr.mxu0 0.0
  %537 = vmatpush1.msra.mxu0 0.0
  %538 = vmatprep.subr.mxu0 0.0
  %539 = vmatpush1.msra.mxu0 0.0
  %540 = vmatprep.mubr.f32.mxu0 0.0
  %541 = vmatmul.mubr.f32.gmra.mrb[0].mxu0 %v474
  %v542 = vpop.f32.mrb[0].mxu0
  %v543 = vadd.f32 %v471, %v542
  %v544 = vpop.f32.mrb[0].mxu0
  %545 = vdwg.mxu0
  %vm546 = vcmask 1024
  %547 = vst.msk [vmem:[%s11] sm:$0x3] %vm546, %v543
  // Predicated region
  $region46: #{gat_forward.11} parent=0 // pred_check
    _
  $region47: #{gat_forward.11} parent=0 // pred_check_branch
    %549 = sbr.rel (0) target = $region49
  $region48: #{gat_forward.11} parent=0 // pred_region
    _
  $region49: #{gat_forward.11} parent=0 // pred_fallthru
    _
  // Predicated region
  $region50: #{gat_forward.11} parent=0 // pred_check
    _
  $region51: #{gat_forward.11} parent=0 // pred_check_branch
    %551 = sbr.rel (0) target = $region53
  $region52: #{gat_forward.11} parent=0 // pred_region
    _
  $region53: #{gat_forward.11} parent=0 // pred_fallthru
    _

</llo_original>
